<compile_context>
chip_gen: v7x
topology: tpu7x:2x2x1
jax: 0.10.0
libtpu: 0.0.40
codegen_flags: <defaults>
</compile_context>

<pallas_src>
import jax
import jax.numpy as jnp
from jax.experimental import pallas as pl
from jax.experimental.pallas import tpu as pltpu

C0, C1, C2, C3 = 3, 32, 64, 128        # channels: input, conv1, conv2, conv3


def _make_fused_kernel(H, W):
    """Builds the fused per-image kernel for an HxW input (H, W divisible by 4)."""
    H1, W1 = H, W
    H2, W2 = H // 2, W // 2
    H3, W3 = H // 4, W // 4

    def kernel(x_ref, w1_ref, b1_ref, w2_ref, b2_ref, w3_ref, b3_ref,
               fc1w_ref, fc1b_ref, fc2w_ref, fc2b_ref, o_ref,
               xp1_ref, xp2_ref, xp3_ref, p1_ref, p2_ref, p3_ref,
               ys1_ref, ys2_ref):

        def conv_bn_relu(xp_ref, p_ref, w_ref, b_ref, Hc, Wc, Cc):
            # Build the (Hc*Wc, 9*Cc) patch matrix once (taps folded into K),
            # then one bf16 MXU dot with f32 accumulation; epilogue bias+ReLU.
            xp = xp_ref[...]                                   # (Hc+2, Wc+2, Cc) f32
            for dy in range(3):
                for dx in range(3):
                    t = dy * 3 + dx
                    p_ref[:, t * Cc:(t + 1) * Cc] = (
                        xp[dy:dy + Hc, dx:dx + Wc, :].reshape(Hc * Wc, Cc))
            acc = jnp.dot(p_ref[...].astype(jnp.bfloat16), w_ref[...],
                          preferred_element_type=jnp.float32)
            return jnp.maximum(acc + b_ref[...], 0.0)          # (Hc*Wc, Cout) f32

        def maxpool2x2(ys_ref, Hc, Wc, Cout):
            # Rows of ys are output pixels in (i, j) order; Wc is even so
            # adjacent row pairs are horizontal neighbours -> stride-2 reads,
            # then row pairs folded with an aligned reshape.
            Ho, Wo = Hc // 2, Wc // 2
            half = (Hc * Wc) // 2
            cmax = jnp.maximum(ys_ref[pl.ds(0, half, 2), :],
                               ys_ref[pl.ds(1, half, 2), :])   # (Hc*Wo, Cout)
            z = cmax.reshape(Ho, 2 * Wo, Cout)                 # rows 2i / 2i+1 adjacent
            return jnp.maximum(z[:, :Wo, :], z[:, Wo:, :])     # (Ho, Wo, Cout) f32

        # ---- Stage 1: conv1 + BN + ReLU + 2x2 max-pool -----------------------
        xp1_ref[...] = jnp.zeros_like(xp1_ref)                 # zero halo
        xp1_ref[1:H1 + 1, 1:W1 + 1, :] = x_ref[0]              # (H, W, 3) f32
        ys1_ref[...] = conv_bn_relu(xp1_ref, p1_ref, w1_ref, b1_ref, H1, W1, C0)
        a1 = maxpool2x2(ys1_ref, H1, W1, C1)                   # (H/2, W/2, 32)

        # ---- Stage 2: conv2 + BN + ReLU + 2x2 max-pool -----------------------
        xp2_ref[...] = jnp.zeros_like(xp2_ref)
        xp2_ref[1:H2 + 1, 1:W2 + 1, :] = a1
        ys2_ref[...] = conv_bn_relu(xp2_ref, p2_ref, w2_ref, b2_ref, H2, W2, C1)
        a2 = maxpool2x2(ys2_ref, H2, W2, C2)                   # (H/4, W/4, 64)

        # ---- Stage 3: conv3 + BN + ReLU + global-avg-pool + MLP head ---------
        xp3_ref[...] = jnp.zeros_like(xp3_ref)
        xp3_ref[1:H3 + 1, 1:W3 + 1, :] = a2
        y3 = conv_bn_relu(xp3_ref, p3_ref, w3_ref, b3_ref, H3, W3, C2)  # (H3*W3, 128)
        feat = jnp.mean(y3, axis=0, keepdims=True)             # AdaptiveAvgPool2d((1,1))

        # Classifier head; Dropout layers are identity at inference.
        h = jnp.maximum(
            jnp.dot(feat, fc1w_ref[...], preferred_element_type=jnp.float32)
            + fc1b_ref[...], 0.0)
        o_ref[0] = (jnp.dot(h, fc2w_ref[...], preferred_element_type=jnp.float32)
                    + fc2b_ref[...])

    return kernel


def test_cnn_forward(x_nchw, p):
    """x_nchw: (N, 3, H, W) f32 (PyTorch layout).  Returns (N, num_classes) f32."""
    N, cin, H, W = x_nchw.shape
    assert cin == C0 and H % 4 == 0 and W % 4 == 0
    hidden = p["fc1_w"].shape[1]
    num_classes = p["fc2_w"].shape[1]

    # Single tiny XLA relayout NCHW -> NHWC; everything else happens in-kernel.
    x = jnp.transpose(x_nchw, (0, 2, 3, 1)).astype(jnp.float32)

    H1, W1 = H, W
    H2, W2 = H // 2, W // 2
    H3, W3 = H // 4, W // 4

    flops = 2 * N * (H1 * W1 * 9 * C0 * C1 + H2 * W2 * 9 * C1 * C2
                     + H3 * W3 * 9 * C2 * C3 + C3 * hidden + hidden * num_classes)
    bytes_accessed = (x.size * 4
                      + (p["w1"].size + p["w2"].size + p["w3"].size) * 2
                      + (p["fc1_w"].size + p["fc2_w"].size) * 4
                      + (C1 + C2 + C3 + hidden + num_classes) * 4
                      + N * num_classes * 4)

    out = pl.pallas_call(
        _make_fused_kernel(H, W),
        out_shape=jax.ShapeDtypeStruct((N, 1, num_classes), jnp.float32),
        grid=(N,),
        in_specs=[
            pl.BlockSpec((1, H, W, C0), lambda n: (n, 0, 0, 0)),
            pl.BlockSpec((9 * C0, C1), lambda n: (0, 0)),
            pl.BlockSpec((1, C1), lambda n: (0, 0)),
            pl.BlockSpec((9 * C1, C2), lambda n: (0, 0)),
            pl.BlockSpec((1, C2), lambda n: (0, 0)),
            pl.BlockSpec((9 * C2, C3), lambda n: (0, 0)),
            pl.BlockSpec((1, C3), lambda n: (0, 0)),
            pl.BlockSpec((C3, hidden), lambda n: (0, 0)),
            pl.BlockSpec((1, hidden), lambda n: (0, 0)),
            pl.BlockSpec((hidden, num_classes), lambda n: (0, 0)),
            pl.BlockSpec((1, num_classes), lambda n: (0, 0)),
        ],
        out_specs=pl.BlockSpec((1, 1, num_classes), lambda n: (n, 0, 0)),
        scratch_shapes=[
            pltpu.VMEM((H1 + 2, W1 + 2, C0), jnp.float32),   # padded stage-1 input
            pltpu.VMEM((H2 + 2, W2 + 2, C1), jnp.float32),   # padded stage-2 input
            pltpu.VMEM((H3 + 2, W3 + 2, C2), jnp.float32),   # padded stage-3 input
            pltpu.VMEM((H1 * W1, 9 * C0), jnp.float32),      # stage-1 patch matrix
            pltpu.VMEM((H2 * W2, 9 * C1), jnp.float32),      # stage-2 patch matrix
            pltpu.VMEM((H3 * W3, 9 * C2), jnp.float32),      # stage-3 patch matrix
            pltpu.VMEM((H1 * W1, C1), jnp.float32),          # stage-1 pre-pool act
            pltpu.VMEM((H2 * W2, C2), jnp.float32),          # stage-2 pre-pool act
        ],
        compiler_params=pltpu.CompilerParams(dimension_semantics=("parallel",)),
        cost_estimate=pl.CostEstimate(flops=flops, transcendentals=0,
                                      bytes_accessed=bytes_accessed),
    )(x, p["w1"], p["b1"].reshape(1, C1), p["w2"], p["b2"].reshape(1, C2),
      p["w3"], p["b3"].reshape(1, C3), p["fc1_w"], p["fc1_b"].reshape(1, hidden),
      p["fc2_w"], p["fc2_b"].reshape(1, num_classes))
    return out.reshape(N, num_classes)


# ----------------------------------------------------------------------------
# Parameter setup (BN folded into conv weights) and pure-JAX reference
# ----------------------------------------------------------------------------

def init_params(key, num_classes=10):
    ks = jax.random.split(key, 4)

    def conv_bn(k, cin, cout, eps=1e-5):
        k1, k2, k3, k4, k5, k6 = jax.random.split(k, 6)
        w = 0.1 * jax.random.normal(k1, (3, 3, cin, cout), jnp.float32)
        cb = 0.05 * jax.random.normal(k2, (cout,), jnp.float32)
        gamma = 1.0 + 0.1 * jax.random.normal(k3, (cout,), jnp.float32)
        beta = 0.1 * jax.random.normal(k4, (cout,), jnp.float32)
        mean = 0.1 * jax.random.normal(k5, (cout,), jnp.float32)
        var = 0.5 + jnp.abs(jax.random.normal(k6, (cout,), jnp.float32))
        s = gamma / jnp.sqrt(var + eps)
        # (3,3,cin,cout) -> (9*cin, cout): row index = (dy*3+dx)*cin + c,
        # matching the in-kernel patch column order.
        w_folded = (w * s[None, None, None, :]).reshape(9 * cin, cout).astype(jnp.bfloat16)
        bias = (cb - mean) * s + beta                         # f32
        return w_folded, bias

    p = {}
    for i, (cin, cout) in enumerate([(C0, C1), (C1, C2), (C2, C3)], start=1):
        p[f"w{i}"], p[f"b{i}"] = conv_bn(ks[i - 1], cin, cout)

    k1, k2, k3, k4 = jax.random.split(ks[3], 4)
    p["fc1_w"] = 0.1 * jax.random.normal(k1, (C3, 64), jnp.float32)
    p["fc1_b"] = 0.05 * jax.random.normal(k2, (64,), jnp.float32)
    p["fc2_w"] = 0.1 * jax.random.normal(k3, (64, num_classes), jnp.float32)
    p["fc2_b"] = 0.05 * jax.random.normal(k4, (num_classes,), jnp.float32)
    return p


def reference_forward(x_nchw, p):
    """Pure-JAX (lax.conv / reduce_window) reference with the same bf16 casts."""
    x = jnp.transpose(x_nchw, (0, 2, 3, 1)).astype(jnp.float32)
    dn = ("NHWC", "HWIO", "NHWC")

    def conv(xin, w_flat, b, cin, cout):
        w = w_flat.reshape(3, 3, cin, cout)
        y = jax.lax.conv_general_dilated(
            xin.astype(jnp.bfloat16), w, (1, 1), ((1, 1), (1, 1)),
            dimension_numbers=dn, preferred_element_type=jnp.float32)
        return jnp.maximum(y + b, 0.0)

    def pool(z):
        return jax.lax.reduce_window(z, -jnp.inf, jax.lax.max,
                                     (1, 2, 2, 1), (1, 2, 2, 1), "VALID")

    y = pool(conv(x, p["w1"], p["b1"], C0, C1))
    y = pool(conv(y, p["w2"], p["b2"], C1, C2))
    y = conv(y, p["w3"], p["b3"], C2, C3)
    feat = jnp.mean(y, axis=(1, 2))
    h = jnp.maximum(feat @ p["fc1_w"] + p["fc1_b"], 0.0)
    return h @ p["fc2_w"] + p["fc2_b"]


if __name__ == "__main__":
    key = jax.random.PRNGKey(0)
    kx, kp = jax.random.split(key)
    x = jax.random.normal(kx, (2, 3, 16, 16), jnp.float32)    # NCHW like PyTorch
    params = init_params(kp, num_classes=10)

    fwd = jax.jit(test_cnn_forward)
    logits = fwd(x, params)
    jax.block_until_ready(logits)
    assert logits.shape == (2, 10) and logits.dtype == jnp.float32
    assert bool(jnp.all(jnp.isfinite(logits)))

    ref = reference_forward(x, params)
    assert bool(jnp.allclose(logits, ref, rtol=2e-2, atol=2e-2)), (logits, ref)
    print("KERNEL_OK")
</pallas_src>

<mosaic_0001>
module attributes {stable_mosaic.version = 11 : i64} {
  func.func @kernel(%arg0: i32, %arg1: memref<1x16x16x3xf32, #tpu.memory_space<vmem>>, %arg2: memref<27x32xbf16, #tpu.memory_space<vmem>>, %arg3: memref<1x32xf32, #tpu.memory_space<vmem>>, %arg4: memref<288x64xbf16, #tpu.memory_space<vmem>>, %arg5: memref<1x64xf32, #tpu.memory_space<vmem>>, %arg6: memref<576x128xbf16, #tpu.memory_space<vmem>>, %arg7: memref<1x128xf32, #tpu.memory_space<vmem>>, %arg8: memref<128x64xf32, #tpu.memory_space<vmem>>, %arg9: memref<1x64xf32, #tpu.memory_space<vmem>>, %arg10: memref<64x10xf32, #tpu.memory_space<vmem>>, %arg11: memref<1x10xf32, #tpu.memory_space<vmem>>, %arg12: memref<1x1x10xf32, #tpu.memory_space<vmem>>, %arg13: memref<18x18x3xf32, #tpu.memory_space<vmem>>, %arg14: memref<10x10x32xf32, #tpu.memory_space<vmem>>, %arg15: memref<6x6x64xf32, #tpu.memory_space<vmem>>, %arg16: memref<256x27xf32, #tpu.memory_space<vmem>>, %arg17: memref<64x288xf32, #tpu.memory_space<vmem>>, %arg18: memref<16x576xf32, #tpu.memory_space<vmem>>, %arg19: memref<256x32xf32, #tpu.memory_space<vmem>>, %arg20: memref<64x64xf32, #tpu.memory_space<vmem>>) attributes {dimension_semantics = [#tpu.dimension_semantics<parallel>], iteration_bounds = array<i64: 2>, scalar_prefetch = 0 : i64, scratch_operands = 8 : i64, tpu.core_type = #tpu.core_type<tc>, window_params = [{transform_indices = @transform_0, window_bounds = array<i64: 1, 16, 16, 3>}, {pipeline_mode = #tpu.pipeline_mode<synchronous>, transform_indices = @transform_1, window_bounds = array<i64: 27, 32>}, {pipeline_mode = #tpu.pipeline_mode<synchronous>, transform_indices = @transform_2, window_bounds = array<i64: 1, 32>}, {pipeline_mode = #tpu.pipeline_mode<synchronous>, transform_indices = @transform_3, window_bounds = array<i64: 288, 64>}, {pipeline_mode = #tpu.pipeline_mode<synchronous>, transform_indices = @transform_4, window_bounds = array<i64: 1, 64>}, {pipeline_mode = #tpu.pipeline_mode<synchronous>, transform_indices = @transform_5, window_bounds = array<i64: 576, 128>}, {pipeline_mode = #tpu.pipeline_mode<synchronous>, transform_indices = @transform_6, window_bounds = array<i64: 1, 128>}, {pipeline_mode = #tpu.pipeline_mode<synchronous>, transform_indices = @transform_7, window_bounds = array<i64: 128, 64>}, {pipeline_mode = #tpu.pipeline_mode<synchronous>, transform_indices = @transform_8, window_bounds = array<i64: 1, 64>}, {pipeline_mode = #tpu.pipeline_mode<synchronous>, transform_indices = @transform_9, window_bounds = array<i64: 64, 10>}, {pipeline_mode = #tpu.pipeline_mode<synchronous>, transform_indices = @transform_10, window_bounds = array<i64: 1, 10>}, {transform_indices = @transform_11, window_bounds = array<i64: 1, 1, 10>}]} {
    %cst = arith.constant 0.000000e+00 : f32
    %0 = vector.broadcast %cst : f32 to vector<18x18x3xf32>
    %c0 = arith.constant 0 : index
    %c0_0 = arith.constant 0 : index
    %c0_1 = arith.constant 0 : index
    %1 = vector.load %arg13[%c0, %c0_0, %c0_1] : memref<18x18x3xf32, #tpu.memory_space<vmem>>, vector<18x18x3xf32>
    tpu.vector_store %arg13[%c0, %c0_0, %c0_1], %0 {strides = array<i32>} : memref<18x18x3xf32, #tpu.memory_space<vmem>>, vector<18x18x3xf32>,
    %c0_2 = arith.constant 0 : index
    %c0_3 = arith.constant 0 : index
    %c0_4 = arith.constant 0 : index
    %c0_5 = arith.constant 0 : index
    %2 = vector.load %arg1[%c0_2, %c0_3, %c0_4, %c0_5] : memref<1x16x16x3xf32, #tpu.memory_space<vmem>>, vector<1x16x16x3xf32>
    %3 = vector.shape_cast %2 : vector<1x16x16x3xf32> to vector<16x16x3xf32>
    %c1 = arith.constant 1 : index
    %c1_6 = arith.constant 1 : index
    %c0_7 = arith.constant 0 : index
    %4 = vector.load %arg13[%c1, %c1_6, %c0_7] : memref<18x18x3xf32, #tpu.memory_space<vmem>>, vector<16x16x3xf32>
    tpu.vector_store %arg13[%c1, %c1_6, %c0_7], %3 {strides = array<i32>} : memref<18x18x3xf32, #tpu.memory_space<vmem>>, vector<16x16x3xf32>,
    %c0_8 = arith.constant 0 : index
    %c0_9 = arith.constant 0 : index
    %c0_10 = arith.constant 0 : index
    %5 = vector.load %arg13[%c0_8, %c0_9, %c0_10] : memref<18x18x3xf32, #tpu.memory_space<vmem>>, vector<18x18x3xf32>
    %6 = vector.extract_strided_slice %5 {offsets = [0, 0, 0], sizes = [16, 16, 3], strides = [1, 1, 1]} : vector<18x18x3xf32> to vector<16x16x3xf32>
    %7 = vector.shape_cast %6 : vector<16x16x3xf32> to vector<256x3xf32>
    %c0_11 = arith.constant 0 : index
    %c0_12 = arith.constant 0 : index
    %8 = vector.load %arg16[%c0_11, %c0_12] : memref<256x27xf32, #tpu.memory_space<vmem>>, vector<256x3xf32>
    tpu.vector_store %arg16[%c0_11, %c0_12], %7 {strides = array<i32>} : memref<256x27xf32, #tpu.memory_space<vmem>>, vector<256x3xf32>,
    %9 = vector.extract_strided_slice %5 {offsets = [0, 1, 0], sizes = [16, 16, 3], strides = [1, 1, 1]} : vector<18x18x3xf32> to vector<16x16x3xf32>
    %10 = vector.shape_cast %9 : vector<16x16x3xf32> to vector<256x3xf32>
    %c0_13 = arith.constant 0 : index
    %c3 = arith.constant 3 : index
    %11 = vector.load %arg16[%c0_13, %c3] : memref<256x27xf32, #tpu.memory_space<vmem>>, vector<256x3xf32>
    tpu.vector_store %arg16[%c0_13, %c3], %10 {strides = array<i32>} : memref<256x27xf32, #tpu.memory_space<vmem>>, vector<256x3xf32>,
    %12 = vector.extract_strided_slice %5 {offsets = [0, 2, 0], sizes = [16, 16, 3], strides = [1, 1, 1]} : vector<18x18x3xf32> to vector<16x16x3xf32>
    %13 = vector.shape_cast %12 : vector<16x16x3xf32> to vector<256x3xf32>
    %c0_14 = arith.constant 0 : index
    %c6 = arith.constant 6 : index
    %14 = vector.load %arg16[%c0_14, %c6] : memref<256x27xf32, #tpu.memory_space<vmem>>, vector<256x3xf32>
    tpu.vector_store %arg16[%c0_14, %c6], %13 {strides = array<i32>} : memref<256x27xf32, #tpu.memory_space<vmem>>, vector<256x3xf32>,
    %15 = vector.extract_strided_slice %5 {offsets = [1, 0, 0], sizes = [16, 16, 3], strides = [1, 1, 1]} : vector<18x18x3xf32> to vector<16x16x3xf32>
    %16 = vector.shape_cast %15 : vector<16x16x3xf32> to vector<256x3xf32>
    %c0_15 = arith.constant 0 : index
    %c9 = arith.constant 9 : index
    %17 = vector.load %arg16[%c0_15, %c9] : memref<256x27xf32, #tpu.memory_space<vmem>>, vector<256x3xf32>
    tpu.vector_store %arg16[%c0_15, %c9], %16 {strides = array<i32>} : memref<256x27xf32, #tpu.memory_space<vmem>>, vector<256x3xf32>,
    %18 = vector.extract_strided_slice %5 {offsets = [1, 1, 0], sizes = [16, 16, 3], strides = [1, 1, 1]} : vector<18x18x3xf32> to vector<16x16x3xf32>
    %19 = vector.shape_cast %18 : vector<16x16x3xf32> to vector<256x3xf32>
    %c0_16 = arith.constant 0 : index
    %c12 = arith.constant 12 : index
    %20 = vector.load %arg16[%c0_16, %c12] : memref<256x27xf32, #tpu.memory_space<vmem>>, vector<256x3xf32>
    tpu.vector_store %arg16[%c0_16, %c12], %19 {strides = array<i32>} : memref<256x27xf32, #tpu.memory_space<vmem>>, vector<256x3xf32>,
    %21 = vector.extract_strided_slice %5 {offsets = [1, 2, 0], sizes = [16, 16, 3], strides = [1, 1, 1]} : vector<18x18x3xf32> to vector<16x16x3xf32>
    %22 = vector.shape_cast %21 : vector<16x16x3xf32> to vector<256x3xf32>
    %c0_17 = arith.constant 0 : index
    %c15 = arith.constant 15 : index
    %23 = vector.load %arg16[%c0_17, %c15] : memref<256x27xf32, #tpu.memory_space<vmem>>, vector<256x3xf32>
    tpu.vector_store %arg16[%c0_17, %c15], %22 {strides = array<i32>} : memref<256x27xf32, #tpu.memory_space<vmem>>, vector<256x3xf32>,
    %24 = vector.extract_strided_slice %5 {offsets = [2, 0, 0], sizes = [16, 16, 3], strides = [1, 1, 1]} : vector<18x18x3xf32> to vector<16x16x3xf32>
    %25 = vector.shape_cast %24 : vector<16x16x3xf32> to vector<256x3xf32>
    %c0_18 = arith.constant 0 : index
    %c18 = arith.constant 18 : index
    %26 = vector.load %arg16[%c0_18, %c18] : memref<256x27xf32, #tpu.memory_space<vmem>>, vector<256x3xf32>
    tpu.vector_store %arg16[%c0_18, %c18], %25 {strides = array<i32>} : memref<256x27xf32, #tpu.memory_space<vmem>>, vector<256x3xf32>,
    %27 = vector.extract_strided_slice %5 {offsets = [2, 1, 0], sizes = [16, 16, 3], strides = [1, 1, 1]} : vector<18x18x3xf32> to vector<16x16x3xf32>
    %28 = vector.shape_cast %27 : vector<16x16x3xf32> to vector<256x3xf32>
    %c0_19 = arith.constant 0 : index
    %c21 = arith.constant 21 : index
    %29 = vector.load %arg16[%c0_19, %c21] : memref<256x27xf32, #tpu.memory_space<vmem>>, vector<256x3xf32>
    tpu.vector_store %arg16[%c0_19, %c21], %28 {strides = array<i32>} : memref<256x27xf32, #tpu.memory_space<vmem>>, vector<256x3xf32>,
    %30 = vector.extract_strided_slice %5 {offsets = [2, 2, 0], sizes = [16, 16, 3], strides = [1, 1, 1]} : vector<18x18x3xf32> to vector<16x16x3xf32>
    %31 = vector.shape_cast %30 : vector<16x16x3xf32> to vector<256x3xf32>
    %c0_20 = arith.constant 0 : index
    %c24 = arith.constant 24 : index
    %32 = vector.load %arg16[%c0_20, %c24] : memref<256x27xf32, #tpu.memory_space<vmem>>, vector<256x3xf32>
    tpu.vector_store %arg16[%c0_20, %c24], %31 {strides = array<i32>} : memref<256x27xf32, #tpu.memory_space<vmem>>, vector<256x3xf32>,
    %c0_21 = arith.constant 0 : index
    %c0_22 = arith.constant 0 : index
    %33 = vector.load %arg16[%c0_21, %c0_22] : memref<256x27xf32, #tpu.memory_space<vmem>>, vector<256x27xf32>
    %34 = arith.truncf %33 : vector<256x27xf32> to vector<256x27xbf16>
    %c0_23 = arith.constant 0 : index
    %c0_24 = arith.constant 0 : index
    %35 = vector.load %arg2[%c0_23, %c0_24] : memref<27x32xbf16, #tpu.memory_space<vmem>>, vector<27x32xbf16>
    %cst_25 = arith.constant dense<0.000000e+00> : vector<256x32xf32>
    %36 = tpu.matmul %34, %35, %cst_25 {dimension_numbers = #tpu.dot_dimension_numbers<[1], [0], [0], [1], [0, 0, 1, 1], [], []>} : vector<256x27xbf16>, vector<27x32xbf16>, vector<256x32xf32> -> vector<256x32xf32>
    %c0_26 = arith.constant 0 : index
    %c0_27 = arith.constant 0 : index
    %37 = vector.load %arg3[%c0_26, %c0_27] : memref<1x32xf32, #tpu.memory_space<vmem>>, vector<1x32xf32>
    %38 = vector.broadcast %37 : vector<1x32xf32> to vector<256x32xf32>
    %39 = arith.addf %36, %38 : vector<256x32xf32>
    %cst_28 = arith.constant 0.000000e+00 : f32
    %40 = vector.broadcast %cst_28 : f32 to vector<256x32xf32>
    %41 = arith.maximumf %39, %40 : vector<256x32xf32>
    %c0_29 = arith.constant 0 : index
    %c0_30 = arith.constant 0 : index
    %42 = vector.load %arg19[%c0_29, %c0_30] : memref<256x32xf32, #tpu.memory_space<vmem>>, vector<256x32xf32>
    tpu.vector_store %arg19[%c0_29, %c0_30], %41 {strides = array<i32>} : memref<256x32xf32, #tpu.memory_space<vmem>>, vector<256x32xf32>,
    %c0_31 = arith.constant 0 : index
    %c0_32 = arith.constant 0 : index
    %43 = tpu.strided_load %arg19[%c0_31, %c0_32] {strides = array<i32: 2, 1>} : memref<256x32xf32, #tpu.memory_space<vmem>>, vector<128x32xf32>
    %c1_33 = arith.constant 1 : index
    %c0_34 = arith.constant 0 : index
    %44 = tpu.strided_load %arg19[%c1_33, %c0_34] {strides = array<i32: 2, 1>} : memref<256x32xf32, #tpu.memory_space<vmem>>, vector<128x32xf32>
    %45 = arith.maximumf %43, %44 : vector<128x32xf32>
    %46 = vector.shape_cast %45 : vector<128x32xf32> to vector<8x16x32xf32>
    %47 = vector.extract_strided_slice %46 {offsets = [0, 0, 0], sizes = [8, 8, 32], strides = [1, 1, 1]} : vector<8x16x32xf32> to vector<8x8x32xf32>
    %48 = vector.extract_strided_slice %46 {offsets = [0, 8, 0], sizes = [8, 8, 32], strides = [1, 1, 1]} : vector<8x16x32xf32> to vector<8x8x32xf32>
    %49 = arith.maximumf %47, %48 : vector<8x8x32xf32>
    %cst_35 = arith.constant 0.000000e+00 : f32
    %50 = vector.broadcast %cst_35 : f32 to vector<10x10x32xf32>
    %c0_36 = arith.constant 0 : index
    %c0_37 = arith.constant 0 : index
    %c0_38 = arith.constant 0 : index
    %51 = vector.load %arg14[%c0_36, %c0_37, %c0_38] : memref<10x10x32xf32, #tpu.memory_space<vmem>>, vector<10x10x32xf32>
    tpu.vector_store %arg14[%c0_36, %c0_37, %c0_38], %50 {strides = array<i32>} : memref<10x10x32xf32, #tpu.memory_space<vmem>>, vector<10x10x32xf32>,
    %c1_39 = arith.constant 1 : index
    %c1_40 = arith.constant 1 : index
    %c0_41 = arith.constant 0 : index
    %52 = vector.load %arg14[%c1_39, %c1_40, %c0_41] : memref<10x10x32xf32, #tpu.memory_space<vmem>>, vector<8x8x32xf32>
    tpu.vector_store %arg14[%c1_39, %c1_40, %c0_41], %49 {strides = array<i32>} : memref<10x10x32xf32, #tpu.memory_space<vmem>>, vector<8x8x32xf32>,
    %c0_42 = arith.constant 0 : index
    %c0_43 = arith.constant 0 : index
    %c0_44 = arith.constant 0 : index
    %53 = vector.load %arg14[%c0_42, %c0_43, %c0_44] : memref<10x10x32xf32, #tpu.memory_space<vmem>>, vector<10x10x32xf32>
    %54 = vector.extract_strided_slice %53 {offsets = [0, 0, 0], sizes = [8, 8, 32], strides = [1, 1, 1]} : vector<10x10x32xf32> to vector<8x8x32xf32>
    %55 = vector.shape_cast %54 : vector<8x8x32xf32> to vector<64x32xf32>
    %c0_45 = arith.constant 0 : index
    %c0_46 = arith.constant 0 : index
    %56 = vector.load %arg17[%c0_45, %c0_46] : memref<64x288xf32, #tpu.memory_space<vmem>>, vector<64x32xf32>
    tpu.vector_store %arg17[%c0_45, %c0_46], %55 {strides = array<i32>} : memref<64x288xf32, #tpu.memory_space<vmem>>, vector<64x32xf32>,
    %57 = vector.extract_strided_slice %53 {offsets = [0, 1, 0], sizes = [8, 8, 32], strides = [1, 1, 1]} : vector<10x10x32xf32> to vector<8x8x32xf32>
    %58 = vector.shape_cast %57 : vector<8x8x32xf32> to vector<64x32xf32>
    %c0_47 = arith.constant 0 : index
    %c32 = arith.constant 32 : index
    %59 = vector.load %arg17[%c0_47, %c32] : memref<64x288xf32, #tpu.memory_space<vmem>>, vector<64x32xf32>
    tpu.vector_store %arg17[%c0_47, %c32], %58 {strides = array<i32>} : memref<64x288xf32, #tpu.memory_space<vmem>>, vector<64x32xf32>,
    %60 = vector.extract_strided_slice %53 {offsets = [0, 2, 0], sizes = [8, 8, 32], strides = [1, 1, 1]} : vector<10x10x32xf32> to vector<8x8x32xf32>
    %61 = vector.shape_cast %60 : vector<8x8x32xf32> to vector<64x32xf32>
    %c0_48 = arith.constant 0 : index
    %c64 = arith.constant 64 : index
    %62 = vector.load %arg17[%c0_48, %c64] : memref<64x288xf32, #tpu.memory_space<vmem>>, vector<64x32xf32>
    tpu.vector_store %arg17[%c0_48, %c64], %61 {strides = array<i32>} : memref<64x288xf32, #tpu.memory_space<vmem>>, vector<64x32xf32>,
    %63 = vector.extract_strided_slice %53 {offsets = [1, 0, 0], sizes = [8, 8, 32], strides = [1, 1, 1]} : vector<10x10x32xf32> to vector<8x8x32xf32>
    %64 = vector.shape_cast %63 : vector<8x8x32xf32> to vector<64x32xf32>
    %c0_49 = arith.constant 0 : index
    %c96 = arith.constant 96 : index
    %65 = vector.load %arg17[%c0_49, %c96] : memref<64x288xf32, #tpu.memory_space<vmem>>, vector<64x32xf32>
    tpu.vector_store %arg17[%c0_49, %c96], %64 {strides = array<i32>} : memref<64x288xf32, #tpu.memory_space<vmem>>, vector<64x32xf32>,
    %66 = vector.extract_strided_slice %53 {offsets = [1, 1, 0], sizes = [8, 8, 32], strides = [1, 1, 1]} : vector<10x10x32xf32> to vector<8x8x32xf32>
    %67 = vector.shape_cast %66 : vector<8x8x32xf32> to vector<64x32xf32>
    %c0_50 = arith.constant 0 : index
    %c128 = arith.constant 128 : index
    %68 = vector.load %arg17[%c0_50, %c128] : memref<64x288xf32, #tpu.memory_space<vmem>>, vector<64x32xf32>
    tpu.vector_store %arg17[%c0_50, %c128], %67 {strides = array<i32>} : memref<64x288xf32, #tpu.memory_space<vmem>>, vector<64x32xf32>,
    %69 = vector.extract_strided_slice %53 {offsets = [1, 2, 0], sizes = [8, 8, 32], strides = [1, 1, 1]} : vector<10x10x32xf32> to vector<8x8x32xf32>
    %70 = vector.shape_cast %69 : vector<8x8x32xf32> to vector<64x32xf32>
    %c0_51 = arith.constant 0 : index
    %c160 = arith.constant 160 : index
    %71 = vector.load %arg17[%c0_51, %c160] : memref<64x288xf32, #tpu.memory_space<vmem>>, vector<64x32xf32>
    tpu.vector_store %arg17[%c0_51, %c160], %70 {strides = array<i32>} : memref<64x288xf32, #tpu.memory_space<vmem>>, vector<64x32xf32>,
    %72 = vector.extract_strided_slice %53 {offsets = [2, 0, 0], sizes = [8, 8, 32], strides = [1, 1, 1]} : vector<10x10x32xf32> to vector<8x8x32xf32>
    %73 = vector.shape_cast %72 : vector<8x8x32xf32> to vector<64x32xf32>
    %c0_52 = arith.constant 0 : index
    %c192 = arith.constant 192 : index
    %74 = vector.load %arg17[%c0_52, %c192] : memref<64x288xf32, #tpu.memory_space<vmem>>, vector<64x32xf32>
    tpu.vector_store %arg17[%c0_52, %c192], %73 {strides = array<i32>} : memref<64x288xf32, #tpu.memory_space<vmem>>, vector<64x32xf32>,
    %75 = vector.extract_strided_slice %53 {offsets = [2, 1, 0], sizes = [8, 8, 32], strides = [1, 1, 1]} : vector<10x10x32xf32> to vector<8x8x32xf32>
    %76 = vector.shape_cast %75 : vector<8x8x32xf32> to vector<64x32xf32>
    %c0_53 = arith.constant 0 : index
    %c224 = arith.constant 224 : index
    %77 = vector.load %arg17[%c0_53, %c224] : memref<64x288xf32, #tpu.memory_space<vmem>>, vector<64x32xf32>
    tpu.vector_store %arg17[%c0_53, %c224], %76 {strides = array<i32>} : memref<64x288xf32, #tpu.memory_space<vmem>>, vector<64x32xf32>,
    %78 = vector.extract_strided_slice %53 {offsets = [2, 2, 0], sizes = [8, 8, 32], strides = [1, 1, 1]} : vector<10x10x32xf32> to vector<8x8x32xf32>
    %79 = vector.shape_cast %78 : vector<8x8x32xf32> to vector<64x32xf32>
    %c0_54 = arith.constant 0 : index
    %c256 = arith.constant 256 : index
    %80 = vector.load %arg17[%c0_54, %c256] : memref<64x288xf32, #tpu.memory_space<vmem>>, vector<64x32xf32>
    tpu.vector_store %arg17[%c0_54, %c256], %79 {strides = array<i32>} : memref<64x288xf32, #tpu.memory_space<vmem>>, vector<64x32xf32>,
    %c0_55 = arith.constant 0 : index
    %c0_56 = arith.constant 0 : index
    %81 = vector.load %arg17[%c0_55, %c0_56] : memref<64x288xf32, #tpu.memory_space<vmem>>, vector<64x288xf32>
    %82 = arith.truncf %81 : vector<64x288xf32> to vector<64x288xbf16>
    %c0_57 = arith.constant 0 : index
    %c0_58 = arith.constant 0 : index
    %83 = vector.load %arg4[%c0_57, %c0_58] : memref<288x64xbf16, #tpu.memory_space<vmem>>, vector<288x64xbf16>
    %cst_59 = arith.constant dense<0.000000e+00> : vector<64x64xf32>
    %84 = tpu.matmul %82, %83, %cst_59 {dimension_numbers = #tpu.dot_dimension_numbers<[1], [0], [0], [1], [0, 0, 1, 1], [], []>} : vector<64x288xbf16>, vector<288x64xbf16>, vector<64x64xf32> -> vector<64x64xf32>
    %c0_60 = arith.constant 0 : index
    %c0_61 = arith.constant 0 : index
    %85 = vector.load %arg5[%c0_60, %c0_61] : memref<1x64xf32, #tpu.memory_space<vmem>>, vector<1x64xf32>
    %86 = vector.broadcast %85 : vector<1x64xf32> to vector<64x64xf32>
    %87 = arith.addf %84, %86 : vector<64x64xf32>
    %cst_62 = arith.constant 0.000000e+00 : f32
    %88 = vector.broadcast %cst_62 : f32 to vector<64x64xf32>
    %89 = arith.maximumf %87, %88 : vector<64x64xf32>
    %c0_63 = arith.constant 0 : index
    %c0_64 = arith.constant 0 : index
    %90 = vector.load %arg20[%c0_63, %c0_64] : memref<64x64xf32, #tpu.memory_space<vmem>>, vector<64x64xf32>
    tpu.vector_store %arg20[%c0_63, %c0_64], %89 {strides = array<i32>} : memref<64x64xf32, #tpu.memory_space<vmem>>, vector<64x64xf32>,
    %c0_65 = arith.constant 0 : index
    %c0_66 = arith.constant 0 : index
    %91 = tpu.strided_load %arg20[%c0_65, %c0_66] {strides = array<i32: 2, 1>} : memref<64x64xf32, #tpu.memory_space<vmem>>, vector<32x64xf32>
    %c1_67 = arith.constant 1 : index
    %c0_68 = arith.constant 0 : index
    %92 = tpu.strided_load %arg20[%c1_67, %c0_68] {strides = array<i32: 2, 1>} : memref<64x64xf32, #tpu.memory_space<vmem>>, vector<32x64xf32>
    %93 = arith.maximumf %91, %92 : vector<32x64xf32>
    %94 = vector.shape_cast %93 : vector<32x64xf32> to vector<4x8x64xf32>
    %95 = vector.extract_strided_slice %94 {offsets = [0, 0, 0], sizes = [4, 4, 64], strides = [1, 1, 1]} : vector<4x8x64xf32> to vector<4x4x64xf32>
    %96 = vector.extract_strided_slice %94 {offsets = [0, 4, 0], sizes = [4, 4, 64], strides = [1, 1, 1]} : vector<4x8x64xf32> to vector<4x4x64xf32>
    %97 = arith.maximumf %95, %96 : vector<4x4x64xf32>
    %cst_69 = arith.constant 0.000000e+00 : f32
    %98 = vector.broadcast %cst_69 : f32 to vector<6x6x64xf32>
    %c0_70 = arith.constant 0 : index
    %c0_71 = arith.constant 0 : index
    %c0_72 = arith.constant 0 : index
    %99 = vector.load %arg15[%c0_70, %c0_71, %c0_72] : memref<6x6x64xf32, #tpu.memory_space<vmem>>, vector<6x6x64xf32>
    tpu.vector_store %arg15[%c0_70, %c0_71, %c0_72], %98 {strides = array<i32>} : memref<6x6x64xf32, #tpu.memory_space<vmem>>, vector<6x6x64xf32>,
    %c1_73 = arith.constant 1 : index
    %c1_74 = arith.constant 1 : index
    %c0_75 = arith.constant 0 : index
    %100 = vector.load %arg15[%c1_73, %c1_74, %c0_75] : memref<6x6x64xf32, #tpu.memory_space<vmem>>, vector<4x4x64xf32>
    tpu.vector_store %arg15[%c1_73, %c1_74, %c0_75], %97 {strides = array<i32>} : memref<6x6x64xf32, #tpu.memory_space<vmem>>, vector<4x4x64xf32>,
    %c0_76 = arith.constant 0 : index
    %c0_77 = arith.constant 0 : index
    %c0_78 = arith.constant 0 : index
    %101 = vector.load %arg15[%c0_76, %c0_77, %c0_78] : memref<6x6x64xf32, #tpu.memory_space<vmem>>, vector<6x6x64xf32>
    %102 = vector.extract_strided_slice %101 {offsets = [0, 0, 0], sizes = [4, 4, 64], strides = [1, 1, 1]} : vector<6x6x64xf32> to vector<4x4x64xf32>
    %103 = vector.shape_cast %102 : vector<4x4x64xf32> to vector<16x64xf32>
    %c0_79 = arith.constant 0 : index
    %c0_80 = arith.constant 0 : index
    %104 = vector.load %arg18[%c0_79, %c0_80] : memref<16x576xf32, #tpu.memory_space<vmem>>, vector<16x64xf32>
    tpu.vector_store %arg18[%c0_79, %c0_80], %103 {strides = array<i32>} : memref<16x576xf32, #tpu.memory_space<vmem>>, vector<16x64xf32>,
    %105 = vector.extract_strided_slice %101 {offsets = [0, 1, 0], sizes = [4, 4, 64], strides = [1, 1, 1]} : vector<6x6x64xf32> to vector<4x4x64xf32>
    %106 = vector.shape_cast %105 : vector<4x4x64xf32> to vector<16x64xf32>
    %c0_81 = arith.constant 0 : index
    %c64_82 = arith.constant 64 : index
    %107 = vector.load %arg18[%c0_81, %c64_82] : memref<16x576xf32, #tpu.memory_space<vmem>>, vector<16x64xf32>
    tpu.vector_store %arg18[%c0_81, %c64_82], %106 {strides = array<i32>} : memref<16x576xf32, #tpu.memory_space<vmem>>, vector<16x64xf32>,
    %108 = vector.extract_strided_slice %101 {offsets = [0, 2, 0], sizes = [4, 4, 64], strides = [1, 1, 1]} : vector<6x6x64xf32> to vector<4x4x64xf32>
    %109 = vector.shape_cast %108 : vector<4x4x64xf32> to vector<16x64xf32>
    %c0_83 = arith.constant 0 : index
    %c128_84 = arith.constant 128 : index
    %110 = vector.load %arg18[%c0_83, %c128_84] : memref<16x576xf32, #tpu.memory_space<vmem>>, vector<16x64xf32>
    tpu.vector_store %arg18[%c0_83, %c128_84], %109 {strides = array<i32>} : memref<16x576xf32, #tpu.memory_space<vmem>>, vector<16x64xf32>,
    %111 = vector.extract_strided_slice %101 {offsets = [1, 0, 0], sizes = [4, 4, 64], strides = [1, 1, 1]} : vector<6x6x64xf32> to vector<4x4x64xf32>
    %112 = vector.shape_cast %111 : vector<4x4x64xf32> to vector<16x64xf32>
    %c0_85 = arith.constant 0 : index
    %c192_86 = arith.constant 192 : index
    %113 = vector.load %arg18[%c0_85, %c192_86] : memref<16x576xf32, #tpu.memory_space<vmem>>, vector<16x64xf32>
    tpu.vector_store %arg18[%c0_85, %c192_86], %112 {strides = array<i32>} : memref<16x576xf32, #tpu.memory_space<vmem>>, vector<16x64xf32>,
    %114 = vector.extract_strided_slice %101 {offsets = [1, 1, 0], sizes = [4, 4, 64], strides = [1, 1, 1]} : vector<6x6x64xf32> to vector<4x4x64xf32>
    %115 = vector.shape_cast %114 : vector<4x4x64xf32> to vector<16x64xf32>
    %c0_87 = arith.constant 0 : index
    %c256_88 = arith.constant 256 : index
    %116 = vector.load %arg18[%c0_87, %c256_88] : memref<16x576xf32, #tpu.memory_space<vmem>>, vector<16x64xf32>
    tpu.vector_store %arg18[%c0_87, %c256_88], %115 {strides = array<i32>} : memref<16x576xf32, #tpu.memory_space<vmem>>, vector<16x64xf32>,
    %117 = vector.extract_strided_slice %101 {offsets = [1, 2, 0], sizes = [4, 4, 64], strides = [1, 1, 1]} : vector<6x6x64xf32> to vector<4x4x64xf32>
    %118 = vector.shape_cast %117 : vector<4x4x64xf32> to vector<16x64xf32>
    %c0_89 = arith.constant 0 : index
    %c320 = arith.constant 320 : index
    %119 = vector.load %arg18[%c0_89, %c320] : memref<16x576xf32, #tpu.memory_space<vmem>>, vector<16x64xf32>
    tpu.vector_store %arg18[%c0_89, %c320], %118 {strides = array<i32>} : memref<16x576xf32, #tpu.memory_space<vmem>>, vector<16x64xf32>,
    %120 = vector.extract_strided_slice %101 {offsets = [2, 0, 0], sizes = [4, 4, 64], strides = [1, 1, 1]} : vector<6x6x64xf32> to vector<4x4x64xf32>
    %121 = vector.shape_cast %120 : vector<4x4x64xf32> to vector<16x64xf32>
    %c0_90 = arith.constant 0 : index
    %c384 = arith.constant 384 : index
    %122 = vector.load %arg18[%c0_90, %c384] : memref<16x576xf32, #tpu.memory_space<vmem>>, vector<16x64xf32>
    tpu.vector_store %arg18[%c0_90, %c384], %121 {strides = array<i32>} : memref<16x576xf32, #tpu.memory_space<vmem>>, vector<16x64xf32>,
    %123 = vector.extract_strided_slice %101 {offsets = [2, 1, 0], sizes = [4, 4, 64], strides = [1, 1, 1]} : vector<6x6x64xf32> to vector<4x4x64xf32>
    %124 = vector.shape_cast %123 : vector<4x4x64xf32> to vector<16x64xf32>
    %c0_91 = arith.constant 0 : index
    %c448 = arith.constant 448 : index
    %125 = vector.load %arg18[%c0_91, %c448] : memref<16x576xf32, #tpu.memory_space<vmem>>, vector<16x64xf32>
    tpu.vector_store %arg18[%c0_91, %c448], %124 {strides = array<i32>} : memref<16x576xf32, #tpu.memory_space<vmem>>, vector<16x64xf32>,
    %126 = vector.extract_strided_slice %101 {offsets = [2, 2, 0], sizes = [4, 4, 64], strides = [1, 1, 1]} : vector<6x6x64xf32> to vector<4x4x64xf32>
    %127 = vector.shape_cast %126 : vector<4x4x64xf32> to vector<16x64xf32>
    %c0_92 = arith.constant 0 : index
    %c512 = arith.constant 512 : index
    %128 = vector.load %arg18[%c0_92, %c512] : memref<16x576xf32, #tpu.memory_space<vmem>>, vector<16x64xf32>
    tpu.vector_store %arg18[%c0_92, %c512], %127 {strides = array<i32>} : memref<16x576xf32, #tpu.memory_space<vmem>>, vector<16x64xf32>,
    %c0_93 = arith.constant 0 : index
    %c0_94 = arith.constant 0 : index
    %129 = vector.load %arg18[%c0_93, %c0_94] : memref<16x576xf32, #tpu.memory_space<vmem>>, vector<16x576xf32>
    %130 = arith.truncf %129 : vector<16x576xf32> to vector<16x576xbf16>
    %c0_95 = arith.constant 0 : index
    %c0_96 = arith.constant 0 : index
    %131 = vector.load %arg6[%c0_95, %c0_96] : memref<576x128xbf16, #tpu.memory_space<vmem>>, vector<576x128xbf16>
    %cst_97 = arith.constant dense<0.000000e+00> : vector<16x128xf32>
    %132 = tpu.matmul %130, %131, %cst_97 {dimension_numbers = #tpu.dot_dimension_numbers<[1], [0], [0], [1], [0, 0, 1, 1], [], []>} : vector<16x576xbf16>, vector<576x128xbf16>, vector<16x128xf32> -> vector<16x128xf32>
    %c0_98 = arith.constant 0 : index
    %c0_99 = arith.constant 0 : index
    %133 = vector.load %arg7[%c0_98, %c0_99] : memref<1x128xf32, #tpu.memory_space<vmem>>, vector<1x128xf32>
    %134 = vector.broadcast %133 : vector<1x128xf32> to vector<16x128xf32>
    %135 = arith.addf %132, %134 : vector<16x128xf32>
    %cst_100 = arith.constant 0.000000e+00 : f32
    %136 = vector.broadcast %cst_100 : f32 to vector<16x128xf32>
    %137 = arith.maximumf %135, %136 : vector<16x128xf32>
    %cst_101 = arith.constant dense<0.000000e+00> : vector<128xf32>
    %138 = vector.multi_reduction <add>, %137, %cst_101 [0] : vector<16x128xf32> to vector<128xf32>
    %139 = vector.shape_cast %138 : vector<128xf32> to vector<1x128xf32>
    %cst_102 = arith.constant 1.600000e+01 : f32
    %140 = vector.broadcast %cst_102 : f32 to vector<1x128xf32>
    %141 = arith.divf %139, %140 : vector<1x128xf32>
    %c0_103 = arith.constant 0 : index
    %c0_104 = arith.constant 0 : index
    %142 = vector.load %arg8[%c0_103, %c0_104] : memref<128x64xf32, #tpu.memory_space<vmem>>, vector<128x64xf32>
    %cst_105 = arith.constant dense<0.000000e+00> : vector<1x64xf32>
    %143 = tpu.matmul %141, %142, %cst_105 {dimension_numbers = #tpu.dot_dimension_numbers<[1], [0], [0], [1], [0, 0, 1, 1], [], []>} : vector<1x128xf32>, vector<128x64xf32>, vector<1x64xf32> -> vector<1x64xf32>
    %c0_106 = arith.constant 0 : index
    %c0_107 = arith.constant 0 : index
    %144 = vector.load %arg9[%c0_106, %c0_107] : memref<1x64xf32, #tpu.memory_space<vmem>>, vector<1x64xf32>
    %145 = arith.addf %143, %144 : vector<1x64xf32>
    %cst_108 = arith.constant 0.000000e+00 : f32
    %146 = vector.broadcast %cst_108 : f32 to vector<1x64xf32>
    %147 = arith.maximumf %145, %146 : vector<1x64xf32>
    %c0_109 = arith.constant 0 : index
    %c0_110 = arith.constant 0 : index
    %148 = vector.load %arg10[%c0_109, %c0_110] : memref<64x10xf32, #tpu.memory_space<vmem>>, vector<64x10xf32>
    %cst_111 = arith.constant dense<0.000000e+00> : vector<1x10xf32>
    %149 = tpu.matmul %147, %148, %cst_111 {dimension_numbers = #tpu.dot_dimension_numbers<[1], [0], [0], [1], [0, 0, 1, 1], [], []>} : vector<1x64xf32>, vector<64x10xf32>, vector<1x10xf32> -> vector<1x10xf32>
    %c0_112 = arith.constant 0 : index
    %c0_113 = arith.constant 0 : index
    %150 = vector.load %arg11[%c0_112, %c0_113] : memref<1x10xf32, #tpu.memory_space<vmem>>, vector<1x10xf32>
    %151 = arith.addf %149, %150 : vector<1x10xf32>
    %c0_114 = arith.constant 0 : index
    %c0_115 = arith.constant 0 : index
    %c0_116 = arith.constant 0 : index
    %152 = vector.load %arg12[%c0_114, %c0_115, %c0_116] : memref<1x1x10xf32, #tpu.memory_space<vmem>>, vector<1x1x10xf32>
    %153 = vector.shape_cast %152 : vector<1x1x10xf32> to vector<1x10xf32>
    %154 = vector.shape_cast %151 : vector<1x10xf32> to vector<1x1x10xf32>
    tpu.vector_store %arg12[%c0_114, %c0_115, %c0_116], %154 {strides = array<i32>} : memref<1x1x10xf32, #tpu.memory_space<vmem>>, vector<1x1x10xf32>,
    return
  }
  func.func @transform_0(%arg0: i32) -> (i32, i32, i32, i32) {
    %c0_i32 = arith.constant 0 : i32
    %c0_i32_0 = arith.constant 0 : i32
    %c0_i32_1 = arith.constant 0 : i32
    %c0_i32_2 = arith.constant 0 : i32
    return %arg0, %c0_i32, %c0_i32_0, %c0_i32_1 : i32, i32, i32, i32
  }
  func.func @transform_1(%arg0: i32) -> (i32, i32) {
    %c0_i32 = arith.constant 0 : i32
    %c0_i32_0 = arith.constant 0 : i32
    %c0_i32_1 = arith.constant 0 : i32
    return %c0_i32, %c0_i32_0 : i32, i32
  }
  func.func @transform_2(%arg0: i32) -> (i32, i32) {
    %c0_i32 = arith.constant 0 : i32
    %c0_i32_0 = arith.constant 0 : i32
    %c0_i32_1 = arith.constant 0 : i32
    return %c0_i32, %c0_i32_0 : i32, i32
  }
  func.func @transform_3(%arg0: i32) -> (i32, i32) {
    %c0_i32 = arith.constant 0 : i32
    %c0_i32_0 = arith.constant 0 : i32
    %c0_i32_1 = arith.constant 0 : i32
    return %c0_i32, %c0_i32_0 : i32, i32
  }
  func.func @transform_4(%arg0: i32) -> (i32, i32) {
    %c0_i32 = arith.constant 0 : i32
    %c0_i32_0 = arith.constant 0 : i32
    %c0_i32_1 = arith.constant 0 : i32
    return %c0_i32, %c0_i32_0 : i32, i32
  }
  func.func @transform_5(%arg0: i32) -> (i32, i32) {
    %c0_i32 = arith.constant 0 : i32
    %c0_i32_0 = arith.constant 0 : i32
    %c0_i32_1 = arith.constant 0 : i32
    return %c0_i32, %c0_i32_0 : i32, i32
  }
  func.func @transform_6(%arg0: i32) -> (i32, i32) {
    %c0_i32 = arith.constant 0 : i32
    %c0_i32_0 = arith.constant 0 : i32
    %c0_i32_1 = arith.constant 0 : i32
    return %c0_i32, %c0_i32_0 : i32, i32
  }
  func.func @transform_7(%arg0: i32) -> (i32, i32) {
    %c0_i32 = arith.constant 0 : i32
    %c0_i32_0 = arith.constant 0 : i32
    %c0_i32_1 = arith.constant 0 : i32
    return %c0_i32, %c0_i32_0 : i32, i32
  }
  func.func @transform_8(%arg0: i32) -> (i32, i32) {
    %c0_i32 = arith.constant 0 : i32
    %c0_i32_0 = arith.constant 0 : i32
    %c0_i32_1 = arith.constant 0 : i32
    return %c0_i32, %c0_i32_0 : i32, i32
  }
  func.func @transform_9(%arg0: i32) -> (i32, i32) {
    %c0_i32 = arith.constant 0 : i32
    %c0_i32_0 = arith.constant 0 : i32
    %c0_i32_1 = arith.constant 0 : i32
    return %c0_i32, %c0_i32_0 : i32, i32
  }
  func.func @transform_10(%arg0: i32) -> (i32, i32) {
    %c0_i32 = arith.constant 0 : i32
    %c0_i32_0 = arith.constant 0 : i32
    %c0_i32_1 = arith.constant 0 : i32
    return %c0_i32, %c0_i32_0 : i32, i32
  }
  func.func @transform_11(%arg0: i32) -> (i32, i32, i32) {
    %c0_i32 = arith.constant 0 : i32
    %c0_i32_0 = arith.constant 0 : i32
    %c0_i32_1 = arith.constant 0 : i32
    return %arg0, %c0_i32, %c0_i32_0 : i32, i32, i32
  }
}

</mosaic_0001>

<llo_original>
// kernel: test_cnn_forward.1
$region0: #{test_cnn_forward.1}
  #allocation0 [shape = 'u32[]', space=smem, size = 0x4, offset = 0x4, fixed_abs, tag = 'smem constant byte address 0x4 - core index']
  #allocation1 [shape = 'u32[144,128]{1,0:T(1,128)}', space=vmem, size = 0x12000, scoped, tag = 'internal scratch']
  #allocation2 [shape = 'f32[18,18,3]{2,1,0:T(8,128)}', space=vmem, size = 0x36000, scoped, tag = 'scratch operand']
  #allocation3 [shape = 'f32[10,10,32]{2,1,0:T(8,128)}', space=vmem, size = 0x14000, scoped, tag = 'scratch operand']
  #allocation4 [shape = 'f32[6,6,64]{2,1,0:T(8,128)}', space=vmem, size = 0x6000, scoped, tag = 'scratch operand']
  #allocation5 [shape = 'f32[256,27]{1,0:T(8,128)}', space=vmem, size = 0x20000, scoped, tag = 'scratch operand']
  #allocation6 [shape = 'f32[64,288]{1,0:T(8,128)}', space=vmem, size = 0x18000, scoped, tag = 'scratch operand']
  #allocation7 [shape = 'f32[16,576]{1,0:T(8,128)}', space=vmem, size = 0xa000, scoped, tag = 'scratch operand']
  #allocation8 [shape = 'f32[256,32]{1,0:T(8,128)}', space=vmem, size = 0x20000, scoped, tag = 'scratch operand']
  #allocation9 [shape = 'f32[64,64]{1,0:T(8,128)}', space=vmem, size = 0x8000, scoped, tag = 'scratch operand']
  %s0 = inlined_call_operand.vmem [shape: f32[2,16,16,3], index: 0, kind: input, shape index: {}]
  %s1 = inlined_call_operand.vmem [shape: bf16[27,32], index: 1, kind: input, shape index: {}]
  %s2 = inlined_call_operand.vmem [shape: f32[1,32], index: 2, kind: input, shape index: {}]
  %s3 = inlined_call_operand.vmem [shape: bf16[288,64], index: 3, kind: input, shape index: {}]
  %s4 = inlined_call_operand.vmem [shape: f32[1,64], index: 4, kind: input, shape index: {}]
  %s5 = inlined_call_operand.vmem [shape: bf16[576,128], index: 5, kind: input, shape index: {}]
  %s6 = inlined_call_operand.vmem [shape: f32[1,128], index: 6, kind: input, shape index: {}]
  %s7 = inlined_call_operand.vmem [shape: f32[128,64], index: 7, kind: input, shape index: {}]
  %s8 = inlined_call_operand.vmem [shape: f32[1,64], index: 8, kind: input, shape index: {}]
  %s9 = inlined_call_operand.vmem [shape: f32[64,10], index: 9, kind: input, shape index: {}]
  %s10 = inlined_call_operand.vmem [shape: f32[1,10], index: 10, kind: input, shape index: {}]
  %s11 = inlined_call_operand.hbm [shape: f32[2,1,10], index: 11, kind: output, shape index: {}]
  %s12 = sld [smem:[#allocation0]]
  $region77: #{test_cnn_forward.1} parent=0
    _
  %s14 = ssub.s32 1, %s12
  %s15 = scalar_select 0, %s14, %s12
  $region1: #{test_cnn_forward.1} parent=0
    #allocation10 [shape = 'u8[1024]{0}', space=vmem, size = 0x400, scoped, tag = 'output window, operand 0']
    #allocation11 [shape = 's32[2]{0}', space=sflag, size = 0x8, scoped, tag = 'scoped memory for test_cnn_forward.1']
    %16 = vsyncpa [#allocation11], 0
    %s17 = scalar_lea.sflag [#allocation11], 1
    %18 = vsyncpa %s17, 0
    loop: start=0, step=1, limit=4
    $region2: #{test_cnn_forward.1} parent=1 // loop_pre_header
      _
    $region3: #{test_cnn_forward.1} parent=1 // loop_header
      %s20 = sphi 0, %s24
      %p21 = scmp.ge.s32.totalorder %s20, 4
      %s30 = sphi 0, %s32
      %s33 = sphi 0, %s30
      %s34 = sphi 0, %s33
      %s50 = sphi 0, %s34
      %s54 = sphi 0, %s54
      %s56 = sphi 0, %s54
      %s57 = sphi 0, %s56
      %s71 = sphi 0, %s57
      %s75 = sphi 0, %s75
      %s77 = sphi 0, %s75
      %s78 = sphi 0, %s77
      %s92 = sphi 0, %s78
      %s96 = sphi 0, %s96
      %s98 = sphi 0, %s96
      %s99 = sphi 0, %s98
      %s113 = sphi 0, %s99
      %s117 = sphi 0, %s117
      %s119 = sphi 0, %s117
      %s120 = sphi 0, %s119
      %s134 = sphi 0, %s120
      %s138 = sphi 0, %s138
      %s140 = sphi 0, %s138
      %s141 = sphi 0, %s140
      %s155 = sphi 0, %s141
      %s159 = sphi 0, %s159
      %s161 = sphi 0, %s159
      %s162 = sphi 0, %s161
      %s176 = sphi 0, %s162
      %s180 = sphi 0, %s180
      %s182 = sphi 0, %s180
      %s183 = sphi 0, %s182
      %s197 = sphi 0, %s183
      %s201 = sphi 0, %s201
      %s203 = sphi 0, %s201
      %s204 = sphi 0, %s203
      %s218 = sphi 0, %s204
      %s222 = sphi 0, %s222
      %s224 = sphi 0, %s222
      %s225 = sphi 0, %s224
      %s239 = sphi 0, %s225
      %s243 = sphi 0, %s243
      %s245 = sphi 0, %s243
      %s246 = sphi 0, %s245
      %s260 = sphi 0, %s246
      %s266 = sphi 0, %s268
      %s269 = sphi 0, %s266
      %s270 = sphi 0, %s269
      %s286 = sphi 0, %s270
    $region4: #{test_cnn_forward.1} parent=1 // loop_header_branch
      %23 = sbr.rel (%p21) target = $region8
    $region5: #{test_cnn_forward.1} parent=1 // loop_body
      %s25 = ssub.s32 %s20, 1
      %s26 = ssub.s32 %s20, 2
      %s27 = sadd.s32 %s20, 1
      %s28 = ssub.s32 %s20, %s27
      %p29 = scmp.eq.s32.totalorder %s28, 0
      %s31 = sadd.s32 %s30, 1
      %s32 = scalar_select %p29, %s30, %s31
      %p35 = pneg %p29
      %p36 = scmp.eq.s32.totalorder %s20, 1
      %p37 = por %p35, %p36
      %p38 = scmp.ne.s32.totalorder %s30, %s33
      %p39 = scmp.eq.s32.totalorder %s20, 0
      %p40 = por %p38, %p39
      %p41 = scmp.ne.s32.totalorder %s30, %s33
      %p42 = scmp.eq.s32.totalorder %s25, 1
      %p43 = por %p41, %p42
      %p44 = scmp.ne.s32.totalorder %s33, %s34
      %p45 = scmp.eq.s32.totalorder %s25, 0
      %p46 = por %p44, %p45
      %p47 = scmp.ne.s32.totalorder %s33, %s34
      %p48 = scmp.eq.s32.totalorder %s26, 1
      %p49 = por %p47, %p48
      %p51 = scmp.ne.s32.totalorder %s34, %s50
      %p52 = scmp.eq.s32.totalorder %s26, 0
      %p53 = por %p51, %p52
      %s55 = sadd.s32 %s54, 1
      %p58 = scmp.eq.s32.totalorder %s20, 1
      %p59 = scmp.ne.s32.totalorder %s54, %s56
      %p60 = scmp.eq.s32.totalorder %s20, 0
      %p61 = por %p59, %p60
      %p62 = scmp.ne.s32.totalorder %s54, %s56
      %p63 = scmp.eq.s32.totalorder %s25, 1
      %p64 = por %p62, %p63
      %p65 = scmp.ne.s32.totalorder %s56, %s57
      %p66 = scmp.eq.s32.totalorder %s25, 0
      %p67 = por %p65, %p66
      %p68 = scmp.ne.s32.totalorder %s56, %s57
      %p69 = scmp.eq.s32.totalorder %s26, 1
      %p70 = por %p68, %p69
      %p72 = scmp.ne.s32.totalorder %s57, %s71
      %p73 = scmp.eq.s32.totalorder %s26, 0
      %p74 = por %p72, %p73
      %s76 = sadd.s32 %s75, 1
      %p79 = scmp.eq.s32.totalorder %s20, 1
      %p80 = scmp.ne.s32.totalorder %s75, %s77
      %p81 = scmp.eq.s32.totalorder %s20, 0
      %p82 = por %p80, %p81
      %p83 = scmp.ne.s32.totalorder %s75, %s77
      %p84 = scmp.eq.s32.totalorder %s25, 1
      %p85 = por %p83, %p84
      %p86 = scmp.ne.s32.totalorder %s77, %s78
      %p87 = scmp.eq.s32.totalorder %s25, 0
      %p88 = por %p86, %p87
      %p89 = scmp.ne.s32.totalorder %s77, %s78
      %p90 = scmp.eq.s32.totalorder %s26, 1
      %p91 = por %p89, %p90
      %p93 = scmp.ne.s32.totalorder %s78, %s92
      %p94 = scmp.eq.s32.totalorder %s26, 0
      %p95 = por %p93, %p94
      %s97 = sadd.s32 %s96, 1
      %p100 = scmp.eq.s32.totalorder %s20, 1
      %p101 = scmp.ne.s32.totalorder %s96, %s98
      %p102 = scmp.eq.s32.totalorder %s20, 0
      %p103 = por %p101, %p102
      %p104 = scmp.ne.s32.totalorder %s96, %s98
      %p105 = scmp.eq.s32.totalorder %s25, 1
      %p106 = por %p104, %p105
      %p107 = scmp.ne.s32.totalorder %s98, %s99
      %p108 = scmp.eq.s32.totalorder %s25, 0
      %p109 = por %p107, %p108
      %p110 = scmp.ne.s32.totalorder %s98, %s99
      %p111 = scmp.eq.s32.totalorder %s26, 1
      %p112 = por %p110, %p111
      %p114 = scmp.ne.s32.totalorder %s99, %s113
      %p115 = scmp.eq.s32.totalorder %s26, 0
      %p116 = por %p114, %p115
      %s118 = sadd.s32 %s117, 1
      %p121 = scmp.eq.s32.totalorder %s20, 1
      %p122 = scmp.ne.s32.totalorder %s117, %s119
      %p123 = scmp.eq.s32.totalorder %s20, 0
      %p124 = por %p122, %p123
      %p125 = scmp.ne.s32.totalorder %s117, %s119
      %p126 = scmp.eq.s32.totalorder %s25, 1
      %p127 = por %p125, %p126
      %p128 = scmp.ne.s32.totalorder %s119, %s120
      %p129 = scmp.eq.s32.totalorder %s25, 0
      %p130 = por %p128, %p129
      %p131 = scmp.ne.s32.totalorder %s119, %s120
      %p132 = scmp.eq.s32.totalorder %s26, 1
      %p133 = por %p131, %p132
      %p135 = scmp.ne.s32.totalorder %s120, %s134
      %p136 = scmp.eq.s32.totalorder %s26, 0
      %p137 = por %p135, %p136
      %s139 = sadd.s32 %s138, 1
      %p142 = scmp.eq.s32.totalorder %s20, 1
      %p143 = scmp.ne.s32.totalorder %s138, %s140
      %p144 = scmp.eq.s32.totalorder %s20, 0
      %p145 = por %p143, %p144
      %p146 = scmp.ne.s32.totalorder %s138, %s140
      %p147 = scmp.eq.s32.totalorder %s25, 1
      %p148 = por %p146, %p147
      %p149 = scmp.ne.s32.totalorder %s140, %s141
      %p150 = scmp.eq.s32.totalorder %s25, 0
      %p151 = por %p149, %p150
      %p152 = scmp.ne.s32.totalorder %s140, %s141
      %p153 = scmp.eq.s32.totalorder %s26, 1
      %p154 = por %p152, %p153
      %p156 = scmp.ne.s32.totalorder %s141, %s155
      %p157 = scmp.eq.s32.totalorder %s26, 0
      %p158 = por %p156, %p157
      %s160 = sadd.s32 %s159, 1
      %p163 = scmp.eq.s32.totalorder %s20, 1
      %p164 = scmp.ne.s32.totalorder %s159, %s161
      %p165 = scmp.eq.s32.totalorder %s20, 0
      %p166 = por %p164, %p165
      %p167 = scmp.ne.s32.totalorder %s159, %s161
      %p168 = scmp.eq.s32.totalorder %s25, 1
      %p169 = por %p167, %p168
      %p170 = scmp.ne.s32.totalorder %s161, %s162
      %p171 = scmp.eq.s32.totalorder %s25, 0
      %p172 = por %p170, %p171
      %p173 = scmp.ne.s32.totalorder %s161, %s162
      %p174 = scmp.eq.s32.totalorder %s26, 1
      %p175 = por %p173, %p174
      %p177 = scmp.ne.s32.totalorder %s162, %s176
      %p178 = scmp.eq.s32.totalorder %s26, 0
      %p179 = por %p177, %p178
      %s181 = sadd.s32 %s180, 1
      %p184 = scmp.eq.s32.totalorder %s20, 1
      %p185 = scmp.ne.s32.totalorder %s180, %s182
      %p186 = scmp.eq.s32.totalorder %s20, 0
      %p187 = por %p185, %p186
      %p188 = scmp.ne.s32.totalorder %s180, %s182
      %p189 = scmp.eq.s32.totalorder %s25, 1
      %p190 = por %p188, %p189
      %p191 = scmp.ne.s32.totalorder %s182, %s183
      %p192 = scmp.eq.s32.totalorder %s25, 0
      %p193 = por %p191, %p192
      %p194 = scmp.ne.s32.totalorder %s182, %s183
      %p195 = scmp.eq.s32.totalorder %s26, 1
      %p196 = por %p194, %p195
      %p198 = scmp.ne.s32.totalorder %s183, %s197
      %p199 = scmp.eq.s32.totalorder %s26, 0
      %p200 = por %p198, %p199
      %s202 = sadd.s32 %s201, 1
      %p205 = scmp.eq.s32.totalorder %s20, 1
      %p206 = scmp.ne.s32.totalorder %s201, %s203
      %p207 = scmp.eq.s32.totalorder %s20, 0
      %p208 = por %p206, %p207
      %p209 = scmp.ne.s32.totalorder %s201, %s203
      %p210 = scmp.eq.s32.totalorder %s25, 1
      %p211 = por %p209, %p210
      %p212 = scmp.ne.s32.totalorder %s203, %s204
      %p213 = scmp.eq.s32.totalorder %s25, 0
      %p214 = por %p212, %p213
      %p215 = scmp.ne.s32.totalorder %s203, %s204
      %p216 = scmp.eq.s32.totalorder %s26, 1
      %p217 = por %p215, %p216
      %p219 = scmp.ne.s32.totalorder %s204, %s218
      %p220 = scmp.eq.s32.totalorder %s26, 0
      %p221 = por %p219, %p220
      %s223 = sadd.s32 %s222, 1
      %p226 = scmp.eq.s32.totalorder %s20, 1
      %p227 = scmp.ne.s32.totalorder %s222, %s224
      %p228 = scmp.eq.s32.totalorder %s20, 0
      %p229 = por %p227, %p228
      %p230 = scmp.ne.s32.totalorder %s222, %s224
      %p231 = scmp.eq.s32.totalorder %s25, 1
      %p232 = por %p230, %p231
      %p233 = scmp.ne.s32.totalorder %s224, %s225
      %p234 = scmp.eq.s32.totalorder %s25, 0
      %p235 = por %p233, %p234
      %p236 = scmp.ne.s32.totalorder %s224, %s225
      %p237 = scmp.eq.s32.totalorder %s26, 1
      %p238 = por %p236, %p237
      %p240 = scmp.ne.s32.totalorder %s225, %s239
      %p241 = scmp.eq.s32.totalorder %s26, 0
      %p242 = por %p240, %p241
      %s244 = sadd.s32 %s243, 1
      %p247 = scmp.eq.s32.totalorder %s20, 1
      %p248 = scmp.ne.s32.totalorder %s243, %s245
      %p249 = scmp.eq.s32.totalorder %s20, 0
      %p250 = por %p248, %p249
      %p251 = scmp.ne.s32.totalorder %s243, %s245
      %p252 = scmp.eq.s32.totalorder %s25, 1
      %p253 = por %p251, %p252
      %p254 = scmp.ne.s32.totalorder %s245, %s246
      %p255 = scmp.eq.s32.totalorder %s25, 0
      %p256 = por %p254, %p255
      %p257 = scmp.ne.s32.totalorder %s245, %s246
      %p258 = scmp.eq.s32.totalorder %s26, 1
      %p259 = por %p257, %p258
      %p261 = scmp.ne.s32.totalorder %s246, %s260
      %p262 = scmp.eq.s32.totalorder %s26, 0
      %p263 = por %p261, %p262
      %s264 = ssub.s32 %s20, %s27
      %p265 = scmp.eq.s32.totalorder %s264, 0
      %s267 = sadd.s32 %s266, 1
      %s268 = scalar_select %p265, %s266, %s267
      %p271 = pneg %p265
      %p272 = scmp.eq.s32.totalorder %s20, 1
      %p273 = por %p271, %p272
      %p274 = scmp.ne.s32.totalorder %s266, %s269
      %p275 = scmp.eq.s32.totalorder %s20, 0
      %p276 = por %p274, %p275
      %p277 = scmp.ne.s32.totalorder %s266, %s269
      %p278 = scmp.eq.s32.totalorder %s25, 1
      %p279 = por %p277, %p278
      %p280 = scmp.ne.s32.totalorder %s269, %s270
      %p281 = scmp.eq.s32.totalorder %s25, 0
      %p282 = por %p280, %p281
      %p283 = scmp.ne.s32.totalorder %s269, %s270
      %p284 = scmp.eq.s32.totalorder %s26, 1
      %p285 = por %p283, %p284
      %p287 = scmp.ne.s32.totalorder %s270, %s286
      %p288 = scmp.eq.s32.totalorder %s26, 0
      %p289 = por %p287, %p288
      %p290 = scmp.le.s32.totalorder 1, %s20
      %p291 = scmp.lt.s32.totalorder %s20, 3
      %p292 = pnand %p290, %p291
      %p293 = pneg %p292
      // Predicated region
      $region9: #{test_cnn_forward.1} parent=5 // pred_check
        _
      $region10: #{test_cnn_forward.1} parent=5 // pred_check_branch
        %295 = sbr.rel (%p292) target = $region12
      $region11: #{test_cnn_forward.1} parent=5 // pred_region
        %s296 = ssub.s32 %s20, 1
        // Predicated region
        $region13: #{test_cnn_forward.1} parent=11 // pred_check
          %p297 = pneg %p67
        $region14: #{test_cnn_forward.1} parent=11 // pred_check_branch
          %299 = sbr.rel (%p297) target = $region16
        $region15: #{test_cnn_forward.1} parent=11 // pred_region
          _
        $region16: #{test_cnn_forward.1} parent=11 // pred_fallthru
          _
        // Predicated region
        $region17: #{test_cnn_forward.1} parent=11 // pred_check
          %p300 = pneg %p88
        $region18: #{test_cnn_forward.1} parent=11 // pred_check_branch
          %302 = sbr.rel (%p300) target = $region20
        $region19: #{test_cnn_forward.1} parent=11 // pred_region
          _
        $region20: #{test_cnn_forward.1} parent=11 // pred_fallthru
          _
        // Predicated region
        $region21: #{test_cnn_forward.1} parent=11 // pred_check
          %p303 = pneg %p109
        $region22: #{test_cnn_forward.1} parent=11 // pred_check_branch
          %305 = sbr.rel (%p303) target = $region24
        $region23: #{test_cnn_forward.1} parent=11 // pred_region
          _
        $region24: #{test_cnn_forward.1} parent=11 // pred_fallthru
          _
        // Predicated region
        $region25: #{test_cnn_forward.1} parent=11 // pred_check
          %p306 = pneg %p130
        $region26: #{test_cnn_forward.1} parent=11 // pred_check_branch
          %308 = sbr.rel (%p306) target = $region28
        $region27: #{test_cnn_forward.1} parent=11 // pred_region
          _
        $region28: #{test_cnn_forward.1} parent=11 // pred_fallthru
          _
        // Predicated region
        $region29: #{test_cnn_forward.1} parent=11 // pred_check
          %p309 = pneg %p151
        $region30: #{test_cnn_forward.1} parent=11 // pred_check_branch
          %311 = sbr.rel (%p309) target = $region32
        $region31: #{test_cnn_forward.1} parent=11 // pred_region
          _
        $region32: #{test_cnn_forward.1} parent=11 // pred_fallthru
          _
        // Predicated region
        $region33: #{test_cnn_forward.1} parent=11 // pred_check
          %p312 = pneg %p172
        $region34: #{test_cnn_forward.1} parent=11 // pred_check_branch
          %314 = sbr.rel (%p312) target = $region36
        $region35: #{test_cnn_forward.1} parent=11 // pred_region
          _
        $region36: #{test_cnn_forward.1} parent=11 // pred_fallthru
          _
        // Predicated region
        $region37: #{test_cnn_forward.1} parent=11 // pred_check
          %p315 = pneg %p193
        $region38: #{test_cnn_forward.1} parent=11 // pred_check_branch
          %317 = sbr.rel (%p315) target = $region40
        $region39: #{test_cnn_forward.1} parent=11 // pred_region
          _
        $region40: #{test_cnn_forward.1} parent=11 // pred_fallthru
          _
        // Predicated region
        $region41: #{test_cnn_forward.1} parent=11 // pred_check
          %p318 = pneg %p214
        $region42: #{test_cnn_forward.1} parent=11 // pred_check_branch
          %320 = sbr.rel (%p318) target = $region44
        $region43: #{test_cnn_forward.1} parent=11 // pred_region
          _
        $region44: #{test_cnn_forward.1} parent=11 // pred_fallthru
          _
        // Predicated region
        $region45: #{test_cnn_forward.1} parent=11 // pred_check
          %p321 = pneg %p235
        $region46: #{test_cnn_forward.1} parent=11 // pred_check_branch
          %323 = sbr.rel (%p321) target = $region48
        $region47: #{test_cnn_forward.1} parent=11 // pred_region
          _
        $region48: #{test_cnn_forward.1} parent=11 // pred_fallthru
          _
        // Predicated region
        $region49: #{test_cnn_forward.1} parent=11 // pred_check
          %p324 = pneg %p256
        $region50: #{test_cnn_forward.1} parent=11 // pred_check_branch
          %326 = sbr.rel (%p324) target = $region52
        $region51: #{test_cnn_forward.1} parent=11 // pred_region
          _
        $region52: #{test_cnn_forward.1} parent=11 // pred_fallthru
          _
      $region12: #{test_cnn_forward.1} parent=5 // pred_fallthru
        _
      %p327 = scmp.lt.s32.totalorder %s20, 2
      // Predicated region
      $region53: #{test_cnn_forward.1} parent=5 // pred_check
        %p328 = pneg %p327
      $region54: #{test_cnn_forward.1} parent=5 // pred_check_branch
        %330 = sbr.rel (%p328) target = $region56
      $region55: #{test_cnn_forward.1} parent=5 // pred_region
        // Predicated region
        $region57: #{test_cnn_forward.1} parent=55 // pred_check
          %p331 = pneg %p40
        $region58: #{test_cnn_forward.1} parent=55 // pred_check_branch
          %333 = sbr.rel (%p331) target = $region60
        $region59: #{test_cnn_forward.1} parent=55 // pred_region
          %p334 = scmp.lt.s32.totalorder %s20, 1
          %s335 = scalar_select %p334, %s20, 1
          %s336 = smul.addr %s335, 32
          %s337 = smul.addr %s336, 8
          %s338 = scalar_lea.vmem %s0, %s337
        $region60: #{test_cnn_forward.1} parent=55 // pred_fallthru
          _
      $region56: #{test_cnn_forward.1} parent=5 // pred_fallthru
        _
      %p339 = scmp.le.s32.totalorder 1, %s20
      %p340 = scmp.lt.s32.totalorder %s20, 3
      %p341 = pnand %p339, %p340
      %p342 = pneg %p341
      // Predicated region
      $region61: #{test_cnn_forward.1} parent=5 // pred_check
        _
      $region62: #{test_cnn_forward.1} parent=5 // pred_check_branch
        %344 = sbr.rel (%p341) target = $region64
      $region63: #{test_cnn_forward.1} parent=5 // pred_region
        %s345 = ssub.s32 %s20, 1
        %p346 = scmp.lt.s32.totalorder %s25, 1
        %s347 = scalar_select %p346, %s25, 1
        %s348 = smul.addr %s347, 32
        %s349 = smul.addr %s348, 8
        %s350 = scalar_lea.vmem %s0, %s349
        %p351 = pneg %p46
        %p352 = pneg %p43
        %p353 = pneg %p67
        %p354 = pneg %p64
        %p355 = pneg %p88
        %p356 = pneg %p85
        %p357 = pneg %p109
        %p358 = pneg %p106
        %p359 = pneg %p130
        %p360 = pneg %p127
        %p361 = pneg %p151
        %p362 = pneg %p148
        %p363 = pneg %p172
        %p364 = pneg %p169
        %p365 = pneg %p193
        %p366 = pneg %p190
        %p367 = pneg %p214
        %p368 = pneg %p211
        %p369 = pneg %p235
        %p370 = pneg %p232
        %p371 = pneg %p256
        %p372 = pneg %p253
        %p373 = pneg %p282
        %p374 = pneg %p279
        %s375 = sand.u32 %s269, 1
        %s376 = scalar_lea.sflag [#allocation11], %s375
        %s377 = sand.u32 %s269, 1
        %s378 = scalar_lea.vmem [#allocation10], %s377
        %p379 = scmp.lt.s32.totalorder %s25, 1
        %s380 = scalar_select %p379, %s25, 1
        %s381 = smul.addr %s380, 32
        %s382 = smul.addr %s381, 8
        %s383 = scalar_lea.vmem %s0, %s382
        %vm385 = vcmask 23552
        %386 = vst.msk [vmem:[#allocation2] sm:$0xff] %vm385, 0.0
        %387 = vst.msk [vmem:[#allocation2 + $0x8] sm:$0xff] %vm385, 0.0
        %vm388 = vcmask 17408
        %389 = vst.msk [vmem:[#allocation2 + $0x10] sm:$0x3] %vm388, 0.0
        %390 = vst.msk [vmem:[#allocation2 + $0x18] sm:$0xff] %vm385, 0.0
        %391 = vst.msk [vmem:[#allocation2 + $0x20] sm:$0xff] %vm385, 0.0
        %392 = vst.msk [vmem:[#allocation2 + $0x28] sm:$0x3] %vm388, 0.0
        %393 = vst.msk [vmem:[#allocation2 + $0x30] sm:$0xff] %vm385, 0.0
        %394 = vst.msk [vmem:[#allocation2 + $0x38] sm:$0xff] %vm385, 0.0
        %395 = vst.msk [vmem:[#allocation2 + $0x40] sm:$0x3] %vm388, 0.0
        %396 = vst.msk [vmem:[#allocation2 + $0x48] sm:$0xff] %vm385, 0.0
        %397 = vst.msk [vmem:[#allocation2 + $0x50] sm:$0xff] %vm385, 0.0
        %398 = vst.msk [vmem:[#allocation2 + $0x58] sm:$0x3] %vm388, 0.0
        %399 = vst.msk [vmem:[#allocation2 + $0x60] sm:$0xff] %vm385, 0.0
        %400 = vst.msk [vmem:[#allocation2 + $0x68] sm:$0xff] %vm385, 0.0
        %401 = vst.msk [vmem:[#allocation2 + $0x70] sm:$0x3] %vm388, 0.0
        %402 = vst.msk [vmem:[#allocation2 + $0x78] sm:$0xff] %vm385, 0.0
        %403 = vst.msk [vmem:[#allocation2 + $0x80] sm:$0xff] %vm385, 0.0
        %404 = vst.msk [vmem:[#allocation2 + $0x88] sm:$0x3] %vm388, 0.0
        %405 = vst.msk [vmem:[#allocation2 + $0x90] sm:$0xff] %vm385, 0.0
        %406 = vst.msk [vmem:[#allocation2 + $0x98] sm:$0xff] %vm385, 0.0
        %407 = vst.msk [vmem:[#allocation2 + $0xa0] sm:$0x3] %vm388, 0.0
        %408 = vst.msk [vmem:[#allocation2 + $0xa8] sm:$0xff] %vm385, 0.0
        %409 = vst.msk [vmem:[#allocation2 + $0xb0] sm:$0xff] %vm385, 0.0
        %410 = vst.msk [vmem:[#allocation2 + $0xb8] sm:$0x3] %vm388, 0.0
        %411 = vst.msk [vmem:[#allocation2 + $0xc0] sm:$0xff] %vm385, 0.0
        %412 = vst.msk [vmem:[#allocation2 + $0xc8] sm:$0xff] %vm385, 0.0
        %413 = vst.msk [vmem:[#allocation2 + $0xd0] sm:$0x3] %vm388, 0.0
        %414 = vst.msk [vmem:[#allocation2 + $0xd8] sm:$0xff] %vm385, 0.0
        %415 = vst.msk [vmem:[#allocation2 + $0xe0] sm:$0xff] %vm385, 0.0
        %416 = vst.msk [vmem:[#allocation2 + $0xe8] sm:$0x3] %vm388, 0.0
        %417 = vst.msk [vmem:[#allocation2 + $0xf0] sm:$0xff] %vm385, 0.0
        %418 = vst.msk [vmem:[#allocation2 + $0xf8] sm:$0xff] %vm385, 0.0
        %419 = vst.msk [vmem:[#allocation2 + $0x100] sm:$0x3] %vm388, 0.0
        %420 = vst.msk [vmem:[#allocation2 + $0x108] sm:$0xff] %vm385, 0.0
        %421 = vst.msk [vmem:[#allocation2 + $0x110] sm:$0xff] %vm385, 0.0
        %422 = vst.msk [vmem:[#allocation2 + $0x118] sm:$0x3] %vm388, 0.0
        %423 = vst.msk [vmem:[#allocation2 + $0x120] sm:$0xff] %vm385, 0.0
        %424 = vst.msk [vmem:[#allocation2 + $0x128] sm:$0xff] %vm385, 0.0
        %425 = vst.msk [vmem:[#allocation2 + $0x130] sm:$0x3] %vm388, 0.0
        %426 = vst.msk [vmem:[#allocation2 + $0x138] sm:$0xff] %vm385, 0.0
        %427 = vst.msk [vmem:[#allocation2 + $0x140] sm:$0xff] %vm385, 0.0
        %428 = vst.msk [vmem:[#allocation2 + $0x148] sm:$0x3] %vm388, 0.0
        %429 = vst.msk [vmem:[#allocation2 + $0x150] sm:$0xff] %vm385, 0.0
        %430 = vst.msk [vmem:[#allocation2 + $0x158] sm:$0xff] %vm385, 0.0
        %431 = vst.msk [vmem:[#allocation2 + $0x160] sm:$0x3] %vm388, 0.0
        %432 = vst.msk [vmem:[#allocation2 + $0x168] sm:$0xff] %vm385, 0.0
        %433 = vst.msk [vmem:[#allocation2 + $0x170] sm:$0xff] %vm385, 0.0
        %434 = vst.msk [vmem:[#allocation2 + $0x178] sm:$0x3] %vm388, 0.0
        %435 = vst.msk [vmem:[#allocation2 + $0x180] sm:$0xff] %vm385, 0.0
        %436 = vst.msk [vmem:[#allocation2 + $0x188] sm:$0xff] %vm385, 0.0
        %437 = vst.msk [vmem:[#allocation2 + $0x190] sm:$0x3] %vm388, 0.0
        %438 = vst.msk [vmem:[#allocation2 + $0x198] sm:$0xff] %vm385, 0.0
        %439 = vst.msk [vmem:[#allocation2 + $0x1a0] sm:$0xff] %vm385, 0.0
        %440 = vst.msk [vmem:[#allocation2 + $0x1a8] sm:$0x3] %vm388, 0.0
        %v441 = vld [vmem:[%s383] sm:$0xff]
        %v442 = vld [vmem:[%s383 + $0x8] sm:$0xff]
        %v443 = vld [vmem:[%s383 + $0x10] sm:$0xff]
        %v444 = vld [vmem:[%s383 + $0x18] sm:$0xff]
        %v445 = vld [vmem:[%s383 + $0x20] sm:$0xff]
        %v446 = vld [vmem:[%s383 + $0x28] sm:$0xff]
        %v447 = vld [vmem:[%s383 + $0x30] sm:$0xff]
        %v448 = vld [vmem:[%s383 + $0x38] sm:$0xff]
        %v449 = vld [vmem:[%s383 + $0x40] sm:$0xff]
        %v450 = vld [vmem:[%s383 + $0x48] sm:$0xff]
        %v451 = vld [vmem:[%s383 + $0x50] sm:$0xff]
        %v452 = vld [vmem:[%s383 + $0x58] sm:$0xff]
        %v453 = vld [vmem:[%s383 + $0x60] sm:$0xff]
        %v454 = vld [vmem:[%s383 + $0x68] sm:$0xff]
        %v455 = vld [vmem:[%s383 + $0x70] sm:$0xff]
        %v456 = vld [vmem:[%s383 + $0x78] sm:$0xff]
        %v457 = vld [vmem:[%s383 + $0x80] sm:$0xff]
        %v458 = vld [vmem:[%s383 + $0x88] sm:$0xff]
        %v459 = vld [vmem:[%s383 + $0x90] sm:$0xff]
        %v460 = vld [vmem:[%s383 + $0x98] sm:$0xff]
        %v461 = vld [vmem:[%s383 + $0xa0] sm:$0xff]
        %v462 = vld [vmem:[%s383 + $0xa8] sm:$0xff]
        %v463 = vld [vmem:[%s383 + $0xb0] sm:$0xff]
        %v464 = vld [vmem:[%s383 + $0xb8] sm:$0xff]
        %v465 = vld [vmem:[%s383 + $0xc0] sm:$0xff]
        %v466 = vld [vmem:[%s383 + $0xc8] sm:$0xff]
        %v467 = vld [vmem:[%s383 + $0xd0] sm:$0xff]
        %v468 = vld [vmem:[%s383 + $0xd8] sm:$0xff]
        %v469 = vld [vmem:[%s383 + $0xe0] sm:$0xff]
        %v470 = vld [vmem:[%s383 + $0xe8] sm:$0xff]
        %v471 = vld [vmem:[%s383 + $0xf0] sm:$0xff]
        %v472 = vld [vmem:[%s383 + $0xf8] sm:$0xff]
        %s473 = scalar_lea.vmem [#allocation2], 24
        %474 = vst.msk [vmem:[%s473 + $0x1] sm:$0xff] %vm385, %v441
        %475 = vst.msk [vmem:[%s473 + $0x9] sm:$0xff] %vm385, %v442
        %476 = vst.msk [vmem:[%s473 + $0x19] sm:$0xff] %vm385, %v443
        %477 = vst.msk [vmem:[%s473 + $0x21] sm:$0xff] %vm385, %v444
        %478 = vst.msk [vmem:[%s473 + $0x31] sm:$0xff] %vm385, %v445
        %479 = vst.msk [vmem:[%s473 + $0x39] sm:$0xff] %vm385, %v446
        %480 = vst.msk [vmem:[%s473 + $0x49] sm:$0xff] %vm385, %v447
        %481 = vst.msk [vmem:[%s473 + $0x51] sm:$0xff] %vm385, %v448
        %482 = vst.msk [vmem:[%s473 + $0x61] sm:$0xff] %vm385, %v449
        %483 = vst.msk [vmem:[%s473 + $0x69] sm:$0xff] %vm385, %v450
        %484 = vst.msk [vmem:[%s473 + $0x79] sm:$0xff] %vm385, %v451
        %485 = vst.msk [vmem:[%s473 + $0x81] sm:$0xff] %vm385, %v452
        %486 = vst.msk [vmem:[%s473 + $0x91] sm:$0xff] %vm385, %v453
        %487 = vst.msk [vmem:[%s473 + $0x99] sm:$0xff] %vm385, %v454
        %488 = vst.msk [vmem:[%s473 + $0xa9] sm:$0xff] %vm385, %v455
        %489 = vst.msk [vmem:[%s473 + $0xb1] sm:$0xff] %vm385, %v456
        %490 = vst.msk [vmem:[%s473 + $0xc1] sm:$0xff] %vm385, %v457
        %491 = vst.msk [vmem:[%s473 + $0xc9] sm:$0xff] %vm385, %v458
        %492 = vst.msk [vmem:[%s473 + $0xd9] sm:$0xff] %vm385, %v459
        %493 = vst.msk [vmem:[%s473 + $0xe1] sm:$0xff] %vm385, %v460
        %494 = vst.msk [vmem:[%s473 + $0xf1] sm:$0xff] %vm385, %v461
        %495 = vst.msk [vmem:[%s473 + $0xf9] sm:$0xff] %vm385, %v462
        %496 = vst.msk [vmem:[%s473 + $0x109] sm:$0xff] %vm385, %v463
        %497 = vst.msk [vmem:[%s473 + $0x111] sm:$0xff] %vm385, %v464
        %498 = vst.msk [vmem:[%s473 + $0x121] sm:$0xff] %vm385, %v465
        %499 = vst.msk [vmem:[%s473 + $0x129] sm:$0xff] %vm385, %v466
        %500 = vst.msk [vmem:[%s473 + $0x139] sm:$0xff] %vm385, %v467
        %501 = vst.msk [vmem:[%s473 + $0x141] sm:$0xff] %vm385, %v468
        %502 = vst.msk [vmem:[%s473 + $0x151] sm:$0xff] %vm385, %v469
        %503 = vst.msk [vmem:[%s473 + $0x159] sm:$0xff] %vm385, %v470
        %504 = vst.msk [vmem:[%s473 + $0x169] sm:$0xff] %vm385, %v471
        %505 = vst.msk [vmem:[%s473 + $0x171] sm:$0xff] %vm385, %v472
        %v506 = vld [vmem:[#allocation2] sm:$0xff]
        %v507 = vld [vmem:[#allocation2 + $0x8] sm:$0xff]
        %v508 = vld [vmem:[#allocation2 + $0x10] sm:$0x3]
        %v509 = vld [vmem:[#allocation2 + $0x18] sm:$0xff]
        %v510 = vld [vmem:[#allocation2 + $0x20] sm:$0xff]
        %v511 = vld [vmem:[#allocation2 + $0x28] sm:$0x3]
        %v512 = vld [vmem:[#allocation2 + $0x30] sm:$0xff]
        %v513 = vld [vmem:[#allocation2 + $0x38] sm:$0xff]
        %v514 = vld [vmem:[#allocation2 + $0x40] sm:$0x3]
        %v515 = vld [vmem:[#allocation2 + $0x48] sm:$0xff]
        %v516 = vld [vmem:[#allocation2 + $0x50] sm:$0xff]
        %v517 = vld [vmem:[#allocation2 + $0x58] sm:$0x3]
        %v518 = vld [vmem:[#allocation2 + $0x60] sm:$0xff]
        %v519 = vld [vmem:[#allocation2 + $0x68] sm:$0xff]
        %v520 = vld [vmem:[#allocation2 + $0x70] sm:$0x3]
        %v521 = vld [vmem:[#allocation2 + $0x78] sm:$0xff]
        %v522 = vld [vmem:[#allocation2 + $0x80] sm:$0xff]
        %v523 = vld [vmem:[#allocation2 + $0x88] sm:$0x3]
        %v524 = vld [vmem:[#allocation2 + $0x90] sm:$0xff]
        %v525 = vld [vmem:[#allocation2 + $0x98] sm:$0xff]
        %v526 = vld [vmem:[#allocation2 + $0xa0] sm:$0x3]
        %v527 = vld [vmem:[#allocation2 + $0xa8] sm:$0xff]
        %v528 = vld [vmem:[#allocation2 + $0xb0] sm:$0xff]
        %v529 = vld [vmem:[#allocation2 + $0xb8] sm:$0x3]
        %v530 = vld [vmem:[#allocation2 + $0xc0] sm:$0xff]
        %v531 = vld [vmem:[#allocation2 + $0xc8] sm:$0xff]
        %v532 = vld [vmem:[#allocation2 + $0xd0] sm:$0x3]
        %v533 = vld [vmem:[#allocation2 + $0xd8] sm:$0xff]
        %v534 = vld [vmem:[#allocation2 + $0xe0] sm:$0xff]
        %v535 = vld [vmem:[#allocation2 + $0xe8] sm:$0x3]
        %v536 = vld [vmem:[#allocation2 + $0xf0] sm:$0xff]
        %v537 = vld [vmem:[#allocation2 + $0xf8] sm:$0xff]
        %v538 = vld [vmem:[#allocation2 + $0x100] sm:$0x3]
        %v539 = vld [vmem:[#allocation2 + $0x108] sm:$0xff]
        %v540 = vld [vmem:[#allocation2 + $0x110] sm:$0xff]
        %v541 = vld [vmem:[#allocation2 + $0x118] sm:$0x3]
        %v542 = vld [vmem:[#allocation2 + $0x120] sm:$0xff]
        %v543 = vld [vmem:[#allocation2 + $0x128] sm:$0xff]
        %v544 = vld [vmem:[#allocation2 + $0x130] sm:$0x3]
        %v545 = vld [vmem:[#allocation2 + $0x138] sm:$0xff]
        %v546 = vld [vmem:[#allocation2 + $0x140] sm:$0xff]
        %v547 = vld [vmem:[#allocation2 + $0x148] sm:$0x3]
        %v548 = vld [vmem:[#allocation2 + $0x150] sm:$0xff]
        %v549 = vld [vmem:[#allocation2 + $0x158] sm:$0xff]
        %v550 = vld [vmem:[#allocation2 + $0x160] sm:$0x3]
        %v551 = vld [vmem:[#allocation2 + $0x168] sm:$0xff]
        %v552 = vld [vmem:[#allocation2 + $0x170] sm:$0xff]
        %v553 = vld [vmem:[#allocation2 + $0x178] sm:$0x3]
        %v554 = vld [vmem:[#allocation2 + $0x180] sm:$0xff]
        %v555 = vld [vmem:[#allocation2 + $0x188] sm:$0xff]
        %v556 = vld [vmem:[#allocation2 + $0x190] sm:$0x3]
        %v557 = vld [vmem:[#allocation2 + $0x198] sm:$0xff]
        %v558 = vld [vmem:[#allocation2 + $0x1a0] sm:$0xff]
        %v559 = vld [vmem:[#allocation2 + $0x1a8] sm:$0x3]
        %560 = vst.msk [vmem:[#allocation5] sm:$0xff] %vm385, %v506
        %561 = vst.msk [vmem:[#allocation5 + $0x8] sm:$0xff] %vm385, %v507
        %562 = vst.msk [vmem:[#allocation5 + $0x10] sm:$0xff] %vm385, %v509
        %563 = vst.msk [vmem:[#allocation5 + $0x18] sm:$0xff] %vm385, %v510
        %564 = vst.msk [vmem:[#allocation5 + $0x20] sm:$0xff] %vm385, %v512
        %565 = vst.msk [vmem:[#allocation5 + $0x28] sm:$0xff] %vm385, %v513
        %566 = vst.msk [vmem:[#allocation5 + $0x30] sm:$0xff] %vm385, %v515
        %567 = vst.msk [vmem:[#allocation5 + $0x38] sm:$0xff] %vm385, %v516
        %568 = vst.msk [vmem:[#allocation5 + $0x40] sm:$0xff] %vm385, %v518
        %569 = vst.msk [vmem:[#allocation5 + $0x48] sm:$0xff] %vm385, %v519
        %570 = vst.msk [vmem:[#allocation5 + $0x50] sm:$0xff] %vm385, %v521
        %571 = vst.msk [vmem:[#allocation5 + $0x58] sm:$0xff] %vm385, %v522
        %572 = vst.msk [vmem:[#allocation5 + $0x60] sm:$0xff] %vm385, %v524
        %573 = vst.msk [vmem:[#allocation5 + $0x68] sm:$0xff] %vm385, %v525
        %574 = vst.msk [vmem:[#allocation5 + $0x70] sm:$0xff] %vm385, %v527
        %575 = vst.msk [vmem:[#allocation5 + $0x78] sm:$0xff] %vm385, %v528
        %576 = vst.msk [vmem:[#allocation5 + $0x80] sm:$0xff] %vm385, %v530
        %577 = vst.msk [vmem:[#allocation5 + $0x88] sm:$0xff] %vm385, %v531
        %578 = vst.msk [vmem:[#allocation5 + $0x90] sm:$0xff] %vm385, %v533
        %579 = vst.msk [vmem:[#allocation5 + $0x98] sm:$0xff] %vm385, %v534
        %580 = vst.msk [vmem:[#allocation5 + $0xa0] sm:$0xff] %vm385, %v536
        %581 = vst.msk [vmem:[#allocation5 + $0xa8] sm:$0xff] %vm385, %v537
        %582 = vst.msk [vmem:[#allocation5 + $0xb0] sm:$0xff] %vm385, %v539
        %583 = vst.msk [vmem:[#allocation5 + $0xb8] sm:$0xff] %vm385, %v540
        %584 = vst.msk [vmem:[#allocation5 + $0xc0] sm:$0xff] %vm385, %v542
        %585 = vst.msk [vmem:[#allocation5 + $0xc8] sm:$0xff] %vm385, %v543
        %586 = vst.msk [vmem:[#allocation5 + $0xd0] sm:$0xff] %vm385, %v545
        %587 = vst.msk [vmem:[#allocation5 + $0xd8] sm:$0xff] %vm385, %v546
        %588 = vst.msk [vmem:[#allocation5 + $0xe0] sm:$0xff] %vm385, %v548
        %589 = vst.msk [vmem:[#allocation5 + $0xe8] sm:$0xff] %vm385, %v549
        %590 = vst.msk [vmem:[#allocation5 + $0xf0] sm:$0xff] %vm385, %v551
        %591 = vst.msk [vmem:[#allocation5 + $0xf8] sm:$0xff] %vm385, %v552
        %vm640 = vcmask 1046528
        %v641 = vrot.slane %v506, 1
        %v642 = vrot.slane %v507, 1
        %v643 = vsel %vm640, %v641, %v642
        %v644 = vrot.slane %v508, 1
        %v645 = vsel %vm640, %v642, %v644
        %v646 = vrot.slane %v509, 1
        %v647 = vrot.slane %v510, 1
        %v648 = vsel %vm640, %v646, %v647
        %v649 = vrot.slane %v511, 1
        %v650 = vsel %vm640, %v647, %v649
        %v651 = vrot.slane %v512, 1
        %v652 = vrot.slane %v513, 1
        %v653 = vsel %vm640, %v651, %v652
        %v654 = vrot.slane %v514, 1
        %v655 = vsel %vm640, %v652, %v654
        %v656 = vrot.slane %v515, 1
        %v657 = vrot.slane %v516, 1
        %v658 = vsel %vm640, %v656, %v657
        %v659 = vrot.slane %v517, 1
        %v660 = vsel %vm640, %v657, %v659
        %v661 = vrot.slane %v518, 1
        %v662 = vrot.slane %v519, 1
        %v663 = vsel %vm640, %v661, %v662
        %v664 = vrot.slane %v520, 1
        %v665 = vsel %vm640, %v662, %v664
        %v666 = vrot.slane %v521, 1
        %v667 = vrot.slane %v522, 1
        %v668 = vsel %vm640, %v666, %v667
        %v669 = vrot.slane %v523, 1
        %v670 = vsel %vm640, %v667, %v669
        %v671 = vrot.slane %v524, 1
        %v672 = vrot.slane %v525, 1
        %v673 = vsel %vm640, %v671, %v672
        %v674 = vrot.slane %v526, 1
        %v675 = vsel %vm640, %v672, %v674
        %v676 = vrot.slane %v527, 1
        %v677 = vrot.slane %v528, 1
        %v678 = vsel %vm640, %v676, %v677
        %v679 = vrot.slane %v529, 1
        %v680 = vsel %vm640, %v677, %v679
        %v681 = vrot.slane %v530, 1
        %v682 = vrot.slane %v531, 1
        %v683 = vsel %vm640, %v681, %v682
        %v684 = vrot.slane %v532, 1
        %v685 = vsel %vm640, %v682, %v684
        %v686 = vrot.slane %v533, 1
        %v687 = vrot.slane %v534, 1
        %v688 = vsel %vm640, %v686, %v687
        %v689 = vrot.slane %v535, 1
        %v690 = vsel %vm640, %v687, %v689
        %v691 = vrot.slane %v536, 1
        %v692 = vrot.slane %v537, 1
        %v693 = vsel %vm640, %v691, %v692
        %v694 = vrot.slane %v538, 1
        %v695 = vsel %vm640, %v692, %v694
        %v696 = vrot.slane %v539, 1
        %v697 = vrot.slane %v540, 1
        %v698 = vsel %vm640, %v696, %v697
        %v699 = vrot.slane %v541, 1
        %v700 = vsel %vm640, %v697, %v699
        %v701 = vrot.slane %v542, 1
        %v702 = vrot.slane %v543, 1
        %v703 = vsel %vm640, %v701, %v702
        %v704 = vrot.slane %v544, 1
        %v705 = vsel %vm640, %v702, %v704
        %v706 = vrot.slane %v545, 1
        %v707 = vrot.slane %v546, 1
        %v708 = vsel %vm640, %v706, %v707
        %v709 = vrot.slane %v547, 1
        %v710 = vsel %vm640, %v707, %v709
        %v711 = vrot.slane %v548, 1
        %v712 = vrot.slane %v549, 1
        %v713 = vsel %vm640, %v711, %v712
        %v714 = vrot.slane %v550, 1
        %v715 = vsel %vm640, %v712, %v714
        %v716 = vrot.slane %v551, 1
        %v717 = vrot.slane %v552, 1
        %v718 = vsel %vm640, %v716, %v717
        %v719 = vrot.slane %v553, 1
        %v720 = vsel %vm640, %v717, %v719
        %721 = vrot.lane.b32.xlu0 %v643, 3
        %v722 = vpop.permute.xlu0 %721
        %723 = vrot.lane.b32.xlu0 %v645, 3
        %v724 = vpop.permute.xlu0 %723
        %725 = vrot.lane.b32.xlu0 %v648, 3
        %v726 = vpop.permute.xlu0 %725
        %727 = vrot.lane.b32.xlu0 %v650, 3
        %v728 = vpop.permute.xlu0 %727
        %729 = vrot.lane.b32.xlu0 %v653, 3
        %v730 = vpop.permute.xlu0 %729
        %731 = vrot.lane.b32.xlu0 %v655, 3
        %v732 = vpop.permute.xlu0 %731
        %733 = vrot.lane.b32.xlu0 %v658, 3
        %v734 = vpop.permute.xlu0 %733
        %735 = vrot.lane.b32.xlu0 %v660, 3
        %v736 = vpop.permute.xlu0 %735
        %737 = vrot.lane.b32.xlu0 %v663, 3
        %v738 = vpop.permute.xlu0 %737
        %739 = vrot.lane.b32.xlu0 %v665, 3
        %v740 = vpop.permute.xlu0 %739
        %741 = vrot.lane.b32.xlu0 %v668, 3
        %v742 = vpop.permute.xlu0 %741
        %743 = vrot.lane.b32.xlu0 %v670, 3
        %v744 = vpop.permute.xlu0 %743
        %745 = vrot.lane.b32.xlu0 %v673, 3
        %v746 = vpop.permute.xlu0 %745
        %747 = vrot.lane.b32.xlu0 %v675, 3
        %v748 = vpop.permute.xlu0 %747
        %749 = vrot.lane.b32.xlu0 %v678, 3
        %v750 = vpop.permute.xlu0 %749
        %751 = vrot.lane.b32.xlu0 %v680, 3
        %v752 = vpop.permute.xlu0 %751
        %753 = vrot.lane.b32.xlu0 %v683, 3
        %v754 = vpop.permute.xlu0 %753
        %755 = vrot.lane.b32.xlu0 %v685, 3
        %v756 = vpop.permute.xlu0 %755
        %757 = vrot.lane.b32.xlu0 %v688, 3
        %v758 = vpop.permute.xlu0 %757
        %759 = vrot.lane.b32.xlu0 %v690, 3
        %v760 = vpop.permute.xlu0 %759
        %761 = vrot.lane.b32.xlu0 %v693, 3
        %v762 = vpop.permute.xlu0 %761
        %763 = vrot.lane.b32.xlu0 %v695, 3
        %v764 = vpop.permute.xlu0 %763
        %765 = vrot.lane.b32.xlu0 %v698, 3
        %v766 = vpop.permute.xlu0 %765
        %767 = vrot.lane.b32.xlu0 %v700, 3
        %v768 = vpop.permute.xlu0 %767
        %769 = vrot.lane.b32.xlu0 %v703, 3
        %v770 = vpop.permute.xlu0 %769
        %771 = vrot.lane.b32.xlu0 %v705, 3
        %v772 = vpop.permute.xlu0 %771
        %773 = vrot.lane.b32.xlu0 %v708, 3
        %v774 = vpop.permute.xlu0 %773
        %775 = vrot.lane.b32.xlu0 %v710, 3
        %v776 = vpop.permute.xlu0 %775
        %777 = vrot.lane.b32.xlu0 %v713, 3
        %v778 = vpop.permute.xlu0 %777
        %779 = vrot.lane.b32.xlu0 %v715, 3
        %v780 = vpop.permute.xlu0 %779
        %781 = vrot.lane.b32.xlu0 %v718, 3
        %v782 = vpop.permute.xlu0 %781
        %783 = vrot.lane.b32.xlu0 %v720, 3
        %v784 = vpop.permute.xlu0 %783
        %vm817 = vcmask 48152
        %818 = vst.msk [vmem:[#allocation5] sm:$0xff] %vm817, %v722
        %819 = vst.msk [vmem:[#allocation5 + $0x8] sm:$0xff] %vm817, %v724
        %820 = vst.msk [vmem:[#allocation5 + $0x10] sm:$0xff] %vm817, %v726
        %821 = vst.msk [vmem:[#allocation5 + $0x18] sm:$0xff] %vm817, %v728
        %822 = vst.msk [vmem:[#allocation5 + $0x20] sm:$0xff] %vm817, %v730
        %823 = vst.msk [vmem:[#allocation5 + $0x28] sm:$0xff] %vm817, %v732
        %824 = vst.msk [vmem:[#allocation5 + $0x30] sm:$0xff] %vm817, %v734
        %825 = vst.msk [vmem:[#allocation5 + $0x38] sm:$0xff] %vm817, %v736
        %826 = vst.msk [vmem:[#allocation5 + $0x40] sm:$0xff] %vm817, %v738
        %827 = vst.msk [vmem:[#allocation5 + $0x48] sm:$0xff] %vm817, %v740
        %828 = vst.msk [vmem:[#allocation5 + $0x50] sm:$0xff] %vm817, %v742
        %829 = vst.msk [vmem:[#allocation5 + $0x58] sm:$0xff] %vm817, %v744
        %830 = vst.msk [vmem:[#allocation5 + $0x60] sm:$0xff] %vm817, %v746
        %831 = vst.msk [vmem:[#allocation5 + $0x68] sm:$0xff] %vm817, %v748
        %832 = vst.msk [vmem:[#allocation5 + $0x70] sm:$0xff] %vm817, %v750
        %833 = vst.msk [vmem:[#allocation5 + $0x78] sm:$0xff] %vm817, %v752
        %834 = vst.msk [vmem:[#allocation5 + $0x80] sm:$0xff] %vm817, %v754
        %835 = vst.msk [vmem:[#allocation5 + $0x88] sm:$0xff] %vm817, %v756
        %836 = vst.msk [vmem:[#allocation5 + $0x90] sm:$0xff] %vm817, %v758
        %837 = vst.msk [vmem:[#allocation5 + $0x98] sm:$0xff] %vm817, %v760
        %838 = vst.msk [vmem:[#allocation5 + $0xa0] sm:$0xff] %vm817, %v762
        %839 = vst.msk [vmem:[#allocation5 + $0xa8] sm:$0xff] %vm817, %v764
        %840 = vst.msk [vmem:[#allocation5 + $0xb0] sm:$0xff] %vm817, %v766
        %841 = vst.msk [vmem:[#allocation5 + $0xb8] sm:$0xff] %vm817, %v768
        %842 = vst.msk [vmem:[#allocation5 + $0xc0] sm:$0xff] %vm817, %v770
        %843 = vst.msk [vmem:[#allocation5 + $0xc8] sm:$0xff] %vm817, %v772
        %844 = vst.msk [vmem:[#allocation5 + $0xd0] sm:$0xff] %vm817, %v774
        %845 = vst.msk [vmem:[#allocation5 + $0xd8] sm:$0xff] %vm817, %v776
        %846 = vst.msk [vmem:[#allocation5 + $0xe0] sm:$0xff] %vm817, %v778
        %847 = vst.msk [vmem:[#allocation5 + $0xe8] sm:$0xff] %vm817, %v780
        %848 = vst.msk [vmem:[#allocation5 + $0xf0] sm:$0xff] %vm817, %v782
        %849 = vst.msk [vmem:[#allocation5 + $0xf8] sm:$0xff] %vm817, %v784
        %vm850 = vcmask 1045504
        %v851 = vrot.slane %v506, 2
        %v852 = vrot.slane %v507, 2
        %v853 = vsel %vm850, %v851, %v852
        %v854 = vrot.slane %v508, 2
        %v855 = vsel %vm850, %v852, %v854
        %v856 = vrot.slane %v509, 2
        %v857 = vrot.slane %v510, 2
        %v858 = vsel %vm850, %v856, %v857
        %v859 = vrot.slane %v511, 2
        %v860 = vsel %vm850, %v857, %v859
        %v861 = vrot.slane %v512, 2
        %v862 = vrot.slane %v513, 2
        %v863 = vsel %vm850, %v861, %v862
        %v864 = vrot.slane %v514, 2
        %v865 = vsel %vm850, %v862, %v864
        %v866 = vrot.slane %v515, 2
        %v867 = vrot.slane %v516, 2
        %v868 = vsel %vm850, %v866, %v867
        %v869 = vrot.slane %v517, 2
        %v870 = vsel %vm850, %v867, %v869
        %v871 = vrot.slane %v518, 2
        %v872 = vrot.slane %v519, 2
        %v873 = vsel %vm850, %v871, %v872
        %v874 = vrot.slane %v520, 2
        %v875 = vsel %vm850, %v872, %v874
        %v876 = vrot.slane %v521, 2
        %v877 = vrot.slane %v522, 2
        %v878 = vsel %vm850, %v876, %v877
        %v879 = vrot.slane %v523, 2
        %v880 = vsel %vm850, %v877, %v879
        %v881 = vrot.slane %v524, 2
        %v882 = vrot.slane %v525, 2
        %v883 = vsel %vm850, %v881, %v882
        %v884 = vrot.slane %v526, 2
        %v885 = vsel %vm850, %v882, %v884
        %v886 = vrot.slane %v527, 2
        %v887 = vrot.slane %v528, 2
        %v888 = vsel %vm850, %v886, %v887
        %v889 = vrot.slane %v529, 2
        %v890 = vsel %vm850, %v887, %v889
        %v891 = vrot.slane %v530, 2
        %v892 = vrot.slane %v531, 2
        %v893 = vsel %vm850, %v891, %v892
        %v894 = vrot.slane %v532, 2
        %v895 = vsel %vm850, %v892, %v894
        %v896 = vrot.slane %v533, 2
        %v897 = vrot.slane %v534, 2
        %v898 = vsel %vm850, %v896, %v897
        %v899 = vrot.slane %v535, 2
        %v900 = vsel %vm850, %v897, %v899
        %v901 = vrot.slane %v536, 2
        %v902 = vrot.slane %v537, 2
        %v903 = vsel %vm850, %v901, %v902
        %v904 = vrot.slane %v538, 2
        %v905 = vsel %vm850, %v902, %v904
        %v906 = vrot.slane %v539, 2
        %v907 = vrot.slane %v540, 2
        %v908 = vsel %vm850, %v906, %v907
        %v909 = vrot.slane %v541, 2
        %v910 = vsel %vm850, %v907, %v909
        %v911 = vrot.slane %v542, 2
        %v912 = vrot.slane %v543, 2
        %v913 = vsel %vm850, %v911, %v912
        %v914 = vrot.slane %v544, 2
        %v915 = vsel %vm850, %v912, %v914
        %v916 = vrot.slane %v545, 2
        %v917 = vrot.slane %v546, 2
        %v918 = vsel %vm850, %v916, %v917
        %v919 = vrot.slane %v547, 2
        %v920 = vsel %vm850, %v917, %v919
        %v921 = vrot.slane %v548, 2
        %v922 = vrot.slane %v549, 2
        %v923 = vsel %vm850, %v921, %v922
        %v924 = vrot.slane %v550, 2
        %v925 = vsel %vm850, %v922, %v924
        %v926 = vrot.slane %v551, 2
        %v927 = vrot.slane %v552, 2
        %v928 = vsel %vm850, %v926, %v927
        %v929 = vrot.slane %v553, 2
        %v930 = vsel %vm850, %v927, %v929
        %931 = vrot.lane.b32.xlu0 %v853, 6
        %v932 = vpop.permute.xlu0 %931
        %933 = vrot.lane.b32.xlu0 %v855, 6
        %v934 = vpop.permute.xlu0 %933
        %935 = vrot.lane.b32.xlu0 %v858, 6
        %v936 = vpop.permute.xlu0 %935
        %937 = vrot.lane.b32.xlu0 %v860, 6
        %v938 = vpop.permute.xlu0 %937
        %939 = vrot.lane.b32.xlu0 %v863, 6
        %v940 = vpop.permute.xlu0 %939
        %941 = vrot.lane.b32.xlu0 %v865, 6
        %v942 = vpop.permute.xlu0 %941
        %943 = vrot.lane.b32.xlu0 %v868, 6
        %v944 = vpop.permute.xlu0 %943
        %945 = vrot.lane.b32.xlu0 %v870, 6
        %v946 = vpop.permute.xlu0 %945
        %947 = vrot.lane.b32.xlu0 %v873, 6
        %v948 = vpop.permute.xlu0 %947
        %949 = vrot.lane.b32.xlu0 %v875, 6
        %v950 = vpop.permute.xlu0 %949
        %951 = vrot.lane.b32.xlu0 %v878, 6
        %v952 = vpop.permute.xlu0 %951
        %953 = vrot.lane.b32.xlu0 %v880, 6
        %v954 = vpop.permute.xlu0 %953
        %955 = vrot.lane.b32.xlu0 %v883, 6
        %v956 = vpop.permute.xlu0 %955
        %957 = vrot.lane.b32.xlu0 %v885, 6
        %v958 = vpop.permute.xlu0 %957
        %959 = vrot.lane.b32.xlu0 %v888, 6
        %v960 = vpop.permute.xlu0 %959
        %961 = vrot.lane.b32.xlu0 %v890, 6
        %v962 = vpop.permute.xlu0 %961
        %963 = vrot.lane.b32.xlu0 %v893, 6
        %v964 = vpop.permute.xlu0 %963
        %965 = vrot.lane.b32.xlu0 %v895, 6
        %v966 = vpop.permute.xlu0 %965
        %967 = vrot.lane.b32.xlu0 %v898, 6
        %v968 = vpop.permute.xlu0 %967
        %969 = vrot.lane.b32.xlu0 %v900, 6
        %v970 = vpop.permute.xlu0 %969
        %971 = vrot.lane.b32.xlu0 %v903, 6
        %v972 = vpop.permute.xlu0 %971
        %973 = vrot.lane.b32.xlu0 %v905, 6
        %v974 = vpop.permute.xlu0 %973
        %975 = vrot.lane.b32.xlu0 %v908, 6
        %v976 = vpop.permute.xlu0 %975
        %977 = vrot.lane.b32.xlu0 %v910, 6
        %v978 = vpop.permute.xlu0 %977
        %979 = vrot.lane.b32.xlu0 %v913, 6
        %v980 = vpop.permute.xlu0 %979
        %981 = vrot.lane.b32.xlu0 %v915, 6
        %v982 = vpop.permute.xlu0 %981
        %983 = vrot.lane.b32.xlu0 %v918, 6
        %v984 = vpop.permute.xlu0 %983
        %985 = vrot.lane.b32.xlu0 %v920, 6
        %v986 = vpop.permute.xlu0 %985
        %987 = vrot.lane.b32.xlu0 %v923, 6
        %v988 = vpop.permute.xlu0 %987
        %989 = vrot.lane.b32.xlu0 %v925, 6
        %v990 = vpop.permute.xlu0 %989
        %991 = vrot.lane.b32.xlu0 %v928, 6
        %v992 = vpop.permute.xlu0 %991
        %993 = vrot.lane.b32.xlu0 %v930, 6
        %v994 = vpop.permute.xlu0 %993
        %vm1027 = vcmask 72752
        %1028 = vst.msk [vmem:[#allocation5] sm:$0xff] %vm1027, %v932
        %1029 = vst.msk [vmem:[#allocation5 + $0x8] sm:$0xff] %vm1027, %v934
        %1030 = vst.msk [vmem:[#allocation5 + $0x10] sm:$0xff] %vm1027, %v936
        %1031 = vst.msk [vmem:[#allocation5 + $0x18] sm:$0xff] %vm1027, %v938
        %1032 = vst.msk [vmem:[#allocation5 + $0x20] sm:$0xff] %vm1027, %v940
        %1033 = vst.msk [vmem:[#allocation5 + $0x28] sm:$0xff] %vm1027, %v942
        %1034 = vst.msk [vmem:[#allocation5 + $0x30] sm:$0xff] %vm1027, %v944
        %1035 = vst.msk [vmem:[#allocation5 + $0x38] sm:$0xff] %vm1027, %v946
        %1036 = vst.msk [vmem:[#allocation5 + $0x40] sm:$0xff] %vm1027, %v948
        %1037 = vst.msk [vmem:[#allocation5 + $0x48] sm:$0xff] %vm1027, %v950
        %1038 = vst.msk [vmem:[#allocation5 + $0x50] sm:$0xff] %vm1027, %v952
        %1039 = vst.msk [vmem:[#allocation5 + $0x58] sm:$0xff] %vm1027, %v954
        %1040 = vst.msk [vmem:[#allocation5 + $0x60] sm:$0xff] %vm1027, %v956
        %1041 = vst.msk [vmem:[#allocation5 + $0x68] sm:$0xff] %vm1027, %v958
        %1042 = vst.msk [vmem:[#allocation5 + $0x70] sm:$0xff] %vm1027, %v960
        %1043 = vst.msk [vmem:[#allocation5 + $0x78] sm:$0xff] %vm1027, %v962
        %1044 = vst.msk [vmem:[#allocation5 + $0x80] sm:$0xff] %vm1027, %v964
        %1045 = vst.msk [vmem:[#allocation5 + $0x88] sm:$0xff] %vm1027, %v966
        %1046 = vst.msk [vmem:[#allocation5 + $0x90] sm:$0xff] %vm1027, %v968
        %1047 = vst.msk [vmem:[#allocation5 + $0x98] sm:$0xff] %vm1027, %v970
        %1048 = vst.msk [vmem:[#allocation5 + $0xa0] sm:$0xff] %vm1027, %v972
        %1049 = vst.msk [vmem:[#allocation5 + $0xa8] sm:$0xff] %vm1027, %v974
        %1050 = vst.msk [vmem:[#allocation5 + $0xb0] sm:$0xff] %vm1027, %v976
        %1051 = vst.msk [vmem:[#allocation5 + $0xb8] sm:$0xff] %vm1027, %v978
        %1052 = vst.msk [vmem:[#allocation5 + $0xc0] sm:$0xff] %vm1027, %v980
        %1053 = vst.msk [vmem:[#allocation5 + $0xc8] sm:$0xff] %vm1027, %v982
        %1054 = vst.msk [vmem:[#allocation5 + $0xd0] sm:$0xff] %vm1027, %v984
        %1055 = vst.msk [vmem:[#allocation5 + $0xd8] sm:$0xff] %vm1027, %v986
        %1056 = vst.msk [vmem:[#allocation5 + $0xe0] sm:$0xff] %vm1027, %v988
        %1057 = vst.msk [vmem:[#allocation5 + $0xe8] sm:$0xff] %vm1027, %v990
        %1058 = vst.msk [vmem:[#allocation5 + $0xf0] sm:$0xff] %vm1027, %v992
        %1059 = vst.msk [vmem:[#allocation5 + $0xf8] sm:$0xff] %vm1027, %v994
        %1062 = vrot.lane.b32.xlu0 %v509, 9
        %v1063 = vpop.permute.xlu0 %1062
        %1064 = vrot.lane.b32.xlu0 %v510, 9
        %v1065 = vpop.permute.xlu0 %1064
        %1066 = vrot.lane.b32.xlu0 %v512, 9
        %v1067 = vpop.permute.xlu0 %1066
        %1068 = vrot.lane.b32.xlu0 %v513, 9
        %v1069 = vpop.permute.xlu0 %1068
        %1070 = vrot.lane.b32.xlu0 %v515, 9
        %v1071 = vpop.permute.xlu0 %1070
        %1072 = vrot.lane.b32.xlu0 %v516, 9
        %v1073 = vpop.permute.xlu0 %1072
        %1074 = vrot.lane.b32.xlu0 %v518, 9
        %v1075 = vpop.permute.xlu0 %1074
        %1076 = vrot.lane.b32.xlu0 %v519, 9
        %v1077 = vpop.permute.xlu0 %1076
        %1078 = vrot.lane.b32.xlu0 %v521, 9
        %v1079 = vpop.permute.xlu0 %1078
        %1080 = vrot.lane.b32.xlu0 %v522, 9
        %v1081 = vpop.permute.xlu0 %1080
        %1082 = vrot.lane.b32.xlu0 %v524, 9
        %v1083 = vpop.permute.xlu0 %1082
        %1084 = vrot.lane.b32.xlu0 %v525, 9
        %v1085 = vpop.permute.xlu0 %1084
        %1086 = vrot.lane.b32.xlu0 %v527, 9
        %v1087 = vpop.permute.xlu0 %1086
        %1088 = vrot.lane.b32.xlu0 %v528, 9
        %v1089 = vpop.permute.xlu0 %1088
        %1090 = vrot.lane.b32.xlu0 %v530, 9
        %v1091 = vpop.permute.xlu0 %1090
        %1092 = vrot.lane.b32.xlu0 %v531, 9
        %v1093 = vpop.permute.xlu0 %1092
        %1094 = vrot.lane.b32.xlu0 %v533, 9
        %v1095 = vpop.permute.xlu0 %1094
        %1096 = vrot.lane.b32.xlu0 %v534, 9
        %v1097 = vpop.permute.xlu0 %1096
        %1098 = vrot.lane.b32.xlu0 %v536, 9
        %v1099 = vpop.permute.xlu0 %1098
        %1100 = vrot.lane.b32.xlu0 %v537, 9
        %v1101 = vpop.permute.xlu0 %1100
        %1102 = vrot.lane.b32.xlu0 %v539, 9
        %v1103 = vpop.permute.xlu0 %1102
        %1104 = vrot.lane.b32.xlu0 %v540, 9
        %v1105 = vpop.permute.xlu0 %1104
        %1106 = vrot.lane.b32.xlu0 %v542, 9
        %v1107 = vpop.permute.xlu0 %1106
        %1108 = vrot.lane.b32.xlu0 %v543, 9
        %v1109 = vpop.permute.xlu0 %1108
        %1110 = vrot.lane.b32.xlu0 %v545, 9
        %v1111 = vpop.permute.xlu0 %1110
        %1112 = vrot.lane.b32.xlu0 %v546, 9
        %v1113 = vpop.permute.xlu0 %1112
        %1114 = vrot.lane.b32.xlu0 %v548, 9
        %v1115 = vpop.permute.xlu0 %1114
        %1116 = vrot.lane.b32.xlu0 %v549, 9
        %v1117 = vpop.permute.xlu0 %1116
        %1118 = vrot.lane.b32.xlu0 %v551, 9
        %v1119 = vpop.permute.xlu0 %1118
        %1120 = vrot.lane.b32.xlu0 %v552, 9
        %v1121 = vpop.permute.xlu0 %1120
        %1122 = vrot.lane.b32.xlu0 %v554, 9
        %v1123 = vpop.permute.xlu0 %1122
        %1124 = vrot.lane.b32.xlu0 %v555, 9
        %v1125 = vpop.permute.xlu0 %1124
        %vm1158 = vcmask 97352
        %1159 = vst.msk [vmem:[#allocation5] sm:$0xff] %vm1158, %v1063
        %1160 = vst.msk [vmem:[#allocation5 + $0x8] sm:$0xff] %vm1158, %v1065
        %1161 = vst.msk [vmem:[#allocation5 + $0x10] sm:$0xff] %vm1158, %v1067
        %1162 = vst.msk [vmem:[#allocation5 + $0x18] sm:$0xff] %vm1158, %v1069
        %1163 = vst.msk [vmem:[#allocation5 + $0x20] sm:$0xff] %vm1158, %v1071
        %1164 = vst.msk [vmem:[#allocation5 + $0x28] sm:$0xff] %vm1158, %v1073
        %1165 = vst.msk [vmem:[#allocation5 + $0x30] sm:$0xff] %vm1158, %v1075
        %1166 = vst.msk [vmem:[#allocation5 + $0x38] sm:$0xff] %vm1158, %v1077
        %1167 = vst.msk [vmem:[#allocation5 + $0x40] sm:$0xff] %vm1158, %v1079
        %1168 = vst.msk [vmem:[#allocation5 + $0x48] sm:$0xff] %vm1158, %v1081
        %1169 = vst.msk [vmem:[#allocation5 + $0x50] sm:$0xff] %vm1158, %v1083
        %1170 = vst.msk [vmem:[#allocation5 + $0x58] sm:$0xff] %vm1158, %v1085
        %1171 = vst.msk [vmem:[#allocation5 + $0x60] sm:$0xff] %vm1158, %v1087
        %1172 = vst.msk [vmem:[#allocation5 + $0x68] sm:$0xff] %vm1158, %v1089
        %1173 = vst.msk [vmem:[#allocation5 + $0x70] sm:$0xff] %vm1158, %v1091
        %1174 = vst.msk [vmem:[#allocation5 + $0x78] sm:$0xff] %vm1158, %v1093
        %1175 = vst.msk [vmem:[#allocation5 + $0x80] sm:$0xff] %vm1158, %v1095
        %1176 = vst.msk [vmem:[#allocation5 + $0x88] sm:$0xff] %vm1158, %v1097
        %1177 = vst.msk [vmem:[#allocation5 + $0x90] sm:$0xff] %vm1158, %v1099
        %1178 = vst.msk [vmem:[#allocation5 + $0x98] sm:$0xff] %vm1158, %v1101
        %1179 = vst.msk [vmem:[#allocation5 + $0xa0] sm:$0xff] %vm1158, %v1103
        %1180 = vst.msk [vmem:[#allocation5 + $0xa8] sm:$0xff] %vm1158, %v1105
        %1181 = vst.msk [vmem:[#allocation5 + $0xb0] sm:$0xff] %vm1158, %v1107
        %1182 = vst.msk [vmem:[#allocation5 + $0xb8] sm:$0xff] %vm1158, %v1109
        %1183 = vst.msk [vmem:[#allocation5 + $0xc0] sm:$0xff] %vm1158, %v1111
        %1184 = vst.msk [vmem:[#allocation5 + $0xc8] sm:$0xff] %vm1158, %v1113
        %1185 = vst.msk [vmem:[#allocation5 + $0xd0] sm:$0xff] %vm1158, %v1115
        %1186 = vst.msk [vmem:[#allocation5 + $0xd8] sm:$0xff] %vm1158, %v1117
        %1187 = vst.msk [vmem:[#allocation5 + $0xe0] sm:$0xff] %vm1158, %v1119
        %1188 = vst.msk [vmem:[#allocation5 + $0xe8] sm:$0xff] %vm1158, %v1121
        %1189 = vst.msk [vmem:[#allocation5 + $0xf0] sm:$0xff] %vm1158, %v1123
        %1190 = vst.msk [vmem:[#allocation5 + $0xf8] sm:$0xff] %vm1158, %v1125
        %v1192 = vrot.slane %v554, 1
        %v1193 = vrot.slane %v555, 1
        %v1194 = vsel %vm640, %v1192, %v1193
        %v1195 = vrot.slane %v556, 1
        %v1196 = vsel %vm640, %v1193, %v1195
        %1197 = vrot.lane.b32.xlu0 %v648, 12
        %v1198 = vpop.permute.xlu0 %1197
        %1199 = vrot.lane.b32.xlu0 %v650, 12
        %v1200 = vpop.permute.xlu0 %1199
        %1201 = vrot.lane.b32.xlu0 %v653, 12
        %v1202 = vpop.permute.xlu0 %1201
        %1203 = vrot.lane.b32.xlu0 %v655, 12
        %v1204 = vpop.permute.xlu0 %1203
        %1205 = vrot.lane.b32.xlu0 %v658, 12
        %v1206 = vpop.permute.xlu0 %1205
        %1207 = vrot.lane.b32.xlu0 %v660, 12
        %v1208 = vpop.permute.xlu0 %1207
        %1209 = vrot.lane.b32.xlu0 %v663, 12
        %v1210 = vpop.permute.xlu0 %1209
        %1211 = vrot.lane.b32.xlu0 %v665, 12
        %v1212 = vpop.permute.xlu0 %1211
        %1213 = vrot.lane.b32.xlu0 %v668, 12
        %v1214 = vpop.permute.xlu0 %1213
        %1215 = vrot.lane.b32.xlu0 %v670, 12
        %v1216 = vpop.permute.xlu0 %1215
        %1217 = vrot.lane.b32.xlu0 %v673, 12
        %v1218 = vpop.permute.xlu0 %1217
        %1219 = vrot.lane.b32.xlu0 %v675, 12
        %v1220 = vpop.permute.xlu0 %1219
        %1221 = vrot.lane.b32.xlu0 %v678, 12
        %v1222 = vpop.permute.xlu0 %1221
        %1223 = vrot.lane.b32.xlu0 %v680, 12
        %v1224 = vpop.permute.xlu0 %1223
        %1225 = vrot.lane.b32.xlu0 %v683, 12
        %v1226 = vpop.permute.xlu0 %1225
        %1227 = vrot.lane.b32.xlu0 %v685, 12
        %v1228 = vpop.permute.xlu0 %1227
        %1229 = vrot.lane.b32.xlu0 %v688, 12
        %v1230 = vpop.permute.xlu0 %1229
        %1231 = vrot.lane.b32.xlu0 %v690, 12
        %v1232 = vpop.permute.xlu0 %1231
        %1233 = vrot.lane.b32.xlu0 %v693, 12
        %v1234 = vpop.permute.xlu0 %1233
        %1235 = vrot.lane.b32.xlu0 %v695, 12
        %v1236 = vpop.permute.xlu0 %1235
        %1237 = vrot.lane.b32.xlu0 %v698, 12
        %v1238 = vpop.permute.xlu0 %1237
        %1239 = vrot.lane.b32.xlu0 %v700, 12
        %v1240 = vpop.permute.xlu0 %1239
        %1241 = vrot.lane.b32.xlu0 %v703, 12
        %v1242 = vpop.permute.xlu0 %1241
        %1243 = vrot.lane.b32.xlu0 %v705, 12
        %v1244 = vpop.permute.xlu0 %1243
        %1245 = vrot.lane.b32.xlu0 %v708, 12
        %v1246 = vpop.permute.xlu0 %1245
        %1247 = vrot.lane.b32.xlu0 %v710, 12
        %v1248 = vpop.permute.xlu0 %1247
        %1249 = vrot.lane.b32.xlu0 %v713, 12
        %v1250 = vpop.permute.xlu0 %1249
        %1251 = vrot.lane.b32.xlu0 %v715, 12
        %v1252 = vpop.permute.xlu0 %1251
        %1253 = vrot.lane.b32.xlu0 %v718, 12
        %v1254 = vpop.permute.xlu0 %1253
        %1255 = vrot.lane.b32.xlu0 %v720, 12
        %v1256 = vpop.permute.xlu0 %1255
        %1257 = vrot.lane.b32.xlu0 %v1194, 12
        %v1258 = vpop.permute.xlu0 %1257
        %1259 = vrot.lane.b32.xlu0 %v1196, 12
        %v1260 = vpop.permute.xlu0 %1259
        %vm1293 = vcmask 121952
        %1294 = vst.msk [vmem:[#allocation5] sm:$0xff] %vm1293, %v1198
        %1295 = vst.msk [vmem:[#allocation5 + $0x8] sm:$0xff] %vm1293, %v1200
        %1296 = vst.msk [vmem:[#allocation5 + $0x10] sm:$0xff] %vm1293, %v1202
        %1297 = vst.msk [vmem:[#allocation5 + $0x18] sm:$0xff] %vm1293, %v1204
        %1298 = vst.msk [vmem:[#allocation5 + $0x20] sm:$0xff] %vm1293, %v1206
        %1299 = vst.msk [vmem:[#allocation5 + $0x28] sm:$0xff] %vm1293, %v1208
        %1300 = vst.msk [vmem:[#allocation5 + $0x30] sm:$0xff] %vm1293, %v1210
        %1301 = vst.msk [vmem:[#allocation5 + $0x38] sm:$0xff] %vm1293, %v1212
        %1302 = vst.msk [vmem:[#allocation5 + $0x40] sm:$0xff] %vm1293, %v1214
        %1303 = vst.msk [vmem:[#allocation5 + $0x48] sm:$0xff] %vm1293, %v1216
        %1304 = vst.msk [vmem:[#allocation5 + $0x50] sm:$0xff] %vm1293, %v1218
        %1305 = vst.msk [vmem:[#allocation5 + $0x58] sm:$0xff] %vm1293, %v1220
        %1306 = vst.msk [vmem:[#allocation5 + $0x60] sm:$0xff] %vm1293, %v1222
        %1307 = vst.msk [vmem:[#allocation5 + $0x68] sm:$0xff] %vm1293, %v1224
        %1308 = vst.msk [vmem:[#allocation5 + $0x70] sm:$0xff] %vm1293, %v1226
        %1309 = vst.msk [vmem:[#allocation5 + $0x78] sm:$0xff] %vm1293, %v1228
        %1310 = vst.msk [vmem:[#allocation5 + $0x80] sm:$0xff] %vm1293, %v1230
        %1311 = vst.msk [vmem:[#allocation5 + $0x88] sm:$0xff] %vm1293, %v1232
        %1312 = vst.msk [vmem:[#allocation5 + $0x90] sm:$0xff] %vm1293, %v1234
        %1313 = vst.msk [vmem:[#allocation5 + $0x98] sm:$0xff] %vm1293, %v1236
        %1314 = vst.msk [vmem:[#allocation5 + $0xa0] sm:$0xff] %vm1293, %v1238
        %1315 = vst.msk [vmem:[#allocation5 + $0xa8] sm:$0xff] %vm1293, %v1240
        %1316 = vst.msk [vmem:[#allocation5 + $0xb0] sm:$0xff] %vm1293, %v1242
        %1317 = vst.msk [vmem:[#allocation5 + $0xb8] sm:$0xff] %vm1293, %v1244
        %1318 = vst.msk [vmem:[#allocation5 + $0xc0] sm:$0xff] %vm1293, %v1246
        %1319 = vst.msk [vmem:[#allocation5 + $0xc8] sm:$0xff] %vm1293, %v1248
        %1320 = vst.msk [vmem:[#allocation5 + $0xd0] sm:$0xff] %vm1293, %v1250
        %1321 = vst.msk [vmem:[#allocation5 + $0xd8] sm:$0xff] %vm1293, %v1252
        %1322 = vst.msk [vmem:[#allocation5 + $0xe0] sm:$0xff] %vm1293, %v1254
        %1323 = vst.msk [vmem:[#allocation5 + $0xe8] sm:$0xff] %vm1293, %v1256
        %1324 = vst.msk [vmem:[#allocation5 + $0xf0] sm:$0xff] %vm1293, %v1258
        %1325 = vst.msk [vmem:[#allocation5 + $0xf8] sm:$0xff] %vm1293, %v1260
        %v1326 = vrot.slane %v554, 2
        %v1327 = vrot.slane %v555, 2
        %v1328 = vsel %vm850, %v1326, %v1327
        %v1329 = vrot.slane %v556, 2
        %v1330 = vsel %vm850, %v1327, %v1329
        %1331 = vrot.lane.b32.xlu0 %v858, 15
        %v1332 = vpop.permute.xlu0 %1331
        %1333 = vrot.lane.b32.xlu0 %v860, 15
        %v1334 = vpop.permute.xlu0 %1333
        %1335 = vrot.lane.b32.xlu0 %v863, 15
        %v1336 = vpop.permute.xlu0 %1335
        %1337 = vrot.lane.b32.xlu0 %v865, 15
        %v1338 = vpop.permute.xlu0 %1337
        %1339 = vrot.lane.b32.xlu0 %v868, 15
        %v1340 = vpop.permute.xlu0 %1339
        %1341 = vrot.lane.b32.xlu0 %v870, 15
        %v1342 = vpop.permute.xlu0 %1341
        %1343 = vrot.lane.b32.xlu0 %v873, 15
        %v1344 = vpop.permute.xlu0 %1343
        %1345 = vrot.lane.b32.xlu0 %v875, 15
        %v1346 = vpop.permute.xlu0 %1345
        %1347 = vrot.lane.b32.xlu0 %v878, 15
        %v1348 = vpop.permute.xlu0 %1347
        %1349 = vrot.lane.b32.xlu0 %v880, 15
        %v1350 = vpop.permute.xlu0 %1349
        %1351 = vrot.lane.b32.xlu0 %v883, 15
        %v1352 = vpop.permute.xlu0 %1351
        %1353 = vrot.lane.b32.xlu0 %v885, 15
        %v1354 = vpop.permute.xlu0 %1353
        %1355 = vrot.lane.b32.xlu0 %v888, 15
        %v1356 = vpop.permute.xlu0 %1355
        %1357 = vrot.lane.b32.xlu0 %v890, 15
        %v1358 = vpop.permute.xlu0 %1357
        %1359 = vrot.lane.b32.xlu0 %v893, 15
        %v1360 = vpop.permute.xlu0 %1359
        %1361 = vrot.lane.b32.xlu0 %v895, 15
        %v1362 = vpop.permute.xlu0 %1361
        %1363 = vrot.lane.b32.xlu0 %v898, 15
        %v1364 = vpop.permute.xlu0 %1363
        %1365 = vrot.lane.b32.xlu0 %v900, 15
        %v1366 = vpop.permute.xlu0 %1365
        %1367 = vrot.lane.b32.xlu0 %v903, 15
        %v1368 = vpop.permute.xlu0 %1367
        %1369 = vrot.lane.b32.xlu0 %v905, 15
        %v1370 = vpop.permute.xlu0 %1369
        %1371 = vrot.lane.b32.xlu0 %v908, 15
        %v1372 = vpop.permute.xlu0 %1371
        %1373 = vrot.lane.b32.xlu0 %v910, 15
        %v1374 = vpop.permute.xlu0 %1373
        %1375 = vrot.lane.b32.xlu0 %v913, 15
        %v1376 = vpop.permute.xlu0 %1375
        %1377 = vrot.lane.b32.xlu0 %v915, 15
        %v1378 = vpop.permute.xlu0 %1377
        %1379 = vrot.lane.b32.xlu0 %v918, 15
        %v1380 = vpop.permute.xlu0 %1379
        %1381 = vrot.lane.b32.xlu0 %v920, 15
        %v1382 = vpop.permute.xlu0 %1381
        %1383 = vrot.lane.b32.xlu0 %v923, 15
        %v1384 = vpop.permute.xlu0 %1383
        %1385 = vrot.lane.b32.xlu0 %v925, 15
        %v1386 = vpop.permute.xlu0 %1385
        %1387 = vrot.lane.b32.xlu0 %v928, 15
        %v1388 = vpop.permute.xlu0 %1387
        %1389 = vrot.lane.b32.xlu0 %v930, 15
        %v1390 = vpop.permute.xlu0 %1389
        %1391 = vrot.lane.b32.xlu0 %v1328, 15
        %v1392 = vpop.permute.xlu0 %1391
        %1393 = vrot.lane.b32.xlu0 %v1330, 15
        %v1394 = vpop.permute.xlu0 %1393
        %vm1427 = vcmask 146552
        %1428 = vst.msk [vmem:[#allocation5] sm:$0xff] %vm1427, %v1332
        %1429 = vst.msk [vmem:[#allocation5 + $0x8] sm:$0xff] %vm1427, %v1334
        %1430 = vst.msk [vmem:[#allocation5 + $0x10] sm:$0xff] %vm1427, %v1336
        %1431 = vst.msk [vmem:[#allocation5 + $0x18] sm:$0xff] %vm1427, %v1338
        %1432 = vst.msk [vmem:[#allocation5 + $0x20] sm:$0xff] %vm1427, %v1340
        %1433 = vst.msk [vmem:[#allocation5 + $0x28] sm:$0xff] %vm1427, %v1342
        %1434 = vst.msk [vmem:[#allocation5 + $0x30] sm:$0xff] %vm1427, %v1344
        %1435 = vst.msk [vmem:[#allocation5 + $0x38] sm:$0xff] %vm1427, %v1346
        %1436 = vst.msk [vmem:[#allocation5 + $0x40] sm:$0xff] %vm1427, %v1348
        %1437 = vst.msk [vmem:[#allocation5 + $0x48] sm:$0xff] %vm1427, %v1350
        %1438 = vst.msk [vmem:[#allocation5 + $0x50] sm:$0xff] %vm1427, %v1352
        %1439 = vst.msk [vmem:[#allocation5 + $0x58] sm:$0xff] %vm1427, %v1354
        %1440 = vst.msk [vmem:[#allocation5 + $0x60] sm:$0xff] %vm1427, %v1356
        %1441 = vst.msk [vmem:[#allocation5 + $0x68] sm:$0xff] %vm1427, %v1358
        %1442 = vst.msk [vmem:[#allocation5 + $0x70] sm:$0xff] %vm1427, %v1360
        %1443 = vst.msk [vmem:[#allocation5 + $0x78] sm:$0xff] %vm1427, %v1362
        %1444 = vst.msk [vmem:[#allocation5 + $0x80] sm:$0xff] %vm1427, %v1364
        %1445 = vst.msk [vmem:[#allocation5 + $0x88] sm:$0xff] %vm1427, %v1366
        %1446 = vst.msk [vmem:[#allocation5 + $0x90] sm:$0xff] %vm1427, %v1368
        %1447 = vst.msk [vmem:[#allocation5 + $0x98] sm:$0xff] %vm1427, %v1370
        %1448 = vst.msk [vmem:[#allocation5 + $0xa0] sm:$0xff] %vm1427, %v1372
        %1449 = vst.msk [vmem:[#allocation5 + $0xa8] sm:$0xff] %vm1427, %v1374
        %1450 = vst.msk [vmem:[#allocation5 + $0xb0] sm:$0xff] %vm1427, %v1376
        %1451 = vst.msk [vmem:[#allocation5 + $0xb8] sm:$0xff] %vm1427, %v1378
        %1452 = vst.msk [vmem:[#allocation5 + $0xc0] sm:$0xff] %vm1427, %v1380
        %1453 = vst.msk [vmem:[#allocation5 + $0xc8] sm:$0xff] %vm1427, %v1382
        %1454 = vst.msk [vmem:[#allocation5 + $0xd0] sm:$0xff] %vm1427, %v1384
        %1455 = vst.msk [vmem:[#allocation5 + $0xd8] sm:$0xff] %vm1427, %v1386
        %1456 = vst.msk [vmem:[#allocation5 + $0xe0] sm:$0xff] %vm1427, %v1388
        %1457 = vst.msk [vmem:[#allocation5 + $0xe8] sm:$0xff] %vm1427, %v1390
        %1458 = vst.msk [vmem:[#allocation5 + $0xf0] sm:$0xff] %vm1427, %v1392
        %1459 = vst.msk [vmem:[#allocation5 + $0xf8] sm:$0xff] %vm1427, %v1394
        %1462 = vrot.lane.b32.xlu0 %v512, 18
        %v1463 = vpop.permute.xlu0 %1462
        %1464 = vrot.lane.b32.xlu0 %v513, 18
        %v1465 = vpop.permute.xlu0 %1464
        %1466 = vrot.lane.b32.xlu0 %v515, 18
        %v1467 = vpop.permute.xlu0 %1466
        %1468 = vrot.lane.b32.xlu0 %v516, 18
        %v1469 = vpop.permute.xlu0 %1468
        %1470 = vrot.lane.b32.xlu0 %v518, 18
        %v1471 = vpop.permute.xlu0 %1470
        %1472 = vrot.lane.b32.xlu0 %v519, 18
        %v1473 = vpop.permute.xlu0 %1472
        %1474 = vrot.lane.b32.xlu0 %v521, 18
        %v1475 = vpop.permute.xlu0 %1474
        %1476 = vrot.lane.b32.xlu0 %v522, 18
        %v1477 = vpop.permute.xlu0 %1476
        %1478 = vrot.lane.b32.xlu0 %v524, 18
        %v1479 = vpop.permute.xlu0 %1478
        %1480 = vrot.lane.b32.xlu0 %v525, 18
        %v1481 = vpop.permute.xlu0 %1480
        %1482 = vrot.lane.b32.xlu0 %v527, 18
        %v1483 = vpop.permute.xlu0 %1482
        %1484 = vrot.lane.b32.xlu0 %v528, 18
        %v1485 = vpop.permute.xlu0 %1484
        %1486 = vrot.lane.b32.xlu0 %v530, 18
        %v1487 = vpop.permute.xlu0 %1486
        %1488 = vrot.lane.b32.xlu0 %v531, 18
        %v1489 = vpop.permute.xlu0 %1488
        %1490 = vrot.lane.b32.xlu0 %v533, 18
        %v1491 = vpop.permute.xlu0 %1490
        %1492 = vrot.lane.b32.xlu0 %v534, 18
        %v1493 = vpop.permute.xlu0 %1492
        %1494 = vrot.lane.b32.xlu0 %v536, 18
        %v1495 = vpop.permute.xlu0 %1494
        %1496 = vrot.lane.b32.xlu0 %v537, 18
        %v1497 = vpop.permute.xlu0 %1496
        %1498 = vrot.lane.b32.xlu0 %v539, 18
        %v1499 = vpop.permute.xlu0 %1498
        %1500 = vrot.lane.b32.xlu0 %v540, 18
        %v1501 = vpop.permute.xlu0 %1500
        %1502 = vrot.lane.b32.xlu0 %v542, 18
        %v1503 = vpop.permute.xlu0 %1502
        %1504 = vrot.lane.b32.xlu0 %v543, 18
        %v1505 = vpop.permute.xlu0 %1504
        %1506 = vrot.lane.b32.xlu0 %v545, 18
        %v1507 = vpop.permute.xlu0 %1506
        %1508 = vrot.lane.b32.xlu0 %v546, 18
        %v1509 = vpop.permute.xlu0 %1508
        %1510 = vrot.lane.b32.xlu0 %v548, 18
        %v1511 = vpop.permute.xlu0 %1510
        %1512 = vrot.lane.b32.xlu0 %v549, 18
        %v1513 = vpop.permute.xlu0 %1512
        %1514 = vrot.lane.b32.xlu0 %v551, 18
        %v1515 = vpop.permute.xlu0 %1514
        %1516 = vrot.lane.b32.xlu0 %v552, 18
        %v1517 = vpop.permute.xlu0 %1516
        %1518 = vrot.lane.b32.xlu0 %v554, 18
        %v1519 = vpop.permute.xlu0 %1518
        %1520 = vrot.lane.b32.xlu0 %v555, 18
        %v1521 = vpop.permute.xlu0 %1520
        %1522 = vrot.lane.b32.xlu0 %v557, 18
        %v1523 = vpop.permute.xlu0 %1522
        %1524 = vrot.lane.b32.xlu0 %v558, 18
        %v1525 = vpop.permute.xlu0 %1524
        %vm1558 = vcmask 171152
        %1559 = vst.msk [vmem:[#allocation5] sm:$0xff] %vm1558, %v1463
        %1560 = vst.msk [vmem:[#allocation5 + $0x8] sm:$0xff] %vm1558, %v1465
        %1561 = vst.msk [vmem:[#allocation5 + $0x10] sm:$0xff] %vm1558, %v1467
        %1562 = vst.msk [vmem:[#allocation5 + $0x18] sm:$0xff] %vm1558, %v1469
        %1563 = vst.msk [vmem:[#allocation5 + $0x20] sm:$0xff] %vm1558, %v1471
        %1564 = vst.msk [vmem:[#allocation5 + $0x28] sm:$0xff] %vm1558, %v1473
        %1565 = vst.msk [vmem:[#allocation5 + $0x30] sm:$0xff] %vm1558, %v1475
        %1566 = vst.msk [vmem:[#allocation5 + $0x38] sm:$0xff] %vm1558, %v1477
        %1567 = vst.msk [vmem:[#allocation5 + $0x40] sm:$0xff] %vm1558, %v1479
        %1568 = vst.msk [vmem:[#allocation5 + $0x48] sm:$0xff] %vm1558, %v1481
        %1569 = vst.msk [vmem:[#allocation5 + $0x50] sm:$0xff] %vm1558, %v1483
        %1570 = vst.msk [vmem:[#allocation5 + $0x58] sm:$0xff] %vm1558, %v1485
        %1571 = vst.msk [vmem:[#allocation5 + $0x60] sm:$0xff] %vm1558, %v1487
        %1572 = vst.msk [vmem:[#allocation5 + $0x68] sm:$0xff] %vm1558, %v1489
        %1573 = vst.msk [vmem:[#allocation5 + $0x70] sm:$0xff] %vm1558, %v1491
        %1574 = vst.msk [vmem:[#allocation5 + $0x78] sm:$0xff] %vm1558, %v1493
        %1575 = vst.msk [vmem:[#allocation5 + $0x80] sm:$0xff] %vm1558, %v1495
        %1576 = vst.msk [vmem:[#allocation5 + $0x88] sm:$0xff] %vm1558, %v1497
        %1577 = vst.msk [vmem:[#allocation5 + $0x90] sm:$0xff] %vm1558, %v1499
        %1578 = vst.msk [vmem:[#allocation5 + $0x98] sm:$0xff] %vm1558, %v1501
        %1579 = vst.msk [vmem:[#allocation5 + $0xa0] sm:$0xff] %vm1558, %v1503
        %1580 = vst.msk [vmem:[#allocation5 + $0xa8] sm:$0xff] %vm1558, %v1505
        %1581 = vst.msk [vmem:[#allocation5 + $0xb0] sm:$0xff] %vm1558, %v1507
        %1582 = vst.msk [vmem:[#allocation5 + $0xb8] sm:$0xff] %vm1558, %v1509
        %1583 = vst.msk [vmem:[#allocation5 + $0xc0] sm:$0xff] %vm1558, %v1511
        %1584 = vst.msk [vmem:[#allocation5 + $0xc8] sm:$0xff] %vm1558, %v1513
        %1585 = vst.msk [vmem:[#allocation5 + $0xd0] sm:$0xff] %vm1558, %v1515
        %1586 = vst.msk [vmem:[#allocation5 + $0xd8] sm:$0xff] %vm1558, %v1517
        %1587 = vst.msk [vmem:[#allocation5 + $0xe0] sm:$0xff] %vm1558, %v1519
        %1588 = vst.msk [vmem:[#allocation5 + $0xe8] sm:$0xff] %vm1558, %v1521
        %1589 = vst.msk [vmem:[#allocation5 + $0xf0] sm:$0xff] %vm1558, %v1523
        %1590 = vst.msk [vmem:[#allocation5 + $0xf8] sm:$0xff] %vm1558, %v1525
        %v1592 = vrot.slane %v557, 1
        %v1593 = vrot.slane %v558, 1
        %v1594 = vsel %vm640, %v1592, %v1593
        %v1595 = vrot.slane %v559, 1
        %v1596 = vsel %vm640, %v1593, %v1595
        %1597 = vrot.lane.b32.xlu0 %v653, 21
        %v1598 = vpop.permute.xlu0 %1597
        %1599 = vrot.lane.b32.xlu0 %v655, 21
        %v1600 = vpop.permute.xlu0 %1599
        %1601 = vrot.lane.b32.xlu0 %v658, 21
        %v1602 = vpop.permute.xlu0 %1601
        %1603 = vrot.lane.b32.xlu0 %v660, 21
        %v1604 = vpop.permute.xlu0 %1603
        %1605 = vrot.lane.b32.xlu0 %v663, 21
        %v1606 = vpop.permute.xlu0 %1605
        %1607 = vrot.lane.b32.xlu0 %v665, 21
        %v1608 = vpop.permute.xlu0 %1607
        %1609 = vrot.lane.b32.xlu0 %v668, 21
        %v1610 = vpop.permute.xlu0 %1609
        %1611 = vrot.lane.b32.xlu0 %v670, 21
        %v1612 = vpop.permute.xlu0 %1611
        %1613 = vrot.lane.b32.xlu0 %v673, 21
        %v1614 = vpop.permute.xlu0 %1613
        %1615 = vrot.lane.b32.xlu0 %v675, 21
        %v1616 = vpop.permute.xlu0 %1615
        %1617 = vrot.lane.b32.xlu0 %v678, 21
        %v1618 = vpop.permute.xlu0 %1617
        %1619 = vrot.lane.b32.xlu0 %v680, 21
        %v1620 = vpop.permute.xlu0 %1619
        %1621 = vrot.lane.b32.xlu0 %v683, 21
        %v1622 = vpop.permute.xlu0 %1621
        %1623 = vrot.lane.b32.xlu0 %v685, 21
        %v1624 = vpop.permute.xlu0 %1623
        %1625 = vrot.lane.b32.xlu0 %v688, 21
        %v1626 = vpop.permute.xlu0 %1625
        %1627 = vrot.lane.b32.xlu0 %v690, 21
        %v1628 = vpop.permute.xlu0 %1627
        %1629 = vrot.lane.b32.xlu0 %v693, 21
        %v1630 = vpop.permute.xlu0 %1629
        %1631 = vrot.lane.b32.xlu0 %v695, 21
        %v1632 = vpop.permute.xlu0 %1631
        %1633 = vrot.lane.b32.xlu0 %v698, 21
        %v1634 = vpop.permute.xlu0 %1633
        %1635 = vrot.lane.b32.xlu0 %v700, 21
        %v1636 = vpop.permute.xlu0 %1635
        %1637 = vrot.lane.b32.xlu0 %v703, 21
        %v1638 = vpop.permute.xlu0 %1637
        %1639 = vrot.lane.b32.xlu0 %v705, 21
        %v1640 = vpop.permute.xlu0 %1639
        %1641 = vrot.lane.b32.xlu0 %v708, 21
        %v1642 = vpop.permute.xlu0 %1641
        %1643 = vrot.lane.b32.xlu0 %v710, 21
        %v1644 = vpop.permute.xlu0 %1643
        %1645 = vrot.lane.b32.xlu0 %v713, 21
        %v1646 = vpop.permute.xlu0 %1645
        %1647 = vrot.lane.b32.xlu0 %v715, 21
        %v1648 = vpop.permute.xlu0 %1647
        %1649 = vrot.lane.b32.xlu0 %v718, 21
        %v1650 = vpop.permute.xlu0 %1649
        %1651 = vrot.lane.b32.xlu0 %v720, 21
        %v1652 = vpop.permute.xlu0 %1651
        %1653 = vrot.lane.b32.xlu0 %v1194, 21
        %v1654 = vpop.permute.xlu0 %1653
        %1655 = vrot.lane.b32.xlu0 %v1196, 21
        %v1656 = vpop.permute.xlu0 %1655
        %1657 = vrot.lane.b32.xlu0 %v1594, 21
        %v1658 = vpop.permute.xlu0 %1657
        %1659 = vrot.lane.b32.xlu0 %v1596, 21
        %v1660 = vpop.permute.xlu0 %1659
        %vm1693 = vcmask 195752
        %1694 = vst.msk [vmem:[#allocation5] sm:$0xff] %vm1693, %v1598
        %1695 = vst.msk [vmem:[#allocation5 + $0x8] sm:$0xff] %vm1693, %v1600
        %1696 = vst.msk [vmem:[#allocation5 + $0x10] sm:$0xff] %vm1693, %v1602
        %1697 = vst.msk [vmem:[#allocation5 + $0x18] sm:$0xff] %vm1693, %v1604
        %1698 = vst.msk [vmem:[#allocation5 + $0x20] sm:$0xff] %vm1693, %v1606
        %1699 = vst.msk [vmem:[#allocation5 + $0x28] sm:$0xff] %vm1693, %v1608
        %1700 = vst.msk [vmem:[#allocation5 + $0x30] sm:$0xff] %vm1693, %v1610
        %1701 = vst.msk [vmem:[#allocation5 + $0x38] sm:$0xff] %vm1693, %v1612
        %1702 = vst.msk [vmem:[#allocation5 + $0x40] sm:$0xff] %vm1693, %v1614
        %1703 = vst.msk [vmem:[#allocation5 + $0x48] sm:$0xff] %vm1693, %v1616
        %1704 = vst.msk [vmem:[#allocation5 + $0x50] sm:$0xff] %vm1693, %v1618
        %1705 = vst.msk [vmem:[#allocation5 + $0x58] sm:$0xff] %vm1693, %v1620
        %1706 = vst.msk [vmem:[#allocation5 + $0x60] sm:$0xff] %vm1693, %v1622
        %1707 = vst.msk [vmem:[#allocation5 + $0x68] sm:$0xff] %vm1693, %v1624
        %1708 = vst.msk [vmem:[#allocation5 + $0x70] sm:$0xff] %vm1693, %v1626
        %1709 = vst.msk [vmem:[#allocation5 + $0x78] sm:$0xff] %vm1693, %v1628
        %1710 = vst.msk [vmem:[#allocation5 + $0x80] sm:$0xff] %vm1693, %v1630
        %1711 = vst.msk [vmem:[#allocation5 + $0x88] sm:$0xff] %vm1693, %v1632
        %1712 = vst.msk [vmem:[#allocation5 + $0x90] sm:$0xff] %vm1693, %v1634
        %1713 = vst.msk [vmem:[#allocation5 + $0x98] sm:$0xff] %vm1693, %v1636
        %1714 = vst.msk [vmem:[#allocation5 + $0xa0] sm:$0xff] %vm1693, %v1638
        %1715 = vst.msk [vmem:[#allocation5 + $0xa8] sm:$0xff] %vm1693, %v1640
        %1716 = vst.msk [vmem:[#allocation5 + $0xb0] sm:$0xff] %vm1693, %v1642
        %1717 = vst.msk [vmem:[#allocation5 + $0xb8] sm:$0xff] %vm1693, %v1644
        %1718 = vst.msk [vmem:[#allocation5 + $0xc0] sm:$0xff] %vm1693, %v1646
        %1719 = vst.msk [vmem:[#allocation5 + $0xc8] sm:$0xff] %vm1693, %v1648
        %1720 = vst.msk [vmem:[#allocation5 + $0xd0] sm:$0xff] %vm1693, %v1650
        %1721 = vst.msk [vmem:[#allocation5 + $0xd8] sm:$0xff] %vm1693, %v1652
        %1722 = vst.msk [vmem:[#allocation5 + $0xe0] sm:$0xff] %vm1693, %v1654
        %1723 = vst.msk [vmem:[#allocation5 + $0xe8] sm:$0xff] %vm1693, %v1656
        %1724 = vst.msk [vmem:[#allocation5 + $0xf0] sm:$0xff] %vm1693, %v1658
        %1725 = vst.msk [vmem:[#allocation5 + $0xf8] sm:$0xff] %vm1693, %v1660
        %v1726 = vrot.slane %v557, 2
        %v1727 = vrot.slane %v558, 2
        %v1728 = vsel %vm850, %v1726, %v1727
        %v1729 = vrot.slane %v559, 2
        %v1730 = vsel %vm850, %v1727, %v1729
        %1731 = vrot.lane.b32.xlu0 %v863, 24
        %v1732 = vpop.permute.xlu0 %1731
        %1733 = vrot.lane.b32.xlu0 %v865, 24
        %v1734 = vpop.permute.xlu0 %1733
        %1735 = vrot.lane.b32.xlu0 %v868, 24
        %v1736 = vpop.permute.xlu0 %1735
        %1737 = vrot.lane.b32.xlu0 %v870, 24
        %v1738 = vpop.permute.xlu0 %1737
        %1739 = vrot.lane.b32.xlu0 %v873, 24
        %v1740 = vpop.permute.xlu0 %1739
        %1741 = vrot.lane.b32.xlu0 %v875, 24
        %v1742 = vpop.permute.xlu0 %1741
        %1743 = vrot.lane.b32.xlu0 %v878, 24
        %v1744 = vpop.permute.xlu0 %1743
        %1745 = vrot.lane.b32.xlu0 %v880, 24
        %v1746 = vpop.permute.xlu0 %1745
        %1747 = vrot.lane.b32.xlu0 %v883, 24
        %v1748 = vpop.permute.xlu0 %1747
        %1749 = vrot.lane.b32.xlu0 %v885, 24
        %v1750 = vpop.permute.xlu0 %1749
        %1751 = vrot.lane.b32.xlu0 %v888, 24
        %v1752 = vpop.permute.xlu0 %1751
        %1753 = vrot.lane.b32.xlu0 %v890, 24
        %v1754 = vpop.permute.xlu0 %1753
        %1755 = vrot.lane.b32.xlu0 %v893, 24
        %v1756 = vpop.permute.xlu0 %1755
        %1757 = vrot.lane.b32.xlu0 %v895, 24
        %v1758 = vpop.permute.xlu0 %1757
        %1759 = vrot.lane.b32.xlu0 %v898, 24
        %v1760 = vpop.permute.xlu0 %1759
        %1761 = vrot.lane.b32.xlu0 %v900, 24
        %v1762 = vpop.permute.xlu0 %1761
        %1763 = vrot.lane.b32.xlu0 %v903, 24
        %v1764 = vpop.permute.xlu0 %1763
        %1765 = vrot.lane.b32.xlu0 %v905, 24
        %v1766 = vpop.permute.xlu0 %1765
        %1767 = vrot.lane.b32.xlu0 %v908, 24
        %v1768 = vpop.permute.xlu0 %1767
        %1769 = vrot.lane.b32.xlu0 %v910, 24
        %v1770 = vpop.permute.xlu0 %1769
        %1771 = vrot.lane.b32.xlu0 %v913, 24
        %v1772 = vpop.permute.xlu0 %1771
        %1773 = vrot.lane.b32.xlu0 %v915, 24
        %v1774 = vpop.permute.xlu0 %1773
        %1775 = vrot.lane.b32.xlu0 %v918, 24
        %v1776 = vpop.permute.xlu0 %1775
        %1777 = vrot.lane.b32.xlu0 %v920, 24
        %v1778 = vpop.permute.xlu0 %1777
        %1779 = vrot.lane.b32.xlu0 %v923, 24
        %v1780 = vpop.permute.xlu0 %1779
        %1781 = vrot.lane.b32.xlu0 %v925, 24
        %v1782 = vpop.permute.xlu0 %1781
        %1783 = vrot.lane.b32.xlu0 %v928, 24
        %v1784 = vpop.permute.xlu0 %1783
        %1785 = vrot.lane.b32.xlu0 %v930, 24
        %v1786 = vpop.permute.xlu0 %1785
        %1787 = vrot.lane.b32.xlu0 %v1328, 24
        %v1788 = vpop.permute.xlu0 %1787
        %1789 = vrot.lane.b32.xlu0 %v1330, 24
        %v1790 = vpop.permute.xlu0 %1789
        %1791 = vrot.lane.b32.xlu0 %v1728, 24
        %v1792 = vpop.permute.xlu0 %1791
        %1793 = vrot.lane.b32.xlu0 %v1730, 24
        %v1794 = vpop.permute.xlu0 %1793
        %vm1827 = vcmask 220352
        %1828 = vst.msk [vmem:[#allocation5] sm:$0xff] %vm1827, %v1732
        %1829 = vst.msk [vmem:[#allocation5 + $0x8] sm:$0xff] %vm1827, %v1734
        %1830 = vst.msk [vmem:[#allocation5 + $0x10] sm:$0xff] %vm1827, %v1736
        %1831 = vst.msk [vmem:[#allocation5 + $0x18] sm:$0xff] %vm1827, %v1738
        %1832 = vst.msk [vmem:[#allocation5 + $0x20] sm:$0xff] %vm1827, %v1740
        %1833 = vst.msk [vmem:[#allocation5 + $0x28] sm:$0xff] %vm1827, %v1742
        %1834 = vst.msk [vmem:[#allocation5 + $0x30] sm:$0xff] %vm1827, %v1744
        %1835 = vst.msk [vmem:[#allocation5 + $0x38] sm:$0xff] %vm1827, %v1746
        %1836 = vst.msk [vmem:[#allocation5 + $0x40] sm:$0xff] %vm1827, %v1748
        %1837 = vst.msk [vmem:[#allocation5 + $0x48] sm:$0xff] %vm1827, %v1750
        %1838 = vst.msk [vmem:[#allocation5 + $0x50] sm:$0xff] %vm1827, %v1752
        %1839 = vst.msk [vmem:[#allocation5 + $0x58] sm:$0xff] %vm1827, %v1754
        %1840 = vst.msk [vmem:[#allocation5 + $0x60] sm:$0xff] %vm1827, %v1756
        %1841 = vst.msk [vmem:[#allocation5 + $0x68] sm:$0xff] %vm1827, %v1758
        %1842 = vst.msk [vmem:[#allocation5 + $0x70] sm:$0xff] %vm1827, %v1760
        %1843 = vst.msk [vmem:[#allocation5 + $0x78] sm:$0xff] %vm1827, %v1762
        %1844 = vst.msk [vmem:[#allocation5 + $0x80] sm:$0xff] %vm1827, %v1764
        %1845 = vst.msk [vmem:[#allocation5 + $0x88] sm:$0xff] %vm1827, %v1766
        %1846 = vst.msk [vmem:[#allocation5 + $0x90] sm:$0xff] %vm1827, %v1768
        %1847 = vst.msk [vmem:[#allocation5 + $0x98] sm:$0xff] %vm1827, %v1770
        %1848 = vst.msk [vmem:[#allocation5 + $0xa0] sm:$0xff] %vm1827, %v1772
        %1849 = vst.msk [vmem:[#allocation5 + $0xa8] sm:$0xff] %vm1827, %v1774
        %1850 = vst.msk [vmem:[#allocation5 + $0xb0] sm:$0xff] %vm1827, %v1776
        %1851 = vst.msk [vmem:[#allocation5 + $0xb8] sm:$0xff] %vm1827, %v1778
        %1852 = vst.msk [vmem:[#allocation5 + $0xc0] sm:$0xff] %vm1827, %v1780
        %1853 = vst.msk [vmem:[#allocation5 + $0xc8] sm:$0xff] %vm1827, %v1782
        %1854 = vst.msk [vmem:[#allocation5 + $0xd0] sm:$0xff] %vm1827, %v1784
        %1855 = vst.msk [vmem:[#allocation5 + $0xd8] sm:$0xff] %vm1827, %v1786
        %1856 = vst.msk [vmem:[#allocation5 + $0xe0] sm:$0xff] %vm1827, %v1788
        %1857 = vst.msk [vmem:[#allocation5 + $0xe8] sm:$0xff] %vm1827, %v1790
        %1858 = vst.msk [vmem:[#allocation5 + $0xf0] sm:$0xff] %vm1827, %v1792
        %1859 = vst.msk [vmem:[#allocation5 + $0xf8] sm:$0xff] %vm1827, %v1794
        %v1860 = vld [vmem:[#allocation5] sm:$0xff]
        %v1861 = vld [vmem:[#allocation5 + $0x8] sm:$0xff]
        %v1862 = vld [vmem:[#allocation5 + $0x10] sm:$0xff]
        %v1863 = vld [vmem:[#allocation5 + $0x18] sm:$0xff]
        %v1864 = vld [vmem:[#allocation5 + $0x20] sm:$0xff]
        %v1865 = vld [vmem:[#allocation5 + $0x28] sm:$0xff]
        %v1866 = vld [vmem:[#allocation5 + $0x30] sm:$0xff]
        %v1867 = vld [vmem:[#allocation5 + $0x38] sm:$0xff]
        %v1868 = vld [vmem:[#allocation5 + $0x40] sm:$0xff]
        %v1869 = vld [vmem:[#allocation5 + $0x48] sm:$0xff]
        %v1870 = vld [vmem:[#allocation5 + $0x50] sm:$0xff]
        %v1871 = vld [vmem:[#allocation5 + $0x58] sm:$0xff]
        %v1872 = vld [vmem:[#allocation5 + $0x60] sm:$0xff]
        %v1873 = vld [vmem:[#allocation5 + $0x68] sm:$0xff]
        %v1874 = vld [vmem:[#allocation5 + $0x70] sm:$0xff]
        %v1875 = vld [vmem:[#allocation5 + $0x78] sm:$0xff]
        %v1876 = vld [vmem:[#allocation5 + $0x80] sm:$0xff]
        %v1877 = vld [vmem:[#allocation5 + $0x88] sm:$0xff]
        %v1878 = vld [vmem:[#allocation5 + $0x90] sm:$0xff]
        %v1879 = vld [vmem:[#allocation5 + $0x98] sm:$0xff]
        %v1880 = vld [vmem:[#allocation5 + $0xa0] sm:$0xff]
        %v1881 = vld [vmem:[#allocation5 + $0xa8] sm:$0xff]
        %v1882 = vld [vmem:[#allocation5 + $0xb0] sm:$0xff]
        %v1883 = vld [vmem:[#allocation5 + $0xb8] sm:$0xff]
        %v1884 = vld [vmem:[#allocation5 + $0xc0] sm:$0xff]
        %v1885 = vld [vmem:[#allocation5 + $0xc8] sm:$0xff]
        %v1886 = vld [vmem:[#allocation5 + $0xd0] sm:$0xff]
        %v1887 = vld [vmem:[#allocation5 + $0xd8] sm:$0xff]
        %v1888 = vld [vmem:[#allocation5 + $0xe0] sm:$0xff]
        %v1889 = vld [vmem:[#allocation5 + $0xe8] sm:$0xff]
        %v1890 = vld [vmem:[#allocation5 + $0xf0] sm:$0xff]
        %v1891 = vld [vmem:[#allocation5 + $0xf8] sm:$0xff]
        %v1892 = vpack.c.bf16 %v1861, %v1860
        %v1893 = vpack.c.bf16 %v1863, %v1862
        %v1894 = vpack.c.bf16 %v1865, %v1864
        %v1895 = vpack.c.bf16 %v1867, %v1866
        %v1896 = vpack.c.bf16 %v1869, %v1868
        %v1897 = vpack.c.bf16 %v1871, %v1870
        %v1898 = vpack.c.bf16 %v1873, %v1872
        %v1899 = vpack.c.bf16 %v1875, %v1874
        %v1900 = vpack.c.bf16 %v1877, %v1876
        %v1901 = vpack.c.bf16 %v1879, %v1878
        %v1902 = vpack.c.bf16 %v1881, %v1880
        %v1903 = vpack.c.bf16 %v1883, %v1882
        %v1904 = vpack.c.bf16 %v1885, %v1884
        %v1905 = vpack.c.bf16 %v1887, %v1886
        %v1906 = vpack.c.bf16 %v1889, %v1888
        %v1907 = vpack.c.bf16 %v1891, %v1890
        %v1908 = vld [vmem:[%s1] sm:$0xf]
        %v1909 = vld [vmem:[%s1 + $0x4] sm:$0xf]
        %v1910 = vld [vmem:[%s1 + $0x8] sm:$0xf]
        %v1911 = vld [vmem:[%s1 + $0xc] sm:$0x3]
        %v1912 = vld [vmem:[%s2] sm:$0x1]
        %v1914 = vlaneseq
        %v1915 = vshrl.u32 %v1914, 7
        %v1916 = vsub.s32 0, %v1915
        %v1917 = vrot.slane %v1912, %v1916
        %v1923 = vunpack.c.l.b16 %v1908
        %v1924 = vunpack.c.l.b16 %v1909
        %v1925 = vunpack.c.l.b16 %v1910
        %v1926 = vunpack.c.l.b16 %v1911
        %v1927 = vpack.c.b16 %v1924, %v1923
        %v1928 = vpack.c.b16 %v1926, %v1925
        %vm1930 = vcmask 220160
        %v1932 = vsel %vm1930, %v1892, 0
        %v1935 = vsel %vm1930, %v1893, 0
        %v1938 = vsel %vm1930, %v1894, 0
        %v1941 = vsel %vm1930, %v1895, 0
        %v1944 = vsel %vm1930, %v1896, 0
        %v1947 = vsel %vm1930, %v1897, 0
        %v1950 = vsel %vm1930, %v1898, 0
        %v1953 = vsel %vm1930, %v1899, 0
        %v1956 = vsel %vm1930, %v1900, 0
        %v1959 = vsel %vm1930, %v1901, 0
        %v1962 = vsel %vm1930, %v1902, 0
        %v1965 = vsel %vm1930, %v1903, 0
        %v1968 = vsel %vm1930, %v1904, 0
        %v1971 = vsel %vm1930, %v1905, 0
        %v1974 = vsel %vm1930, %v1906, 0
        %v1977 = vsel %vm1930, %v1907, 0
        %vm1979 = vcmask 1044480
        %v1980 = vsel %vm1979, 4294967295, 65535
        %v1981 = vsel %vm850, %v1980, 0
        %v1983 = vand.u32 %v1928, %v1981
        %1985 = vmatprep.subr.bf16.mxu0 0
        %1986 = vmatpush1.bf16.msra.mxu0 %v1927
        %1987 = vmatprep.subr.bf16.mxu0 0
        %1988 = vmatpush1.bf16.msra.mxu0 %v1983
        %1989 = vmatprep.subr.bf16.mxu0 0
        %1990 = vmatpush1.bf16.msra.mxu0 0
        %1991 = vmatprep.subr.bf16.mxu0 0
        %1992 = vmatpush1.bf16.msra.mxu0 0
        %1993 = vmatprep.subr.bf16.mxu0 0
        %1994 = vmatpush1.bf16.msra.mxu0 0
        %1995 = vmatprep.subr.bf16.mxu0 0
        %1996 = vmatpush1.bf16.msra.mxu0 0
        %1997 = vmatprep.subr.bf16.mxu0 0
        %1998 = vmatpush1.bf16.msra.mxu0 0
        %1999 = vmatprep.subr.bf16.mxu0 0
        %2000 = vmatpush1.bf16.msra.mxu0 0
        %2001 = vmatprep.subr.bf16.mxu0 0
        %2002 = vmatpush1.bf16.msra.mxu0 0
        %2003 = vmatprep.subr.bf16.mxu0 0
        %2004 = vmatpush1.bf16.msra.mxu0 0
        %2005 = vmatprep.subr.bf16.mxu0 0
        %2006 = vmatpush1.bf16.msra.mxu0 0
        %2007 = vmatprep.subr.bf16.mxu0 0
        %2008 = vmatpush1.bf16.msra.mxu0 0
        %2009 = vmatprep.subr.bf16.mxu0 0
        %2010 = vmatpush1.bf16.msra.mxu0 0
        %2011 = vmatprep.subr.bf16.mxu0 0
        %2012 = vmatpush1.bf16.msra.mxu0 0
        %2013 = vmatprep.subr.bf16.mxu0 0
        %2014 = vmatpush1.bf16.msra.mxu0 0
        %2015 = vmatprep.subr.bf16.mxu0 0
        %2016 = vmatpush1.bf16.msra.mxu0 0
        %2017 = vmatprep.mubr.bf16.mxu0 0
        %2018 = vmatmul.mubr.bf16.gmra.mrb[0].mxu0 %v1932
        %v2019 = vpop.f32.mrb[0].mxu0
        %v2020 = vadd.f32 %v1917, %v2019
        %v2021 = vpop.f32.mrb[0].mxu0
        %v2022 = vpop.f32.mrb[0].mxu0
        %v2023 = vadd.f32 %v1917, %v2022
        %v2024 = vpop.f32.mrb[0].mxu0
        %2025 = vmatprep.mubr.bf16.mxu0 0
        %2026 = vmatmul.mubr.bf16.gmra.mrb[0].mxu0 %v1935
        %v2027 = vpop.f32.mrb[0].mxu0
        %v2028 = vadd.f32 %v1917, %v2027
        %v2029 = vpop.f32.mrb[0].mxu0
        %v2030 = vpop.f32.mrb[0].mxu0
        %v2031 = vadd.f32 %v1917, %v2030
        %v2032 = vpop.f32.mrb[0].mxu0
        %2033 = vmatprep.mubr.bf16.mxu0 0
        %2034 = vmatmul.mubr.bf16.gmra.mrb[0].mxu0 %v1938
        %v2035 = vpop.f32.mrb[0].mxu0
        %v2036 = vadd.f32 %v1917, %v2035
        %v2037 = vpop.f32.mrb[0].mxu0
        %v2038 = vpop.f32.mrb[0].mxu0
        %v2039 = vadd.f32 %v1917, %v2038
        %v2040 = vpop.f32.mrb[0].mxu0
        %2041 = vmatprep.mubr.bf16.mxu0 0
        %2042 = vmatmul.mubr.bf16.gmra.mrb[0].mxu0 %v1941
        %v2043 = vpop.f32.mrb[0].mxu0
        %v2044 = vadd.f32 %v1917, %v2043
        %v2045 = vpop.f32.mrb[0].mxu0
        %v2046 = vpop.f32.mrb[0].mxu0
        %v2047 = vadd.f32 %v1917, %v2046
        %v2048 = vpop.f32.mrb[0].mxu0
        %2049 = vmatprep.mubr.bf16.mxu0 0
        %2050 = vmatmul.mubr.bf16.gmra.mrb[0].mxu0 %v1944
        %v2051 = vpop.f32.mrb[0].mxu0
        %v2052 = vadd.f32 %v1917, %v2051
        %v2053 = vpop.f32.mrb[0].mxu0
        %v2054 = vpop.f32.mrb[0].mxu0
        %v2055 = vadd.f32 %v1917, %v2054
        %v2056 = vpop.f32.mrb[0].mxu0
        %2057 = vmatprep.mubr.bf16.mxu0 0
        %2058 = vmatmul.mubr.bf16.gmra.mrb[0].mxu0 %v1947
        %v2059 = vpop.f32.mrb[0].mxu0
        %v2060 = vadd.f32 %v1917, %v2059
        %v2061 = vpop.f32.mrb[0].mxu0
        %v2062 = vpop.f32.mrb[0].mxu0
        %v2063 = vadd.f32 %v1917, %v2062
        %v2064 = vpop.f32.mrb[0].mxu0
        %2065 = vmatprep.mubr.bf16.mxu0 0
        %2066 = vmatmul.mubr.bf16.gmra.mrb[0].mxu0 %v1950
        %v2067 = vpop.f32.mrb[0].mxu0
        %v2068 = vadd.f32 %v1917, %v2067
        %v2069 = vpop.f32.mrb[0].mxu0
        %v2070 = vpop.f32.mrb[0].mxu0
        %v2071 = vadd.f32 %v1917, %v2070
        %v2072 = vpop.f32.mrb[0].mxu0
        %2073 = vmatprep.mubr.bf16.mxu0 0
        %2074 = vmatmul.mubr.bf16.gmra.mrb[0].mxu0 %v1953
        %v2075 = vpop.f32.mrb[0].mxu0
        %v2076 = vadd.f32 %v1917, %v2075
        %v2077 = vpop.f32.mrb[0].mxu0
        %v2078 = vpop.f32.mrb[0].mxu0
        %v2079 = vadd.f32 %v1917, %v2078
        %v2080 = vpop.f32.mrb[0].mxu0
        %2081 = vmatprep.mubr.bf16.mxu0 0
        %2082 = vmatmul.mubr.bf16.gmra.mrb[0].mxu0 %v1956
        %v2083 = vpop.f32.mrb[0].mxu0
        %v2084 = vadd.f32 %v1917, %v2083
        %v2085 = vpop.f32.mrb[0].mxu0
        %v2086 = vpop.f32.mrb[0].mxu0
        %v2087 = vadd.f32 %v1917, %v2086
        %v2088 = vpop.f32.mrb[0].mxu0
        %2089 = vmatprep.mubr.bf16.mxu0 0
        %2090 = vmatmul.mubr.bf16.gmra.mrb[0].mxu0 %v1959
        %v2091 = vpop.f32.mrb[0].mxu0
        %v2092 = vadd.f32 %v1917, %v2091
        %v2093 = vpop.f32.mrb[0].mxu0
        %v2094 = vpop.f32.mrb[0].mxu0
        %v2095 = vadd.f32 %v1917, %v2094
        %v2096 = vpop.f32.mrb[0].mxu0
        %2097 = vmatprep.mubr.bf16.mxu0 0
        %2098 = vmatmul.mubr.bf16.gmra.mrb[0].mxu0 %v1962
        %v2099 = vpop.f32.mrb[0].mxu0
        %v2100 = vadd.f32 %v1917, %v2099
        %v2101 = vpop.f32.mrb[0].mxu0
        %v2102 = vpop.f32.mrb[0].mxu0
        %v2103 = vadd.f32 %v1917, %v2102
        %v2104 = vpop.f32.mrb[0].mxu0
        %2105 = vmatprep.mubr.bf16.mxu0 0
        %2106 = vmatmul.mubr.bf16.gmra.mrb[0].mxu0 %v1965
        %v2107 = vpop.f32.mrb[0].mxu0
        %v2108 = vadd.f32 %v1917, %v2107
        %v2109 = vpop.f32.mrb[0].mxu0
        %v2110 = vpop.f32.mrb[0].mxu0
        %v2111 = vadd.f32 %v1917, %v2110
        %v2112 = vpop.f32.mrb[0].mxu0
        %2113 = vmatprep.mubr.bf16.mxu0 0
        %2114 = vmatmul.mubr.bf16.gmra.mrb[0].mxu0 %v1968
        %v2115 = vpop.f32.mrb[0].mxu0
        %v2116 = vadd.f32 %v1917, %v2115
        %v2117 = vpop.f32.mrb[0].mxu0
        %v2118 = vpop.f32.mrb[0].mxu0
        %v2119 = vadd.f32 %v1917, %v2118
        %v2120 = vpop.f32.mrb[0].mxu0
        %2121 = vmatprep.mubr.bf16.mxu0 0
        %2122 = vmatmul.mubr.bf16.gmra.mrb[0].mxu0 %v1971
        %v2123 = vpop.f32.mrb[0].mxu0
        %v2124 = vadd.f32 %v1917, %v2123
        %v2125 = vpop.f32.mrb[0].mxu0
        %v2126 = vpop.f32.mrb[0].mxu0
        %v2127 = vadd.f32 %v1917, %v2126
        %v2128 = vpop.f32.mrb[0].mxu0
        %2129 = vmatprep.mubr.bf16.mxu0 0
        %2130 = vmatmul.mubr.bf16.gmra.mrb[0].mxu0 %v1974
        %v2131 = vpop.f32.mrb[0].mxu0
        %v2132 = vadd.f32 %v1917, %v2131
        %v2133 = vpop.f32.mrb[0].mxu0
        %v2134 = vpop.f32.mrb[0].mxu0
        %v2135 = vadd.f32 %v1917, %v2134
        %v2136 = vpop.f32.mrb[0].mxu0
        %2137 = vmatprep.mubr.bf16.mxu0 0
        %2138 = vmatmul.mubr.bf16.gmra.mrb[0].mxu0 %v1977
        %v2139 = vpop.f32.mrb[0].mxu0
        %v2140 = vadd.f32 %v1917, %v2139
        %v2141 = vpop.f32.mrb[0].mxu0
        %v2142 = vpop.f32.mrb[0].mxu0
        %v2143 = vadd.f32 %v1917, %v2142
        %v2144 = vpop.f32.mrb[0].mxu0
        %2145 = vdwg.mxu0
        %v2146 = vmax.f32 %v2020, 0.0
        %v2147 = vmax.f32 %v2023, 0.0
        %v2148 = vmax.f32 %v2028, 0.0
        %v2149 = vmax.f32 %v2031, 0.0
        %v2150 = vmax.f32 %v2036, 0.0
        %v2151 = vmax.f32 %v2039, 0.0
        %v2152 = vmax.f32 %v2044, 0.0
        %v2153 = vmax.f32 %v2047, 0.0
        %v2154 = vmax.f32 %v2052, 0.0
        %v2155 = vmax.f32 %v2055, 0.0
        %v2156 = vmax.f32 %v2060, 0.0
        %v2157 = vmax.f32 %v2063, 0.0
        %v2158 = vmax.f32 %v2068, 0.0
        %v2159 = vmax.f32 %v2071, 0.0
        %v2160 = vmax.f32 %v2076, 0.0
        %v2161 = vmax.f32 %v2079, 0.0
        %v2162 = vmax.f32 %v2084, 0.0
        %v2163 = vmax.f32 %v2087, 0.0
        %v2164 = vmax.f32 %v2092, 0.0
        %v2165 = vmax.f32 %v2095, 0.0
        %v2166 = vmax.f32 %v2100, 0.0
        %v2167 = vmax.f32 %v2103, 0.0
        %v2168 = vmax.f32 %v2108, 0.0
        %v2169 = vmax.f32 %v2111, 0.0
        %v2170 = vmax.f32 %v2116, 0.0
        %v2171 = vmax.f32 %v2119, 0.0
        %v2172 = vmax.f32 %v2124, 0.0
        %v2173 = vmax.f32 %v2127, 0.0
        %v2174 = vmax.f32 %v2132, 0.0
        %v2175 = vmax.f32 %v2135, 0.0
        %v2176 = vmax.f32 %v2140, 0.0
        %v2177 = vmax.f32 %v2143, 0.0
        %vm2178 = vcmask 261120
        %2179 = vst.msk [vmem:[#allocation8] sm:$0xff] %vm2178, %v2146
        %2180 = vst.msk [vmem:[#allocation8 + $0x8] sm:$0xff] %vm2178, %v2147
        %2181 = vst.msk [vmem:[#allocation8 + $0x10] sm:$0xff] %vm2178, %v2148
        %2182 = vst.msk [vmem:[#allocation8 + $0x18] sm:$0xff] %vm2178, %v2149
        %2183 = vst.msk [vmem:[#allocation8 + $0x20] sm:$0xff] %vm2178, %v2150
        %2184 = vst.msk [vmem:[#allocation8 + $0x28] sm:$0xff] %vm2178, %v2151
        %2185 = vst.msk [vmem:[#allocation8 + $0x30] sm:$0xff] %vm2178, %v2152
        %2186 = vst.msk [vmem:[#allocation8 + $0x38] sm:$0xff] %vm2178, %v2153
        %2187 = vst.msk [vmem:[#allocation8 + $0x40] sm:$0xff] %vm2178, %v2154
        %2188 = vst.msk [vmem:[#allocation8 + $0x48] sm:$0xff] %vm2178, %v2155
        %2189 = vst.msk [vmem:[#allocation8 + $0x50] sm:$0xff] %vm2178, %v2156
        %2190 = vst.msk [vmem:[#allocation8 + $0x58] sm:$0xff] %vm2178, %v2157
        %2191 = vst.msk [vmem:[#allocation8 + $0x60] sm:$0xff] %vm2178, %v2158
        %2192 = vst.msk [vmem:[#allocation8 + $0x68] sm:$0xff] %vm2178, %v2159
        %2193 = vst.msk [vmem:[#allocation8 + $0x70] sm:$0xff] %vm2178, %v2160
        %2194 = vst.msk [vmem:[#allocation8 + $0x78] sm:$0xff] %vm2178, %v2161
        %2195 = vst.msk [vmem:[#allocation8 + $0x80] sm:$0xff] %vm2178, %v2162
        %2196 = vst.msk [vmem:[#allocation8 + $0x88] sm:$0xff] %vm2178, %v2163
        %2197 = vst.msk [vmem:[#allocation8 + $0x90] sm:$0xff] %vm2178, %v2164
        %2198 = vst.msk [vmem:[#allocation8 + $0x98] sm:$0xff] %vm2178, %v2165
        %2199 = vst.msk [vmem:[#allocation8 + $0xa0] sm:$0xff] %vm2178, %v2166
        %2200 = vst.msk [vmem:[#allocation8 + $0xa8] sm:$0xff] %vm2178, %v2167
        %2201 = vst.msk [vmem:[#allocation8 + $0xb0] sm:$0xff] %vm2178, %v2168
        %2202 = vst.msk [vmem:[#allocation8 + $0xb8] sm:$0xff] %vm2178, %v2169
        %2203 = vst.msk [vmem:[#allocation8 + $0xc0] sm:$0xff] %vm2178, %v2170
        %2204 = vst.msk [vmem:[#allocation8 + $0xc8] sm:$0xff] %vm2178, %v2171
        %2205 = vst.msk [vmem:[#allocation8 + $0xd0] sm:$0xff] %vm2178, %v2172
        %2206 = vst.msk [vmem:[#allocation8 + $0xd8] sm:$0xff] %vm2178, %v2173
        %2207 = vst.msk [vmem:[#allocation8 + $0xe0] sm:$0xff] %vm2178, %v2174
        %2208 = vst.msk [vmem:[#allocation8 + $0xe8] sm:$0xff] %vm2178, %v2175
        %2209 = vst.msk [vmem:[#allocation8 + $0xf0] sm:$0xff] %vm2178, %v2176
        %2210 = vst.msk [vmem:[#allocation8 + $0xf8] sm:$0xff] %vm2178, %v2177
        %v2211 = vld [vmem:[#allocation8] ss:$2 sm:$0xff]
        %s2212 = scalar_lea.vmem [#allocation8], 16
        %v2213 = vld [vmem:[%s2212] ss:$2 sm:$0xff]
        %s2214 = scalar_lea.vmem [#allocation8], 32
        %v2215 = vld [vmem:[%s2214] ss:$2 sm:$0xff]
        %s2216 = scalar_lea.vmem [#allocation8], 48
        %v2217 = vld [vmem:[%s2216] ss:$2 sm:$0xff]
        %s2218 = scalar_lea.vmem [#allocation8], 64
        %v2219 = vld [vmem:[%s2218] ss:$2 sm:$0xff]
        %s2220 = scalar_lea.vmem [#allocation8], 80
        %v2221 = vld [vmem:[%s2220] ss:$2 sm:$0xff]
        %s2222 = scalar_lea.vmem [#allocation8], 96
        %v2223 = vld [vmem:[%s2222] ss:$2 sm:$0xff]
        %s2224 = scalar_lea.vmem [#allocation8], 112
        %v2225 = vld [vmem:[%s2224] ss:$2 sm:$0xff]
        %s2226 = scalar_lea.vmem [#allocation8], 128
        %v2227 = vld [vmem:[%s2226] ss:$2 sm:$0xff]
        %s2228 = scalar_lea.vmem [#allocation8], 144
        %v2229 = vld [vmem:[%s2228] ss:$2 sm:$0xff]
        %s2230 = scalar_lea.vmem [#allocation8], 160
        %v2231 = vld [vmem:[%s2230] ss:$2 sm:$0xff]
        %s2232 = scalar_lea.vmem [#allocation8], 176
        %v2233 = vld [vmem:[%s2232] ss:$2 sm:$0xff]
        %s2234 = scalar_lea.vmem [#allocation8], 192
        %v2235 = vld [vmem:[%s2234] ss:$2 sm:$0xff]
        %s2236 = scalar_lea.vmem [#allocation8], 208
        %v2237 = vld [vmem:[%s2236] ss:$2 sm:$0xff]
        %s2238 = scalar_lea.vmem [#allocation8], 224
        %v2239 = vld [vmem:[%s2238] ss:$2 sm:$0xff]
        %s2240 = scalar_lea.vmem [#allocation8], 240
        %v2241 = vld [vmem:[%s2240] ss:$2 sm:$0xff]
        %s2242 = scalar_lea.vmem [#allocation8], 1
        %v2243 = vld [vmem:[%s2242] ss:$2 sm:$0xff]
        %s2244 = scalar_lea.vmem [#allocation8], 17
        %v2245 = vld [vmem:[%s2244] ss:$2 sm:$0xff]
        %s2246 = scalar_lea.vmem [#allocation8], 33
        %v2247 = vld [vmem:[%s2246] ss:$2 sm:$0xff]
        %s2248 = scalar_lea.vmem [#allocation8], 49
        %v2249 = vld [vmem:[%s2248] ss:$2 sm:$0xff]
        %s2250 = scalar_lea.vmem [#allocation8], 65
        %v2251 = vld [vmem:[%s2250] ss:$2 sm:$0xff]
        %s2252 = scalar_lea.vmem [#allocation8], 81
        %v2253 = vld [vmem:[%s2252] ss:$2 sm:$0xff]
        %s2254 = scalar_lea.vmem [#allocation8], 97
        %v2255 = vld [vmem:[%s2254] ss:$2 sm:$0xff]
        %s2256 = scalar_lea.vmem [#allocation8], 113
        %v2257 = vld [vmem:[%s2256] ss:$2 sm:$0xff]
        %s2258 = scalar_lea.vmem [#allocation8], 129
        %v2259 = vld [vmem:[%s2258] ss:$2 sm:$0xff]
        %s2260 = scalar_lea.vmem [#allocation8], 145
        %v2261 = vld [vmem:[%s2260] ss:$2 sm:$0xff]
        %s2262 = scalar_lea.vmem [#allocation8], 161
        %v2263 = vld [vmem:[%s2262] ss:$2 sm:$0xff]
        %s2264 = scalar_lea.vmem [#allocation8], 177
        %v2265 = vld [vmem:[%s2264] ss:$2 sm:$0xff]
        %s2266 = scalar_lea.vmem [#allocation8], 193
        %v2267 = vld [vmem:[%s2266] ss:$2 sm:$0xff]
        %s2268 = scalar_lea.vmem [#allocation8], 209
        %v2269 = vld [vmem:[%s2268] ss:$2 sm:$0xff]
        %s2270 = scalar_lea.vmem [#allocation8], 225
        %v2271 = vld [vmem:[%s2270] ss:$2 sm:$0xff]
        %s2272 = scalar_lea.vmem [#allocation8], 241
        %v2273 = vld [vmem:[%s2272] ss:$2 sm:$0xff]
        %v2274 = vmax.f32 %v2211, %v2243
        %v2275 = vmax.f32 %v2213, %v2245
        %v2276 = vmax.f32 %v2215, %v2247
        %v2277 = vmax.f32 %v2217, %v2249
        %v2278 = vmax.f32 %v2219, %v2251
        %v2279 = vmax.f32 %v2221, %v2253
        %v2280 = vmax.f32 %v2223, %v2255
        %v2281 = vmax.f32 %v2225, %v2257
        %v2282 = vmax.f32 %v2227, %v2259
        %v2283 = vmax.f32 %v2229, %v2261
        %v2284 = vmax.f32 %v2231, %v2263
        %v2285 = vmax.f32 %v2233, %v2265
        %v2286 = vmax.f32 %v2235, %v2267
        %v2287 = vmax.f32 %v2237, %v2269
        %v2288 = vmax.f32 %v2239, %v2271
        %v2289 = vmax.f32 %v2241, %v2273
        %v2290 = vmax.f32 %v2274, %v2275
        %v2291 = vmax.f32 %v2276, %v2277
        %v2292 = vmax.f32 %v2278, %v2279
        %v2293 = vmax.f32 %v2280, %v2281
        %v2294 = vmax.f32 %v2282, %v2283
        %v2295 = vmax.f32 %v2284, %v2285
        %v2296 = vmax.f32 %v2286, %v2287
        %v2297 = vmax.f32 %v2288, %v2289
        %2298 = vst.msk [vmem:[#allocation3] sm:$0xff] %vm2178, 0.0
        %vm2299 = vcmask 254976
        %2300 = vst.msk [vmem:[#allocation3 + $0x8] sm:$0x3] %vm2299, 0.0
        %2301 = vst.msk [vmem:[#allocation3 + $0x10] sm:$0xff] %vm2178, 0.0
        %2302 = vst.msk [vmem:[#allocation3 + $0x18] sm:$0x3] %vm2299, 0.0
        %2303 = vst.msk [vmem:[#allocation3 + $0x20] sm:$0xff] %vm2178, 0.0
        %2304 = vst.msk [vmem:[#allocation3 + $0x28] sm:$0x3] %vm2299, 0.0
        %2305 = vst.msk [vmem:[#allocation3 + $0x30] sm:$0xff] %vm2178, 0.0
        %2306 = vst.msk [vmem:[#allocation3 + $0x38] sm:$0x3] %vm2299, 0.0
        %2307 = vst.msk [vmem:[#allocation3 + $0x40] sm:$0xff] %vm2178, 0.0
        %2308 = vst.msk [vmem:[#allocation3 + $0x48] sm:$0x3] %vm2299, 0.0
        %2309 = vst.msk [vmem:[#allocation3 + $0x50] sm:$0xff] %vm2178, 0.0
        %2310 = vst.msk [vmem:[#allocation3 + $0x58] sm:$0x3] %vm2299, 0.0
        %2311 = vst.msk [vmem:[#allocation3 + $0x60] sm:$0xff] %vm2178, 0.0
        %2312 = vst.msk [vmem:[#allocation3 + $0x68] sm:$0x3] %vm2299, 0.0
        %2313 = vst.msk [vmem:[#allocation3 + $0x70] sm:$0xff] %vm2178, 0.0
        %2314 = vst.msk [vmem:[#allocation3 + $0x78] sm:$0x3] %vm2299, 0.0
        %2315 = vst.msk [vmem:[#allocation3 + $0x80] sm:$0xff] %vm2178, 0.0
        %2316 = vst.msk [vmem:[#allocation3 + $0x88] sm:$0x3] %vm2299, 0.0
        %2317 = vst.msk [vmem:[#allocation3 + $0x90] sm:$0xff] %vm2178, 0.0
        %2318 = vst.msk [vmem:[#allocation3 + $0x98] sm:$0x3] %vm2299, 0.0
        %s2319 = scalar_lea.vmem [#allocation3], 16
        %2320 = vst.msk [vmem:[%s2319 + $0x1] sm:$0xff] %vm2178, %v2290
        %2321 = vst.msk [vmem:[%s2319 + $0x11] sm:$0xff] %vm2178, %v2291
        %2322 = vst.msk [vmem:[%s2319 + $0x21] sm:$0xff] %vm2178, %v2292
        %2323 = vst.msk [vmem:[%s2319 + $0x31] sm:$0xff] %vm2178, %v2293
        %2324 = vst.msk [vmem:[%s2319 + $0x41] sm:$0xff] %vm2178, %v2294
        %2325 = vst.msk [vmem:[%s2319 + $0x51] sm:$0xff] %vm2178, %v2295
        %2326 = vst.msk [vmem:[%s2319 + $0x61] sm:$0xff] %vm2178, %v2296
        %2327 = vst.msk [vmem:[%s2319 + $0x71] sm:$0xff] %vm2178, %v2297
        %v2328 = vld [vmem:[#allocation3] sm:$0xff]
        %v2329 = vld [vmem:[#allocation3 + $0x8] sm:$0x3]
        %v2330 = vld [vmem:[#allocation3 + $0x10] sm:$0xff]
        %v2331 = vld [vmem:[#allocation3 + $0x18] sm:$0x3]
        %v2332 = vld [vmem:[#allocation3 + $0x20] sm:$0xff]
        %v2333 = vld [vmem:[#allocation3 + $0x28] sm:$0x3]
        %v2334 = vld [vmem:[#allocation3 + $0x30] sm:$0xff]
        %v2335 = vld [vmem:[#allocation3 + $0x38] sm:$0x3]
        %v2336 = vld [vmem:[#allocation3 + $0x40] sm:$0xff]
        %v2337 = vld [vmem:[#allocation3 + $0x48] sm:$0x3]
        %v2338 = vld [vmem:[#allocation3 + $0x50] sm:$0xff]
        %v2339 = vld [vmem:[#allocation3 + $0x58] sm:$0x3]
        %v2340 = vld [vmem:[#allocation3 + $0x60] sm:$0xff]
        %v2341 = vld [vmem:[#allocation3 + $0x68] sm:$0x3]
        %v2342 = vld [vmem:[#allocation3 + $0x70] sm:$0xff]
        %v2343 = vld [vmem:[#allocation3 + $0x78] sm:$0x3]
        %v2344 = vld [vmem:[#allocation3 + $0x80] sm:$0xff]
        %v2345 = vld [vmem:[#allocation3 + $0x88] sm:$0x3]
        %v2346 = vld [vmem:[#allocation3 + $0x90] sm:$0xff]
        %v2347 = vld [vmem:[#allocation3 + $0x98] sm:$0x3]
        %2348 = vst.msk [vmem:[#allocation6] sm:$0xff] %vm2178, %v2328
        %2349 = vst.msk [vmem:[#allocation6 + $0x18] sm:$0xff] %vm2178, %v2330
        %2350 = vst.msk [vmem:[#allocation6 + $0x30] sm:$0xff] %vm2178, %v2332
        %2351 = vst.msk [vmem:[#allocation6 + $0x48] sm:$0xff] %vm2178, %v2334
        %2352 = vst.msk [vmem:[#allocation6 + $0x60] sm:$0xff] %vm2178, %v2336
        %2353 = vst.msk [vmem:[#allocation6 + $0x78] sm:$0xff] %vm2178, %v2338
        %2354 = vst.msk [vmem:[#allocation6 + $0x90] sm:$0xff] %vm2178, %v2340
        %2355 = vst.msk [vmem:[#allocation6 + $0xa8] sm:$0xff] %vm2178, %v2342
        %v2372 = vrot.slane %v2328, 1
        %v2373 = vrot.slane %v2329, 1
        %v2374 = vsel %vm640, %v2372, %v2373
        %v2375 = vrot.slane %v2330, 1
        %v2376 = vrot.slane %v2331, 1
        %v2377 = vsel %vm640, %v2375, %v2376
        %v2378 = vrot.slane %v2332, 1
        %v2379 = vrot.slane %v2333, 1
        %v2380 = vsel %vm640, %v2378, %v2379
        %v2381 = vrot.slane %v2334, 1
        %v2382 = vrot.slane %v2335, 1
        %v2383 = vsel %vm640, %v2381, %v2382
        %v2384 = vrot.slane %v2336, 1
        %v2385 = vrot.slane %v2337, 1
        %v2386 = vsel %vm640, %v2384, %v2385
        %v2387 = vrot.slane %v2338, 1
        %v2388 = vrot.slane %v2339, 1
        %v2389 = vsel %vm640, %v2387, %v2388
        %v2390 = vrot.slane %v2340, 1
        %v2391 = vrot.slane %v2341, 1
        %v2392 = vsel %vm640, %v2390, %v2391
        %v2393 = vrot.slane %v2342, 1
        %v2394 = vrot.slane %v2343, 1
        %v2395 = vsel %vm640, %v2393, %v2394
        %2396 = vrot.lane.b32.xlu0 %v2374, 32
        %v2397 = vpop.permute.xlu0 %2396
        %2398 = vrot.lane.b32.xlu0 %v2377, 32
        %v2399 = vpop.permute.xlu0 %2398
        %2400 = vrot.lane.b32.xlu0 %v2380, 32
        %v2401 = vpop.permute.xlu0 %2400
        %2402 = vrot.lane.b32.xlu0 %v2383, 32
        %v2403 = vpop.permute.xlu0 %2402
        %2404 = vrot.lane.b32.xlu0 %v2386, 32
        %v2405 = vpop.permute.xlu0 %2404
        %2406 = vrot.lane.b32.xlu0 %v2389, 32
        %v2407 = vpop.permute.xlu0 %2406
        %2408 = vrot.lane.b32.xlu0 %v2392, 32
        %v2409 = vpop.permute.xlu0 %2408
        %2410 = vrot.lane.b32.xlu0 %v2395, 32
        %v2411 = vpop.permute.xlu0 %2410
        %vm2420 = vcmask 523520
        %2421 = vst.msk [vmem:[#allocation6] sm:$0xff] %vm2420, %v2397
        %2422 = vst.msk [vmem:[#allocation6 + $0x18] sm:$0xff] %vm2420, %v2399
        %2423 = vst.msk [vmem:[#allocation6 + $0x30] sm:$0xff] %vm2420, %v2401
        %2424 = vst.msk [vmem:[#allocation6 + $0x48] sm:$0xff] %vm2420, %v2403
        %2425 = vst.msk [vmem:[#allocation6 + $0x60] sm:$0xff] %vm2420, %v2405
        %2426 = vst.msk [vmem:[#allocation6 + $0x78] sm:$0xff] %vm2420, %v2407
        %2427 = vst.msk [vmem:[#allocation6 + $0x90] sm:$0xff] %vm2420, %v2409
        %2428 = vst.msk [vmem:[#allocation6 + $0xa8] sm:$0xff] %vm2420, %v2411
        %v2429 = vrot.slane %v2328, 2
        %v2430 = vrot.slane %v2329, 2
        %v2431 = vsel %vm850, %v2429, %v2430
        %v2432 = vrot.slane %v2330, 2
        %v2433 = vrot.slane %v2331, 2
        %v2434 = vsel %vm850, %v2432, %v2433
        %v2435 = vrot.slane %v2332, 2
        %v2436 = vrot.slane %v2333, 2
        %v2437 = vsel %vm850, %v2435, %v2436
        %v2438 = vrot.slane %v2334, 2
        %v2439 = vrot.slane %v2335, 2
        %v2440 = vsel %vm850, %v2438, %v2439
        %v2441 = vrot.slane %v2336, 2
        %v2442 = vrot.slane %v2337, 2
        %v2443 = vsel %vm850, %v2441, %v2442
        %v2444 = vrot.slane %v2338, 2
        %v2445 = vrot.slane %v2339, 2
        %v2446 = vsel %vm850, %v2444, %v2445
        %v2447 = vrot.slane %v2340, 2
        %v2448 = vrot.slane %v2341, 2
        %v2449 = vsel %vm850, %v2447, %v2448
        %v2450 = vrot.slane %v2342, 2
        %v2451 = vrot.slane %v2343, 2
        %v2452 = vsel %vm850, %v2450, %v2451
        %2453 = vrot.lane.b32.xlu0 %v2431, 64
        %v2454 = vpop.permute.xlu0 %2453
        %2455 = vrot.lane.b32.xlu0 %v2434, 64
        %v2456 = vpop.permute.xlu0 %2455
        %2457 = vrot.lane.b32.xlu0 %v2437, 64
        %v2458 = vpop.permute.xlu0 %2457
        %2459 = vrot.lane.b32.xlu0 %v2440, 64
        %v2460 = vpop.permute.xlu0 %2459
        %2461 = vrot.lane.b32.xlu0 %v2443, 64
        %v2462 = vpop.permute.xlu0 %2461
        %2463 = vrot.lane.b32.xlu0 %v2446, 64
        %v2464 = vpop.permute.xlu0 %2463
        %2465 = vrot.lane.b32.xlu0 %v2449, 64
        %v2466 = vpop.permute.xlu0 %2465
        %2467 = vrot.lane.b32.xlu0 %v2452, 64
        %v2468 = vpop.permute.xlu0 %2467
        %vm2477 = vcmask 785920
        %2478 = vst.msk [vmem:[#allocation6] sm:$0xff] %vm2477, %v2454
        %2479 = vst.msk [vmem:[#allocation6 + $0x18] sm:$0xff] %vm2477, %v2456
        %2480 = vst.msk [vmem:[#allocation6 + $0x30] sm:$0xff] %vm2477, %v2458
        %2481 = vst.msk [vmem:[#allocation6 + $0x48] sm:$0xff] %vm2477, %v2460
        %2482 = vst.msk [vmem:[#allocation6 + $0x60] sm:$0xff] %vm2477, %v2462
        %2483 = vst.msk [vmem:[#allocation6 + $0x78] sm:$0xff] %vm2477, %v2464
        %2484 = vst.msk [vmem:[#allocation6 + $0x90] sm:$0xff] %vm2477, %v2466
        %2485 = vst.msk [vmem:[#allocation6 + $0xa8] sm:$0xff] %vm2477, %v2468
        %2487 = vrot.lane.b32.xlu0 %v2330, 96
        %v2488 = vpop.permute.xlu0 %2487
        %2489 = vrot.lane.b32.xlu0 %v2332, 96
        %v2490 = vpop.permute.xlu0 %2489
        %2491 = vrot.lane.b32.xlu0 %v2334, 96
        %v2492 = vpop.permute.xlu0 %2491
        %2493 = vrot.lane.b32.xlu0 %v2336, 96
        %v2494 = vpop.permute.xlu0 %2493
        %2495 = vrot.lane.b32.xlu0 %v2338, 96
        %v2496 = vpop.permute.xlu0 %2495
        %2497 = vrot.lane.b32.xlu0 %v2340, 96
        %v2498 = vpop.permute.xlu0 %2497
        %2499 = vrot.lane.b32.xlu0 %v2342, 96
        %v2500 = vpop.permute.xlu0 %2499
        %2501 = vrot.lane.b32.xlu0 %v2344, 96
        %v2502 = vpop.permute.xlu0 %2501
        %vm2511 = vcmask 1048320
        %2512 = vst.msk [vmem:[#allocation6] sm:$0xff] %vm2511, %v2488
        %2513 = vst.msk [vmem:[#allocation6 + $0x18] sm:$0xff] %vm2511, %v2490
        %2514 = vst.msk [vmem:[#allocation6 + $0x30] sm:$0xff] %vm2511, %v2492
        %2515 = vst.msk [vmem:[#allocation6 + $0x48] sm:$0xff] %vm2511, %v2494
        %2516 = vst.msk [vmem:[#allocation6 + $0x60] sm:$0xff] %vm2511, %v2496
        %2517 = vst.msk [vmem:[#allocation6 + $0x78] sm:$0xff] %vm2511, %v2498
        %2518 = vst.msk [vmem:[#allocation6 + $0x90] sm:$0xff] %vm2511, %v2500
        %2519 = vst.msk [vmem:[#allocation6 + $0xa8] sm:$0xff] %vm2511, %v2502
        %v2521 = vrot.slane %v2344, 1
        %v2522 = vrot.slane %v2345, 1
        %v2523 = vsel %vm640, %v2521, %v2522
        %2532 = vst.msk [vmem:[#allocation6 + $0x8] sm:$0xff] %vm2178, %v2377
        %2533 = vst.msk [vmem:[#allocation6 + $0x20] sm:$0xff] %vm2178, %v2380
        %2534 = vst.msk [vmem:[#allocation6 + $0x38] sm:$0xff] %vm2178, %v2383
        %2535 = vst.msk [vmem:[#allocation6 + $0x50] sm:$0xff] %vm2178, %v2386
        %2536 = vst.msk [vmem:[#allocation6 + $0x68] sm:$0xff] %vm2178, %v2389
        %2537 = vst.msk [vmem:[#allocation6 + $0x80] sm:$0xff] %vm2178, %v2392
        %2538 = vst.msk [vmem:[#allocation6 + $0x98] sm:$0xff] %vm2178, %v2395
        %2539 = vst.msk [vmem:[#allocation6 + $0xb0] sm:$0xff] %vm2178, %v2523
        %v2540 = vrot.slane %v2344, 2
        %v2541 = vrot.slane %v2345, 2
        %v2542 = vsel %vm850, %v2540, %v2541
        %2543 = vrot.lane.b32.xlu0 %v2434, 32
        %v2544 = vpop.permute.xlu0 %2543
        %2545 = vrot.lane.b32.xlu0 %v2437, 32
        %v2546 = vpop.permute.xlu0 %2545
        %2547 = vrot.lane.b32.xlu0 %v2440, 32
        %v2548 = vpop.permute.xlu0 %2547
        %2549 = vrot.lane.b32.xlu0 %v2443, 32
        %v2550 = vpop.permute.xlu0 %2549
        %2551 = vrot.lane.b32.xlu0 %v2446, 32
        %v2552 = vpop.permute.xlu0 %2551
        %2553 = vrot.lane.b32.xlu0 %v2449, 32
        %v2554 = vpop.permute.xlu0 %2553
        %2555 = vrot.lane.b32.xlu0 %v2452, 32
        %v2556 = vpop.permute.xlu0 %2555
        %2557 = vrot.lane.b32.xlu0 %v2542, 32
        %v2558 = vpop.permute.xlu0 %2557
        %2567 = vst.msk [vmem:[#allocation6 + $0x8] sm:$0xff] %vm2420, %v2544
        %2568 = vst.msk [vmem:[#allocation6 + $0x20] sm:$0xff] %vm2420, %v2546
        %2569 = vst.msk [vmem:[#allocation6 + $0x38] sm:$0xff] %vm2420, %v2548
        %2570 = vst.msk [vmem:[#allocation6 + $0x50] sm:$0xff] %vm2420, %v2550
        %2571 = vst.msk [vmem:[#allocation6 + $0x68] sm:$0xff] %vm2420, %v2552
        %2572 = vst.msk [vmem:[#allocation6 + $0x80] sm:$0xff] %vm2420, %v2554
        %2573 = vst.msk [vmem:[#allocation6 + $0x98] sm:$0xff] %vm2420, %v2556
        %2574 = vst.msk [vmem:[#allocation6 + $0xb0] sm:$0xff] %vm2420, %v2558
        %2576 = vrot.lane.b32.xlu0 %v2332, 64
        %v2577 = vpop.permute.xlu0 %2576
        %2578 = vrot.lane.b32.xlu0 %v2334, 64
        %v2579 = vpop.permute.xlu0 %2578
        %2580 = vrot.lane.b32.xlu0 %v2336, 64
        %v2581 = vpop.permute.xlu0 %2580
        %2582 = vrot.lane.b32.xlu0 %v2338, 64
        %v2583 = vpop.permute.xlu0 %2582
        %2584 = vrot.lane.b32.xlu0 %v2340, 64
        %v2585 = vpop.permute.xlu0 %2584
        %2586 = vrot.lane.b32.xlu0 %v2342, 64
        %v2587 = vpop.permute.xlu0 %2586
        %2588 = vrot.lane.b32.xlu0 %v2344, 64
        %v2589 = vpop.permute.xlu0 %2588
        %2590 = vrot.lane.b32.xlu0 %v2346, 64
        %v2591 = vpop.permute.xlu0 %2590
        %2600 = vst.msk [vmem:[#allocation6 + $0x8] sm:$0xff] %vm2477, %v2577
        %2601 = vst.msk [vmem:[#allocation6 + $0x20] sm:$0xff] %vm2477, %v2579
        %2602 = vst.msk [vmem:[#allocation6 + $0x38] sm:$0xff] %vm2477, %v2581
        %2603 = vst.msk [vmem:[#allocation6 + $0x50] sm:$0xff] %vm2477, %v2583
        %2604 = vst.msk [vmem:[#allocation6 + $0x68] sm:$0xff] %vm2477, %v2585
        %2605 = vst.msk [vmem:[#allocation6 + $0x80] sm:$0xff] %vm2477, %v2587
        %2606 = vst.msk [vmem:[#allocation6 + $0x98] sm:$0xff] %vm2477, %v2589
        %2607 = vst.msk [vmem:[#allocation6 + $0xb0] sm:$0xff] %vm2477, %v2591
        %v2609 = vrot.slane %v2346, 1
        %v2610 = vrot.slane %v2347, 1
        %v2611 = vsel %vm640, %v2609, %v2610
        %2612 = vrot.lane.b32.xlu0 %v2380, 96
        %v2613 = vpop.permute.xlu0 %2612
        %2614 = vrot.lane.b32.xlu0 %v2383, 96
        %v2615 = vpop.permute.xlu0 %2614
        %2616 = vrot.lane.b32.xlu0 %v2386, 96
        %v2617 = vpop.permute.xlu0 %2616
        %2618 = vrot.lane.b32.xlu0 %v2389, 96
        %v2619 = vpop.permute.xlu0 %2618
        %2620 = vrot.lane.b32.xlu0 %v2392, 96
        %v2621 = vpop.permute.xlu0 %2620
        %2622 = vrot.lane.b32.xlu0 %v2395, 96
        %v2623 = vpop.permute.xlu0 %2622
        %2624 = vrot.lane.b32.xlu0 %v2523, 96
        %v2625 = vpop.permute.xlu0 %2624
        %2626 = vrot.lane.b32.xlu0 %v2611, 96
        %v2627 = vpop.permute.xlu0 %2626
        %2636 = vst.msk [vmem:[#allocation6 + $0x8] sm:$0xff] %vm2511, %v2613
        %2637 = vst.msk [vmem:[#allocation6 + $0x20] sm:$0xff] %vm2511, %v2615
        %2638 = vst.msk [vmem:[#allocation6 + $0x38] sm:$0xff] %vm2511, %v2617
        %2639 = vst.msk [vmem:[#allocation6 + $0x50] sm:$0xff] %vm2511, %v2619
        %2640 = vst.msk [vmem:[#allocation6 + $0x68] sm:$0xff] %vm2511, %v2621
        %2641 = vst.msk [vmem:[#allocation6 + $0x80] sm:$0xff] %vm2511, %v2623
        %2642 = vst.msk [vmem:[#allocation6 + $0x98] sm:$0xff] %vm2511, %v2625
        %2643 = vst.msk [vmem:[#allocation6 + $0xb0] sm:$0xff] %vm2511, %v2627
        %v2644 = vrot.slane %v2346, 2
        %v2645 = vrot.slane %v2347, 2
        %v2646 = vsel %vm850, %v2644, %v2645
        %2655 = vst.msk [vmem:[#allocation6 + $0x10] sm:$0xff] %vm2178, %v2437
        %2656 = vst.msk [vmem:[#allocation6 + $0x28] sm:$0xff] %vm2178, %v2440
        %2657 = vst.msk [vmem:[#allocation6 + $0x40] sm:$0xff] %vm2178, %v2443
        %2658 = vst.msk [vmem:[#allocation6 + $0x58] sm:$0xff] %vm2178, %v2446
        %2659 = vst.msk [vmem:[#allocation6 + $0x70] sm:$0xff] %vm2178, %v2449
        %2660 = vst.msk [vmem:[#allocation6 + $0x88] sm:$0xff] %vm2178, %v2452
        %2661 = vst.msk [vmem:[#allocation6 + $0xa0] sm:$0xff] %vm2178, %v2542
        %2662 = vst.msk [vmem:[#allocation6 + $0xb8] sm:$0xff] %vm2178, %v2646
        %v2663 = vld [vmem:[#allocation6] sm:$0xff]
        %v2664 = vld [vmem:[#allocation6 + $0x8] sm:$0xff]
        %v2665 = vld [vmem:[#allocation6 + $0x10] sm:$0xff]
        %v2666 = vld [vmem:[#allocation6 + $0x18] sm:$0xff]
        %v2667 = vld [vmem:[#allocation6 + $0x20] sm:$0xff]
        %v2668 = vld [vmem:[#allocation6 + $0x28] sm:$0xff]
        %v2669 = vld [vmem:[#allocation6 + $0x30] sm:$0xff]
        %v2670 = vld [vmem:[#allocation6 + $0x38] sm:$0xff]
        %v2671 = vld [vmem:[#allocation6 + $0x40] sm:$0xff]
        %v2672 = vld [vmem:[#allocation6 + $0x48] sm:$0xff]
        %v2673 = vld [vmem:[#allocation6 + $0x50] sm:$0xff]
        %v2674 = vld [vmem:[#allocation6 + $0x58] sm:$0xff]
        %v2675 = vld [vmem:[#allocation6 + $0x60] sm:$0xff]
        %v2676 = vld [vmem:[#allocation6 + $0x68] sm:$0xff]
        %v2677 = vld [vmem:[#allocation6 + $0x70] sm:$0xff]
        %v2678 = vld [vmem:[#allocation6 + $0x78] sm:$0xff]
        %v2679 = vld [vmem:[#allocation6 + $0x80] sm:$0xff]
        %v2680 = vld [vmem:[#allocation6 + $0x88] sm:$0xff]
        %v2681 = vld [vmem:[#allocation6 + $0x90] sm:$0xff]
        %v2682 = vld [vmem:[#allocation6 + $0x98] sm:$0xff]
        %v2683 = vld [vmem:[#allocation6 + $0xa0] sm:$0xff]
        %v2684 = vld [vmem:[#allocation6 + $0xa8] sm:$0xff]
        %v2685 = vld [vmem:[#allocation6 + $0xb0] sm:$0xff]
        %v2686 = vld [vmem:[#allocation6 + $0xb8] sm:$0xff]
        %v2687 = vpack.c.bf16 %v2666, %v2663
        %v2688 = vpack.c.bf16 %v2667, %v2664
        %v2689 = vpack.c.bf16 %v2668, %v2665
        %v2690 = vpack.c.bf16 %v2672, %v2669
        %v2691 = vpack.c.bf16 %v2673, %v2670
        %v2692 = vpack.c.bf16 %v2674, %v2671
        %v2693 = vpack.c.bf16 %v2678, %v2675
        %v2694 = vpack.c.bf16 %v2679, %v2676
        %v2695 = vpack.c.bf16 %v2680, %v2677
        %v2696 = vpack.c.bf16 %v2684, %v2681
        %v2697 = vpack.c.bf16 %v2685, %v2682
        %v2698 = vpack.c.bf16 %v2686, %v2683
        %v2699 = vld [vmem:[%s3] sm:$0xf]
        %v2700 = vld [vmem:[%s3 + $0x4] sm:$0xf]
        %v2701 = vld [vmem:[%s3 + $0x8] sm:$0xf]
        %v2702 = vld [vmem:[%s3 + $0xc] sm:$0xf]
        %v2703 = vld [vmem:[%s3 + $0x10] sm:$0xf]
        %v2704 = vld [vmem:[%s3 + $0x14] sm:$0xf]
        %v2705 = vld [vmem:[%s3 + $0x18] sm:$0xf]
        %v2706 = vld [vmem:[%s3 + $0x1c] sm:$0xf]
        %v2707 = vld [vmem:[%s3 + $0x20] sm:$0xf]
        %v2708 = vld [vmem:[%s3 + $0x24] sm:$0xf]
        %v2709 = vld [vmem:[%s3 + $0x28] sm:$0xf]
        %v2710 = vld [vmem:[%s3 + $0x2c] sm:$0xf]
        %v2711 = vld [vmem:[%s3 + $0x30] sm:$0xf]
        %v2712 = vld [vmem:[%s3 + $0x34] sm:$0xf]
        %v2713 = vld [vmem:[%s3 + $0x38] sm:$0xf]
        %v2714 = vld [vmem:[%s3 + $0x3c] sm:$0xf]
        %v2715 = vld [vmem:[%s3 + $0x40] sm:$0xf]
        %v2716 = vld [vmem:[%s3 + $0x44] sm:$0xf]
        %v2717 = vld [vmem:[%s3 + $0x48] sm:$0xf]
        %v2718 = vld [vmem:[%s3 + $0x4c] sm:$0xf]
        %v2719 = vld [vmem:[%s3 + $0x50] sm:$0xf]
        %v2720 = vld [vmem:[%s3 + $0x54] sm:$0xf]
        %v2721 = vld [vmem:[%s3 + $0x58] sm:$0xf]
        %v2722 = vld [vmem:[%s3 + $0x5c] sm:$0xf]
        %v2723 = vld [vmem:[%s3 + $0x60] sm:$0xf]
        %v2724 = vld [vmem:[%s3 + $0x64] sm:$0xf]
        %v2725 = vld [vmem:[%s3 + $0x68] sm:$0xf]
        %v2726 = vld [vmem:[%s3 + $0x6c] sm:$0xf]
        %v2727 = vld [vmem:[%s3 + $0x70] sm:$0xf]
        %v2728 = vld [vmem:[%s3 + $0x74] sm:$0xf]
        %v2729 = vld [vmem:[%s3 + $0x78] sm:$0xf]
        %v2730 = vld [vmem:[%s3 + $0x7c] sm:$0xf]
        %v2731 = vld [vmem:[%s3 + $0x80] sm:$0xf]
        %v2732 = vld [vmem:[%s3 + $0x84] sm:$0xf]
        %v2733 = vld [vmem:[%s3 + $0x88] sm:$0xf]
        %v2734 = vld [vmem:[%s3 + $0x8c] sm:$0xf]
        %v2735 = vld [vmem:[%s4] sm:$0x1]
        %v2737 = vlaneseq
        %v2738 = vshrl.u32 %v2737, 7
        %v2739 = vsub.s32 0, %v2738
        %v2740 = vrot.slane %v2735, %v2739
        %v2778 = vunpack.c.l.b16 %v2699
        %v2779 = vunpack.c.l.b16 %v2700
        %v2780 = vunpack.c.l.b16 %v2701
        %v2781 = vunpack.c.l.b16 %v2702
        %v2782 = vunpack.c.l.b16 %v2703
        %v2783 = vunpack.c.l.b16 %v2704
        %v2784 = vunpack.c.l.b16 %v2705
        %v2785 = vunpack.c.l.b16 %v2706
        %v2786 = vunpack.c.l.b16 %v2707
        %v2787 = vunpack.c.l.b16 %v2708
        %v2788 = vunpack.c.l.b16 %v2709
        %v2789 = vunpack.c.l.b16 %v2710
        %v2790 = vunpack.c.l.b16 %v2711
        %v2791 = vunpack.c.l.b16 %v2712
        %v2792 = vunpack.c.l.b16 %v2713
        %v2793 = vunpack.c.l.b16 %v2714
        %v2794 = vunpack.c.l.b16 %v2715
        %v2795 = vunpack.c.l.b16 %v2716
        %v2796 = vunpack.c.l.b16 %v2717
        %v2797 = vunpack.c.l.b16 %v2718
        %v2798 = vunpack.c.l.b16 %v2719
        %v2799 = vunpack.c.l.b16 %v2720
        %v2800 = vunpack.c.l.b16 %v2721
        %v2801 = vunpack.c.l.b16 %v2722
        %v2802 = vunpack.c.l.b16 %v2723
        %v2803 = vunpack.c.l.b16 %v2724
        %v2804 = vunpack.c.l.b16 %v2725
        %v2805 = vunpack.c.l.b16 %v2726
        %v2806 = vunpack.c.l.b16 %v2727
        %v2807 = vunpack.c.l.b16 %v2728
        %v2808 = vunpack.c.l.b16 %v2729
        %v2809 = vunpack.c.l.b16 %v2730
        %v2810 = vunpack.c.l.b16 %v2731
        %v2811 = vunpack.c.l.b16 %v2732
        %v2812 = vunpack.c.l.b16 %v2733
        %v2813 = vunpack.c.l.b16 %v2734
        %v2814 = vpack.c.b16 %v2779, %v2778
        %v2815 = vpack.c.b16 %v2781, %v2780
        %v2816 = vpack.c.b16 %v2783, %v2782
        %v2817 = vpack.c.b16 %v2785, %v2784
        %v2818 = vpack.c.b16 %v2787, %v2786
        %v2819 = vpack.c.b16 %v2789, %v2788
        %v2820 = vpack.c.b16 %v2791, %v2790
        %v2821 = vpack.c.b16 %v2793, %v2792
        %v2822 = vpack.c.b16 %v2795, %v2794
        %v2823 = vpack.c.b16 %v2797, %v2796
        %v2824 = vpack.c.b16 %v2799, %v2798
        %v2825 = vpack.c.b16 %v2801, %v2800
        %v2826 = vpack.c.b16 %v2803, %v2802
        %v2827 = vpack.c.b16 %v2805, %v2804
        %v2828 = vpack.c.b16 %v2807, %v2806
        %v2829 = vpack.c.b16 %v2809, %v2808
        %v2830 = vpack.c.b16 %v2811, %v2810
        %v2831 = vpack.c.b16 %v2813, %v2812
        %v2851 = vsel %vm2178, %v2689, 0
        %v2854 = vsel %vm2178, %v2692, 0
        %v2857 = vsel %vm2178, %v2695, 0
        %v2860 = vsel %vm2178, %v2698, 0
        %2862 = vmatprep.subr.bf16.mxu0 0
        %2863 = vmatpush1.bf16.msra.mxu0 %v2814
        %2864 = vmatprep.subr.bf16.mxu0 0
        %2865 = vmatpush1.bf16.msra.mxu0 %v2815
        %2866 = vmatprep.subr.bf16.mxu0 0
        %2867 = vmatpush1.bf16.msra.mxu0 %v2816
        %2868 = vmatprep.subr.bf16.mxu0 0
        %2869 = vmatpush1.bf16.msra.mxu0 %v2817
        %2870 = vmatprep.subr.bf16.mxu0 0
        %2871 = vmatpush1.bf16.msra.mxu0 %v2818
        %2872 = vmatprep.subr.bf16.mxu0 0
        %2873 = vmatpush1.bf16.msra.mxu0 %v2819
        %2874 = vmatprep.subr.bf16.mxu0 0
        %2875 = vmatpush1.bf16.msra.mxu0 %v2820
        %2876 = vmatprep.subr.bf16.mxu0 0
        %2877 = vmatpush1.bf16.msra.mxu0 %v2821
        %2878 = vmatprep.subr.bf16.mxu0 0
        %2879 = vmatpush1.bf16.msra.mxu0 %v2822
        %2880 = vmatprep.subr.bf16.mxu0 0
        %2881 = vmatpush1.bf16.msra.mxu0 %v2823
        %2882 = vmatprep.subr.bf16.mxu0 0
        %2883 = vmatpush1.bf16.msra.mxu0 %v2824
        %2884 = vmatprep.subr.bf16.mxu0 0
        %2885 = vmatpush1.bf16.msra.mxu0 %v2825
        %2886 = vmatprep.subr.bf16.mxu0 0
        %2887 = vmatpush1.bf16.msra.mxu0 %v2826
        %2888 = vmatprep.subr.bf16.mxu0 0
        %2889 = vmatpush1.bf16.msra.mxu0 %v2827
        %2890 = vmatprep.subr.bf16.mxu0 0
        %2891 = vmatpush1.bf16.msra.mxu0 %v2828
        %2892 = vmatprep.subr.bf16.mxu0 0
        %2893 = vmatpush1.bf16.msra.mxu0 %v2829
        %2894 = vmatprep.mubr.bf16.mxu0 %v2688
        %2895 = vmatmul.mubr.bf16.gmra.mrb[0].mxu0 %v2687
        %v2896 = vpop.f32.mrb[0].mxu0
        %v2897 = vadd.f32 %v2740, %v2896
        %v2898 = vpop.f32.mrb[0].mxu0
        %v2899 = vpop.f32.mrb[0].mxu0
        %v2900 = vadd.f32 %v2740, %v2899
        %v2901 = vpop.f32.mrb[0].mxu0
        %2902 = vmatprep.mubr.bf16.mxu0 %v2691
        %2903 = vmatmul.mubr.bf16.gmra.mrb[0].mxu0 %v2690
        %v2904 = vpop.f32.mrb[0].mxu0
        %v2905 = vadd.f32 %v2740, %v2904
        %v2906 = vpop.f32.mrb[0].mxu0
        %v2907 = vpop.f32.mrb[0].mxu0
        %v2908 = vadd.f32 %v2740, %v2907
        %v2909 = vpop.f32.mrb[0].mxu0
        %2910 = vmatprep.mubr.bf16.mxu0 %v2694
        %2911 = vmatmul.mubr.bf16.gmra.mrb[0].mxu0 %v2693
        %v2912 = vpop.f32.mrb[0].mxu0
        %v2913 = vadd.f32 %v2740, %v2912
        %v2914 = vpop.f32.mrb[0].mxu0
        %v2915 = vpop.f32.mrb[0].mxu0
        %v2916 = vadd.f32 %v2740, %v2915
        %v2917 = vpop.f32.mrb[0].mxu0
        %2918 = vmatprep.mubr.bf16.mxu0 %v2697
        %2919 = vmatmul.mubr.bf16.gmra.mrb[0].mxu0 %v2696
        %v2920 = vpop.f32.mrb[0].mxu0
        %v2921 = vadd.f32 %v2740, %v2920
        %v2922 = vpop.f32.mrb[0].mxu0
        %v2923 = vpop.f32.mrb[0].mxu0
        %v2924 = vadd.f32 %v2740, %v2923
        %v2925 = vpop.f32.mrb[0].mxu0
        %2926 = vdwg.mxu0
        %2927 = vmatprep.subr.bf16.mxu0 0
        %2928 = vmatpush1.bf16.msra.mxu0 %v2830
        %2929 = vmatprep.subr.bf16.mxu0 0
        %2930 = vmatpush1.bf16.msra.mxu0 %v2831
        %2931 = vmatprep.subr.bf16.mxu0 0
        %2932 = vmatpush1.bf16.msra.mxu0 0
        %2933 = vmatprep.subr.bf16.mxu0 0
        %2934 = vmatpush1.bf16.msra.mxu0 0
        %2935 = vmatprep.subr.bf16.mxu0 0
        %2936 = vmatpush1.bf16.msra.mxu0 0
        %2937 = vmatprep.subr.bf16.mxu0 0
        %2938 = vmatpush1.bf16.msra.mxu0 0
        %2939 = vmatprep.subr.bf16.mxu0 0
        %2940 = vmatpush1.bf16.msra.mxu0 0
        %2941 = vmatprep.subr.bf16.mxu0 0
        %2942 = vmatpush1.bf16.msra.mxu0 0
        %2943 = vmatprep.subr.bf16.mxu0 0
        %2944 = vmatpush1.bf16.msra.mxu0 0
        %2945 = vmatprep.subr.bf16.mxu0 0
        %2946 = vmatpush1.bf16.msra.mxu0 0
        %2947 = vmatprep.subr.bf16.mxu0 0
        %2948 = vmatpush1.bf16.msra.mxu0 0
        %2949 = vmatprep.subr.bf16.mxu0 0
        %2950 = vmatpush1.bf16.msra.mxu0 0
        %2951 = vmatprep.subr.bf16.mxu0 0
        %2952 = vmatpush1.bf16.msra.mxu0 0
        %2953 = vmatprep.subr.bf16.mxu0 0
        %2954 = vmatpush1.bf16.msra.mxu0 0
        %2955 = vmatprep.subr.bf16.mxu0 0
        %2956 = vmatpush1.bf16.msra.mxu0 0
        %2957 = vmatprep.subr.bf16.mxu0 0
        %2958 = vmatpush1.bf16.msra.mxu0 0
        %2959 = vmatprep.mubr.bf16.mxu0 0
        %2960 = vmatmul.mubr.bf16.gmra.mrb[0].mxu0 %v2851
        %v2961 = vpop.f32.mrb[0].mxu0
        %v2962 = vadd.f32 %v2897, %v2961
        %v2963 = vpop.f32.mrb[0].mxu0
        %v2964 = vpop.f32.mrb[0].mxu0
        %v2965 = vadd.f32 %v2900, %v2964
        %v2966 = vpop.f32.mrb[0].mxu0
        %2967 = vmatprep.mubr.bf16.mxu0 0
        %2968 = vmatmul.mubr.bf16.gmra.mrb[0].mxu0 %v2854
        %v2969 = vpop.f32.mrb[0].mxu0
        %v2970 = vadd.f32 %v2905, %v2969
        %v2971 = vpop.f32.mrb[0].mxu0
        %v2972 = vpop.f32.mrb[0].mxu0
        %v2973 = vadd.f32 %v2908, %v2972
        %v2974 = vpop.f32.mrb[0].mxu0
        %2975 = vmatprep.mubr.bf16.mxu0 0
        %2976 = vmatmul.mubr.bf16.gmra.mrb[0].mxu0 %v2857
        %v2977 = vpop.f32.mrb[0].mxu0
        %v2978 = vadd.f32 %v2913, %v2977
        %v2979 = vpop.f32.mrb[0].mxu0
        %v2980 = vpop.f32.mrb[0].mxu0
        %v2981 = vadd.f32 %v2916, %v2980
        %v2982 = vpop.f32.mrb[0].mxu0
        %2983 = vmatprep.mubr.bf16.mxu0 0
        %2984 = vmatmul.mubr.bf16.gmra.mrb[0].mxu0 %v2860
        %v2985 = vpop.f32.mrb[0].mxu0
        %v2986 = vadd.f32 %v2921, %v2985
        %v2987 = vpop.f32.mrb[0].mxu0
        %v2988 = vpop.f32.mrb[0].mxu0
        %v2989 = vadd.f32 %v2924, %v2988
        %v2990 = vpop.f32.mrb[0].mxu0
        %2991 = vdwg.mxu0
        %v2992 = vmax.f32 %v2962, 0.0
        %v2993 = vmax.f32 %v2965, 0.0
        %v2994 = vmax.f32 %v2970, 0.0
        %v2995 = vmax.f32 %v2973, 0.0
        %v2996 = vmax.f32 %v2978, 0.0
        %v2997 = vmax.f32 %v2981, 0.0
        %v2998 = vmax.f32 %v2986, 0.0
        %v2999 = vmax.f32 %v2989, 0.0
        %vm3000 = vcmask 523264
        %3001 = vst.msk [vmem:[#allocation9] sm:$0xff] %vm3000, %v2992
        %3002 = vst.msk [vmem:[#allocation9 + $0x8] sm:$0xff] %vm3000, %v2993
        %3003 = vst.msk [vmem:[#allocation9 + $0x10] sm:$0xff] %vm3000, %v2994
        %3004 = vst.msk [vmem:[#allocation9 + $0x18] sm:$0xff] %vm3000, %v2995
        %3005 = vst.msk [vmem:[#allocation9 + $0x20] sm:$0xff] %vm3000, %v2996
        %3006 = vst.msk [vmem:[#allocation9 + $0x28] sm:$0xff] %vm3000, %v2997
        %3007 = vst.msk [vmem:[#allocation9 + $0x30] sm:$0xff] %vm3000, %v2998
        %3008 = vst.msk [vmem:[#allocation9 + $0x38] sm:$0xff] %vm3000, %v2999
        %v3009 = vld [vmem:[#allocation9] ss:$2 sm:$0xff]
        %s3010 = scalar_lea.vmem [#allocation9], 16
        %v3011 = vld [vmem:[%s3010] ss:$2 sm:$0xff]
        %s3012 = scalar_lea.vmem [#allocation9], 32
        %v3013 = vld [vmem:[%s3012] ss:$2 sm:$0xff]
        %s3014 = scalar_lea.vmem [#allocation9], 48
        %v3015 = vld [vmem:[%s3014] ss:$2 sm:$0xff]
        %s3016 = scalar_lea.vmem [#allocation9], 1
        %v3017 = vld [vmem:[%s3016] ss:$2 sm:$0xff]
        %s3018 = scalar_lea.vmem [#allocation9], 17
        %v3019 = vld [vmem:[%s3018] ss:$2 sm:$0xff]
        %s3020 = scalar_lea.vmem [#allocation9], 33
        %v3021 = vld [vmem:[%s3020] ss:$2 sm:$0xff]
        %s3022 = scalar_lea.vmem [#allocation9], 49
        %v3023 = vld [vmem:[%s3022] ss:$2 sm:$0xff]
        %v3024 = vmax.f32 %v3009, %v3017
        %v3025 = vmax.f32 %v3011, %v3019
        %v3026 = vmax.f32 %v3013, %v3021
        %v3027 = vmax.f32 %v3015, %v3023
        %v3032 = vrot.slane %v3024, 4
        %v3033 = vrot.slane %v3025, 4
        %v3034 = vrot.slane %v3026, 4
        %v3035 = vrot.slane %v3027, 4
        %v3040 = vmax.f32 %v3024, %v3032
        %v3041 = vmax.f32 %v3025, %v3033
        %v3042 = vmax.f32 %v3026, %v3034
        %v3043 = vmax.f32 %v3027, %v3035
        %vm3044 = vcmask 521216
        %3045 = vst.msk [vmem:[#allocation4] sm:$0x3f] %vm3044, 0.0
        %3046 = vst.msk [vmem:[#allocation4 + $0x8] sm:$0x3f] %vm3044, 0.0
        %3047 = vst.msk [vmem:[#allocation4 + $0x10] sm:$0x3f] %vm3044, 0.0
        %3048 = vst.msk [vmem:[#allocation4 + $0x18] sm:$0x3f] %vm3044, 0.0
        %3049 = vst.msk [vmem:[#allocation4 + $0x20] sm:$0x3f] %vm3044, 0.0
        %3050 = vst.msk [vmem:[#allocation4 + $0x28] sm:$0x3f] %vm3044, 0.0
        %s3051 = scalar_lea.vmem [#allocation4], 8
        %vm3052 = vcmask 519168
        %3053 = vst.msk [vmem:[%s3051 + $0x1] sm:$0xf] %vm3052, %v3040
        %3054 = vst.msk [vmem:[%s3051 + $0x9] sm:$0xf] %vm3052, %v3041
        %3055 = vst.msk [vmem:[%s3051 + $0x11] sm:$0xf] %vm3052, %v3042
        %3056 = vst.msk [vmem:[%s3051 + $0x19] sm:$0xf] %vm3052, %v3043
        %v3057 = vld [vmem:[#allocation4] sm:$0x3f]
        %v3058 = vld [vmem:[#allocation4 + $0x8] sm:$0x3f]
        %v3059 = vld [vmem:[#allocation4 + $0x10] sm:$0x3f]
        %v3060 = vld [vmem:[#allocation4 + $0x18] sm:$0x3f]
        %v3061 = vld [vmem:[#allocation4 + $0x20] sm:$0x3f]
        %v3062 = vld [vmem:[#allocation4 + $0x28] sm:$0x3f]
        %v3067 = vcombine.low %v3057, %v3058
        %v3068 = vcombine.low %v3059, %v3060
        %3071 = vst.msk [vmem:[#allocation7] sm:$0xff] %vm3000, %v3067
        %3072 = vst.msk [vmem:[#allocation7 + $0x28] sm:$0xff] %vm3000, %v3068
        %v3073 = vcombine.high %v3057, %v3057
        %v3074 = vcombine.high %v3058, %v3058
        %v3075 = vcombine.high %v3059, %v3059
        %v3076 = vcombine.high %v3060, %v3060
        %vm3077 = vcmask 1042432
        %vm3078 = vcmask 1046532
        %vm3079 = vmor %vm3077, %vm3078
        %v3080 = vrot.slane %v3057, 5
        %v3081 = vrot.slane %v3080, 4
        %v3082 = vrot.slane %v3073, 5
        %v3083 = vsel %vm3079, %v3081, %v3082
        %v3084 = vrot.slane %v3058, 5
        %v3085 = vrot.slane %v3084, 4
        %v3086 = vrot.slane %v3074, 5
        %v3087 = vsel %vm3079, %v3085, %v3086
        %v3088 = vrot.slane %v3059, 5
        %v3089 = vrot.slane %v3088, 4
        %v3090 = vrot.slane %v3075, 5
        %v3091 = vsel %vm3079, %v3089, %v3090
        %v3092 = vrot.slane %v3060, 5
        %v3093 = vrot.slane %v3092, 4
        %v3094 = vrot.slane %v3076, 5
        %v3095 = vsel %vm3079, %v3093, %v3094
        %v3096 = vcombine.low %v3083, %v3087
        %v3097 = vcombine.low %v3091, %v3095
        %3098 = vrot.lane.b32.xlu0 %v3096, 64
        %v3099 = vpop.permute.xlu0 %3098
        %3100 = vrot.lane.b32.xlu0 %v3097, 64
        %v3101 = vpop.permute.xlu0 %3100
        %vm3104 = vcmask 1048064
        %3105 = vst.msk [vmem:[#allocation7] sm:$0xff] %vm3104, %v3099
        %3106 = vst.msk [vmem:[#allocation7 + $0x28] sm:$0xff] %vm3104, %v3101
        %vm3107 = vcmask 1041408
        %vm3108 = vcmask 1045508
        %vm3109 = vmor %vm3107, %vm3108
        %v3110 = vrot.slane %v3057, 6
        %v3111 = vrot.slane %v3110, 4
        %v3112 = vrot.slane %v3073, 6
        %v3113 = vsel %vm3109, %v3111, %v3112
        %v3114 = vrot.slane %v3058, 6
        %v3115 = vrot.slane %v3114, 4
        %v3116 = vrot.slane %v3074, 6
        %v3117 = vsel %vm3109, %v3115, %v3116
        %v3118 = vrot.slane %v3059, 6
        %v3119 = vrot.slane %v3118, 4
        %v3120 = vrot.slane %v3075, 6
        %v3121 = vsel %vm3109, %v3119, %v3120
        %v3122 = vrot.slane %v3060, 6
        %v3123 = vrot.slane %v3122, 4
        %v3124 = vrot.slane %v3076, 6
        %v3125 = vsel %vm3109, %v3123, %v3124
        %v3126 = vcombine.low %v3113, %v3117
        %v3127 = vcombine.low %v3121, %v3125
        %3130 = vst.msk [vmem:[#allocation7 + $0x8] sm:$0xff] %vm3000, %v3126
        %3131 = vst.msk [vmem:[#allocation7 + $0x30] sm:$0xff] %vm3000, %v3127
        %v3133 = vcombine.low %v3058, %v3059
        %v3134 = vcombine.low %v3060, %v3061
        %3135 = vrot.lane.b32.xlu0 %v3133, 64
        %v3136 = vpop.permute.xlu0 %3135
        %3137 = vrot.lane.b32.xlu0 %v3134, 64
        %v3138 = vpop.permute.xlu0 %3137
        %3141 = vst.msk [vmem:[#allocation7 + $0x8] sm:$0xff] %vm3104, %v3136
        %3142 = vst.msk [vmem:[#allocation7 + $0x30] sm:$0xff] %vm3104, %v3138
        %v3143 = vcombine.high %v3061, %v3061
        %v3144 = vrot.slane %v3061, 5
        %v3145 = vrot.slane %v3144, 4
        %v3146 = vrot.slane %v3143, 5
        %v3147 = vsel %vm3079, %v3145, %v3146
        %v3148 = vcombine.low %v3087, %v3091
        %v3149 = vcombine.low %v3095, %v3147
        %3152 = vst.msk [vmem:[#allocation7 + $0x10] sm:$0xff] %vm3000, %v3148
        %3153 = vst.msk [vmem:[#allocation7 + $0x38] sm:$0xff] %vm3000, %v3149
        %v3154 = vrot.slane %v3061, 6
        %v3155 = vrot.slane %v3154, 4
        %v3156 = vrot.slane %v3143, 6
        %v3157 = vsel %vm3109, %v3155, %v3156
        %v3158 = vcombine.low %v3117, %v3121
        %v3159 = vcombine.low %v3125, %v3157
        %3160 = vrot.lane.b32.xlu0 %v3158, 64
        %v3161 = vpop.permute.xlu0 %3160
        %3162 = vrot.lane.b32.xlu0 %v3159, 64
        %v3163 = vpop.permute.xlu0 %3162
        %3166 = vst.msk [vmem:[#allocation7 + $0x10] sm:$0xff] %vm3104, %v3161
        %3167 = vst.msk [vmem:[#allocation7 + $0x38] sm:$0xff] %vm3104, %v3163
        %v3169 = vcombine.low %v3061, %v3062
        %3171 = vst.msk [vmem:[#allocation7 + $0x18] sm:$0xff] %vm3000, %v3068
        %3172 = vst.msk [vmem:[#allocation7 + $0x40] sm:$0xff] %vm3000, %v3169
        %v3173 = vcombine.high %v3062, %v3062
        %v3174 = vrot.slane %v3062, 5
        %v3175 = vrot.slane %v3174, 4
        %v3176 = vrot.slane %v3173, 5
        %v3177 = vsel %vm3079, %v3175, %v3176
        %v3178 = vcombine.low %v3147, %v3177
        %3179 = vrot.lane.b32.xlu0 %v3178, 64
        %v3180 = vpop.permute.xlu0 %3179
        %3182 = vst.msk [vmem:[#allocation7 + $0x18] sm:$0xff] %vm3104, %v3101
        %3183 = vst.msk [vmem:[#allocation7 + $0x40] sm:$0xff] %vm3104, %v3180
        %v3184 = vrot.slane %v3062, 6
        %v3185 = vrot.slane %v3184, 4
        %v3186 = vrot.slane %v3173, 6
        %v3187 = vsel %vm3109, %v3185, %v3186
        %v3188 = vcombine.low %v3157, %v3187
        %3190 = vst.msk [vmem:[#allocation7 + $0x20] sm:$0xff] %vm3000, %v3127
        %3191 = vst.msk [vmem:[#allocation7 + $0x48] sm:$0xff] %vm3000, %v3188
        %v3192 = vld [vmem:[#allocation7] sm:$0xff]
        %v3193 = vld [vmem:[#allocation7 + $0x8] sm:$0xff]
        %v3194 = vld [vmem:[#allocation7 + $0x10] sm:$0xff]
        %v3195 = vld [vmem:[#allocation7 + $0x18] sm:$0xff]
        %v3196 = vld [vmem:[#allocation7 + $0x20] sm:$0xff]
        %v3197 = vld [vmem:[#allocation7 + $0x28] sm:$0xff]
        %v3198 = vld [vmem:[#allocation7 + $0x30] sm:$0xff]
        %v3199 = vld [vmem:[#allocation7 + $0x38] sm:$0xff]
        %v3200 = vld [vmem:[#allocation7 + $0x40] sm:$0xff]
        %v3201 = vld [vmem:[#allocation7 + $0x48] sm:$0xff]
        %v3202 = vpack.c.bf16 %v3197, %v3192
        %v3203 = vpack.c.bf16 %v3198, %v3193
        %v3204 = vpack.c.bf16 %v3199, %v3194
        %v3205 = vpack.c.bf16 %v3200, %v3195
        %v3206 = vpack.c.bf16 %v3201, %v3196
        %v3207 = vld [vmem:[%s5] sm:$0xf]
        %v3208 = vld [vmem:[%s5 + $0x4] sm:$0xf]
        %v3209 = vld [vmem:[%s5 + $0x8] sm:$0xf]
        %v3210 = vld [vmem:[%s5 + $0xc] sm:$0xf]
        %v3211 = vld [vmem:[%s5 + $0x10] sm:$0xf]
        %v3212 = vld [vmem:[%s5 + $0x14] sm:$0xf]
        %v3213 = vld [vmem:[%s5 + $0x18] sm:$0xf]
        %v3214 = vld [vmem:[%s5 + $0x1c] sm:$0xf]
        %v3215 = vld [vmem:[%s5 + $0x20] sm:$0xf]
        %v3216 = vld [vmem:[%s5 + $0x24] sm:$0xf]
        %v3217 = vld [vmem:[%s5 + $0x28] sm:$0xf]
        %v3218 = vld [vmem:[%s5 + $0x2c] sm:$0xf]
        %v3219 = vld [vmem:[%s5 + $0x30] sm:$0xf]
        %v3220 = vld [vmem:[%s5 + $0x34] sm:$0xf]
        %v3221 = vld [vmem:[%s5 + $0x38] sm:$0xf]
        %v3222 = vld [vmem:[%s5 + $0x3c] sm:$0xf]
        %v3223 = vld [vmem:[%s5 + $0x40] sm:$0xf]
        %v3224 = vld [vmem:[%s5 + $0x44] sm:$0xf]
        %v3225 = vld [vmem:[%s5 + $0x48] sm:$0xf]
        %v3226 = vld [vmem:[%s5 + $0x4c] sm:$0xf]
        %v3227 = vld [vmem:[%s5 + $0x50] sm:$0xf]
        %v3228 = vld [vmem:[%s5 + $0x54] sm:$0xf]
        %v3229 = vld [vmem:[%s5 + $0x58] sm:$0xf]
        %v3230 = vld [vmem:[%s5 + $0x5c] sm:$0xf]
        %v3231 = vld [vmem:[%s5 + $0x60] sm:$0xf]
        %v3232 = vld [vmem:[%s5 + $0x64] sm:$0xf]
        %v3233 = vld [vmem:[%s5 + $0x68] sm:$0xf]
        %v3234 = vld [vmem:[%s5 + $0x6c] sm:$0xf]
        %v3235 = vld [vmem:[%s5 + $0x70] sm:$0xf]
        %v3236 = vld [vmem:[%s5 + $0x74] sm:$0xf]
        %v3237 = vld [vmem:[%s5 + $0x78] sm:$0xf]
        %v3238 = vld [vmem:[%s5 + $0x7c] sm:$0xf]
        %v3239 = vld [vmem:[%s5 + $0x80] sm:$0xf]
        %v3240 = vld [vmem:[%s5 + $0x84] sm:$0xf]
        %v3241 = vld [vmem:[%s5 + $0x88] sm:$0xf]
        %v3242 = vld [vmem:[%s5 + $0x8c] sm:$0xf]
        %v3243 = vld [vmem:[%s5 + $0x90] sm:$0xf]
        %v3244 = vld [vmem:[%s5 + $0x94] sm:$0xf]
        %v3245 = vld [vmem:[%s5 + $0x98] sm:$0xf]
        %v3246 = vld [vmem:[%s5 + $0x9c] sm:$0xf]
        %v3247 = vld [vmem:[%s5 + $0xa0] sm:$0xf]
        %v3248 = vld [vmem:[%s5 + $0xa4] sm:$0xf]
        %v3249 = vld [vmem:[%s5 + $0xa8] sm:$0xf]
        %v3250 = vld [vmem:[%s5 + $0xac] sm:$0xf]
        %v3251 = vld [vmem:[%s5 + $0xb0] sm:$0xf]
        %v3252 = vld [vmem:[%s5 + $0xb4] sm:$0xf]
        %v3253 = vld [vmem:[%s5 + $0xb8] sm:$0xf]
        %v3254 = vld [vmem:[%s5 + $0xbc] sm:$0xf]
        %v3255 = vld [vmem:[%s5 + $0xc0] sm:$0xf]
        %v3256 = vld [vmem:[%s5 + $0xc4] sm:$0xf]
        %v3257 = vld [vmem:[%s5 + $0xc8] sm:$0xf]
        %v3258 = vld [vmem:[%s5 + $0xcc] sm:$0xf]
        %v3259 = vld [vmem:[%s5 + $0xd0] sm:$0xf]
        %v3260 = vld [vmem:[%s5 + $0xd4] sm:$0xf]
        %v3261 = vld [vmem:[%s5 + $0xd8] sm:$0xf]
        %v3262 = vld [vmem:[%s5 + $0xdc] sm:$0xf]
        %v3263 = vld [vmem:[%s5 + $0xe0] sm:$0xf]
        %v3264 = vld [vmem:[%s5 + $0xe4] sm:$0xf]
        %v3265 = vld [vmem:[%s5 + $0xe8] sm:$0xf]
        %v3266 = vld [vmem:[%s5 + $0xec] sm:$0xf]
        %v3267 = vld [vmem:[%s5 + $0xf0] sm:$0xf]
        %v3268 = vld [vmem:[%s5 + $0xf4] sm:$0xf]
        %v3269 = vld [vmem:[%s5 + $0xf8] sm:$0xf]
        %v3270 = vld [vmem:[%s5 + $0xfc] sm:$0xf]
        %v3271 = vld [vmem:[%s5 + $0x100] sm:$0xf]
        %v3272 = vld [vmem:[%s5 + $0x104] sm:$0xf]
        %v3273 = vld [vmem:[%s5 + $0x108] sm:$0xf]
        %v3274 = vld [vmem:[%s5 + $0x10c] sm:$0xf]
        %v3275 = vld [vmem:[%s5 + $0x110] sm:$0xf]
        %v3276 = vld [vmem:[%s5 + $0x114] sm:$0xf]
        %v3277 = vld [vmem:[%s5 + $0x118] sm:$0xf]
        %v3278 = vld [vmem:[%s5 + $0x11c] sm:$0xf]
        %v3279 = vld [vmem:[%s6] sm:$0x1]
        %v3281 = vlaneseq
        %v3282 = vshrl.u32 %v3281, 7
        %v3283 = vsub.s32 0, %v3282
        %v3284 = vrot.slane %v3279, %v3283
        %v3358 = vunpack.c.l.b16 %v3207
        %v3359 = vunpack.c.l.b16 %v3208
        %v3360 = vunpack.c.l.b16 %v3209
        %v3361 = vunpack.c.l.b16 %v3210
        %v3362 = vunpack.c.l.b16 %v3211
        %v3363 = vunpack.c.l.b16 %v3212
        %v3364 = vunpack.c.l.b16 %v3213
        %v3365 = vunpack.c.l.b16 %v3214
        %v3366 = vunpack.c.l.b16 %v3215
        %v3367 = vunpack.c.l.b16 %v3216
        %v3368 = vunpack.c.l.b16 %v3217
        %v3369 = vunpack.c.l.b16 %v3218
        %v3370 = vunpack.c.l.b16 %v3219
        %v3371 = vunpack.c.l.b16 %v3220
        %v3372 = vunpack.c.l.b16 %v3221
        %v3373 = vunpack.c.l.b16 %v3222
        %v3374 = vunpack.c.l.b16 %v3223
        %v3375 = vunpack.c.l.b16 %v3224
        %v3376 = vunpack.c.l.b16 %v3225
        %v3377 = vunpack.c.l.b16 %v3226
        %v3378 = vunpack.c.l.b16 %v3227
        %v3379 = vunpack.c.l.b16 %v3228
        %v3380 = vunpack.c.l.b16 %v3229
        %v3381 = vunpack.c.l.b16 %v3230
        %v3382 = vunpack.c.l.b16 %v3231
        %v3383 = vunpack.c.l.b16 %v3232
        %v3384 = vunpack.c.l.b16 %v3233
        %v3385 = vunpack.c.l.b16 %v3234
        %v3386 = vunpack.c.l.b16 %v3235
        %v3387 = vunpack.c.l.b16 %v3236
        %v3388 = vunpack.c.l.b16 %v3237
        %v3389 = vunpack.c.l.b16 %v3238
        %v3390 = vunpack.c.l.b16 %v3239
        %v3391 = vunpack.c.l.b16 %v3240
        %v3392 = vunpack.c.l.b16 %v3241
        %v3393 = vunpack.c.l.b16 %v3242
        %v3394 = vunpack.c.l.b16 %v3243
        %v3395 = vunpack.c.l.b16 %v3244
        %v3396 = vunpack.c.l.b16 %v3245
        %v3397 = vunpack.c.l.b16 %v3246
        %v3398 = vunpack.c.l.b16 %v3247
        %v3399 = vunpack.c.l.b16 %v3248
        %v3400 = vunpack.c.l.b16 %v3249
        %v3401 = vunpack.c.l.b16 %v3250
        %v3402 = vunpack.c.l.b16 %v3251
        %v3403 = vunpack.c.l.b16 %v3252
        %v3404 = vunpack.c.l.b16 %v3253
        %v3405 = vunpack.c.l.b16 %v3254
        %v3406 = vunpack.c.l.b16 %v3255
        %v3407 = vunpack.c.l.b16 %v3256
        %v3408 = vunpack.c.l.b16 %v3257
        %v3409 = vunpack.c.l.b16 %v3258
        %v3410 = vunpack.c.l.b16 %v3259
        %v3411 = vunpack.c.l.b16 %v3260
        %v3412 = vunpack.c.l.b16 %v3261
        %v3413 = vunpack.c.l.b16 %v3262
        %v3414 = vunpack.c.l.b16 %v3263
        %v3415 = vunpack.c.l.b16 %v3264
        %v3416 = vunpack.c.l.b16 %v3265
        %v3417 = vunpack.c.l.b16 %v3266
        %v3418 = vunpack.c.l.b16 %v3267
        %v3419 = vunpack.c.l.b16 %v3268
        %v3420 = vunpack.c.l.b16 %v3269
        %v3421 = vunpack.c.l.b16 %v3270
        %v3422 = vunpack.c.l.b16 %v3271
        %v3423 = vunpack.c.l.b16 %v3272
        %v3424 = vunpack.c.l.b16 %v3273
        %v3425 = vunpack.c.l.b16 %v3274
        %v3426 = vunpack.c.l.b16 %v3275
        %v3427 = vunpack.c.l.b16 %v3276
        %v3428 = vunpack.c.l.b16 %v3277
        %v3429 = vunpack.c.l.b16 %v3278
        %v3430 = vpack.c.b16 %v3359, %v3358
        %v3431 = vpack.c.b16 %v3361, %v3360
        %v3432 = vpack.c.b16 %v3363, %v3362
        %v3433 = vpack.c.b16 %v3365, %v3364
        %v3434 = vpack.c.b16 %v3367, %v3366
        %v3435 = vpack.c.b16 %v3369, %v3368
        %v3436 = vpack.c.b16 %v3371, %v3370
        %v3437 = vpack.c.b16 %v3373, %v3372
        %v3438 = vpack.c.b16 %v3375, %v3374
        %v3439 = vpack.c.b16 %v3377, %v3376
        %v3440 = vpack.c.b16 %v3379, %v3378
        %v3441 = vpack.c.b16 %v3381, %v3380
        %v3442 = vpack.c.b16 %v3383, %v3382
        %v3443 = vpack.c.b16 %v3385, %v3384
        %v3444 = vpack.c.b16 %v3387, %v3386
        %v3445 = vpack.c.b16 %v3389, %v3388
        %v3446 = vpack.c.b16 %v3391, %v3390
        %v3447 = vpack.c.b16 %v3393, %v3392
        %v3448 = vpack.c.b16 %v3395, %v3394
        %v3449 = vpack.c.b16 %v3397, %v3396
        %v3450 = vpack.c.b16 %v3399, %v3398
        %v3451 = vpack.c.b16 %v3401, %v3400
        %v3452 = vpack.c.b16 %v3403, %v3402
        %v3453 = vpack.c.b16 %v3405, %v3404
        %v3454 = vpack.c.b16 %v3407, %v3406
        %v3455 = vpack.c.b16 %v3409, %v3408
        %v3456 = vpack.c.b16 %v3411, %v3410
        %v3457 = vpack.c.b16 %v3413, %v3412
        %v3458 = vpack.c.b16 %v3415, %v3414
        %v3459 = vpack.c.b16 %v3417, %v3416
        %v3460 = vpack.c.b16 %v3419, %v3418
        %v3461 = vpack.c.b16 %v3421, %v3420
        %v3462 = vpack.c.b16 %v3423, %v3422
        %v3463 = vpack.c.b16 %v3425, %v3424
        %v3464 = vpack.c.b16 %v3427, %v3426
        %v3465 = vpack.c.b16 %v3429, %v3428
        %v3503 = vsel %vm3000, %v3206, 0
        %3505 = vmatprep.subr.bf16.mxu0 0
        %3506 = vmatpush1.bf16.msra.mxu0 %v3430
        %3507 = vmatprep.subr.bf16.mxu0 0
        %3508 = vmatpush1.bf16.msra.mxu0 %v3431
        %3509 = vmatprep.subr.bf16.mxu0 0
        %3510 = vmatpush1.bf16.msra.mxu0 %v3432
        %3511 = vmatprep.subr.bf16.mxu0 0
        %3512 = vmatpush1.bf16.msra.mxu0 %v3433
        %3513 = vmatprep.subr.bf16.mxu0 0
        %3514 = vmatpush1.bf16.msra.mxu0 %v3434
        %3515 = vmatprep.subr.bf16.mxu0 0
        %3516 = vmatpush1.bf16.msra.mxu0 %v3435
        %3517 = vmatprep.subr.bf16.mxu0 0
        %3518 = vmatpush1.bf16.msra.mxu0 %v3436
        %3519 = vmatprep.subr.bf16.mxu0 0
        %3520 = vmatpush1.bf16.msra.mxu0 %v3437
        %3521 = vmatprep.subr.bf16.mxu0 0
        %3522 = vmatpush1.bf16.msra.mxu0 %v3438
        %3523 = vmatprep.subr.bf16.mxu0 0
        %3524 = vmatpush1.bf16.msra.mxu0 %v3439
        %3525 = vmatprep.subr.bf16.mxu0 0
        %3526 = vmatpush1.bf16.msra.mxu0 %v3440
        %3527 = vmatprep.subr.bf16.mxu0 0
        %3528 = vmatpush1.bf16.msra.mxu0 %v3441
        %3529 = vmatprep.subr.bf16.mxu0 0
        %3530 = vmatpush1.bf16.msra.mxu0 %v3442
        %3531 = vmatprep.subr.bf16.mxu0 0
        %3532 = vmatpush1.bf16.msra.mxu0 %v3443
        %3533 = vmatprep.subr.bf16.mxu0 0
        %3534 = vmatpush1.bf16.msra.mxu0 %v3444
        %3535 = vmatprep.subr.bf16.mxu0 0
        %3536 = vmatpush1.bf16.msra.mxu0 %v3445
        %3537 = vmatprep.mubr.bf16.mxu0 %v3203
        %3538 = vmatmul.mubr.bf16.gmra.mrb[0].mxu0 %v3202
        %v3539 = vpop.f32.mrb[0].mxu0
        %v3540 = vadd.f32 %v3284, %v3539
        %v3541 = vpop.f32.mrb[0].mxu0
        %v3542 = vpop.f32.mrb[0].mxu0
        %v3543 = vadd.f32 %v3284, %v3542
        %v3544 = vpop.f32.mrb[0].mxu0
        %3545 = vdwg.mxu0
        %3546 = vmatprep.subr.bf16.mxu0 0
        %3547 = vmatpush1.bf16.msra.mxu0 %v3446
        %3548 = vmatprep.subr.bf16.mxu0 0
        %3549 = vmatpush1.bf16.msra.mxu0 %v3447
        %3550 = vmatprep.subr.bf16.mxu0 0
        %3551 = vmatpush1.bf16.msra.mxu0 %v3448
        %3552 = vmatprep.subr.bf16.mxu0 0
        %3553 = vmatpush1.bf16.msra.mxu0 %v3449
        %3554 = vmatprep.subr.bf16.mxu0 0
        %3555 = vmatpush1.bf16.msra.mxu0 %v3450
        %3556 = vmatprep.subr.bf16.mxu0 0
        %3557 = vmatpush1.bf16.msra.mxu0 %v3451
        %3558 = vmatprep.subr.bf16.mxu0 0
        %3559 = vmatpush1.bf16.msra.mxu0 %v3452
        %3560 = vmatprep.subr.bf16.mxu0 0
        %3561 = vmatpush1.bf16.msra.mxu0 %v3453
        %3562 = vmatprep.subr.bf16.mxu0 0
        %3563 = vmatpush1.bf16.msra.mxu0 %v3454
        %3564 = vmatprep.subr.bf16.mxu0 0
        %3565 = vmatpush1.bf16.msra.mxu0 %v3455
        %3566 = vmatprep.subr.bf16.mxu0 0
        %3567 = vmatpush1.bf16.msra.mxu0 %v3456
        %3568 = vmatprep.subr.bf16.mxu0 0
        %3569 = vmatpush1.bf16.msra.mxu0 %v3457
        %3570 = vmatprep.subr.bf16.mxu0 0
        %3571 = vmatpush1.bf16.msra.mxu0 %v3458
        %3572 = vmatprep.subr.bf16.mxu0 0
        %3573 = vmatpush1.bf16.msra.mxu0 %v3459
        %3574 = vmatprep.subr.bf16.mxu0 0
        %3575 = vmatpush1.bf16.msra.mxu0 %v3460
        %3576 = vmatprep.subr.bf16.mxu0 0
        %3577 = vmatpush1.bf16.msra.mxu0 %v3461
        %3578 = vmatprep.mubr.bf16.mxu0 %v3205
        %3579 = vmatmul.mubr.bf16.gmra.mrb[0].mxu0 %v3204
        %v3580 = vpop.f32.mrb[0].mxu0
        %v3581 = vadd.f32 %v3540, %v3580
        %v3582 = vpop.f32.mrb[0].mxu0
        %v3583 = vpop.f32.mrb[0].mxu0
        %v3584 = vadd.f32 %v3543, %v3583
        %v3585 = vpop.f32.mrb[0].mxu0
        %3586 = vdwg.mxu0
        %3587 = vmatprep.subr.bf16.mxu0 0
        %3588 = vmatpush1.bf16.msra.mxu0 %v3462
        %3589 = vmatprep.subr.bf16.mxu0 0
        %3590 = vmatpush1.bf16.msra.mxu0 %v3463
        %3591 = vmatprep.subr.bf16.mxu0 0
        %3592 = vmatpush1.bf16.msra.mxu0 %v3464
        %3593 = vmatprep.subr.bf16.mxu0 0
        %3594 = vmatpush1.bf16.msra.mxu0 %v3465
        %3595 = vmatprep.subr.bf16.mxu0 0
        %3596 = vmatpush1.bf16.msra.mxu0 0
        %3597 = vmatprep.subr.bf16.mxu0 0
        %3598 = vmatpush1.bf16.msra.mxu0 0
        %3599 = vmatprep.subr.bf16.mxu0 0
        %3600 = vmatpush1.bf16.msra.mxu0 0
        %3601 = vmatprep.subr.bf16.mxu0 0
        %3602 = vmatpush1.bf16.msra.mxu0 0
        %3603 = vmatprep.subr.bf16.mxu0 0
        %3604 = vmatpush1.bf16.msra.mxu0 0
        %3605 = vmatprep.subr.bf16.mxu0 0
        %3606 = vmatpush1.bf16.msra.mxu0 0
        %3607 = vmatprep.subr.bf16.mxu0 0
        %3608 = vmatpush1.bf16.msra.mxu0 0
        %3609 = vmatprep.subr.bf16.mxu0 0
        %3610 = vmatpush1.bf16.msra.mxu0 0
        %3611 = vmatprep.subr.bf16.mxu0 0
        %3612 = vmatpush1.bf16.msra.mxu0 0
        %3613 = vmatprep.subr.bf16.mxu0 0
        %3614 = vmatpush1.bf16.msra.mxu0 0
        %3615 = vmatprep.subr.bf16.mxu0 0
        %3616 = vmatpush1.bf16.msra.mxu0 0
        %3617 = vmatprep.subr.bf16.mxu0 0
        %3618 = vmatpush1.bf16.msra.mxu0 0
        %3619 = vmatprep.mubr.bf16.mxu0 0
        %3620 = vmatmul.mubr.bf16.gmra.mrb[0].mxu0 %v3503
        %v3621 = vpop.f32.mrb[0].mxu0
        %v3622 = vadd.f32 %v3581, %v3621
        %v3623 = vpop.f32.mrb[0].mxu0
        %v3624 = vpop.f32.mrb[0].mxu0
        %v3625 = vadd.f32 %v3584, %v3624
        %v3626 = vpop.f32.mrb[0].mxu0
        %3627 = vdwg.mxu0
        %v3628 = vmax.f32 %v3622, 0.0
        %v3629 = vmax.f32 %v3625, 0.0
        %v3630 = vadd.f32 %v3628, %v3629
        %v3631 = vrot.slane %v3630, 4
        %v3632 = vadd.f32 %v3630, %v3631
        %v3633 = vrot.slane %v3632, 2
        %v3634 = vadd.f32 %v3632, %v3633
        %v3635 = vrot.slane %v3634, 1
        %v3636 = vadd.f32 %v3634, %v3635
        %v3637 = vrcp.pop 16.0
        %v3638 = vmul.f32 %v3636, %v3637
        %v3639 = vld [vmem:[%s7] sm:$0xff]
        %v3640 = vld [vmem:[%s7 + $0x8] sm:$0xff]
        %v3641 = vld [vmem:[%s7 + $0x10] sm:$0xff]
        %v3642 = vld [vmem:[%s7 + $0x18] sm:$0xff]
        %v3643 = vld [vmem:[%s7 + $0x20] sm:$0xff]
        %v3644 = vld [vmem:[%s7 + $0x28] sm:$0xff]
        %v3645 = vld [vmem:[%s7 + $0x30] sm:$0xff]
        %v3646 = vld [vmem:[%s7 + $0x38] sm:$0xff]
        %v3647 = vld [vmem:[%s7 + $0x40] sm:$0xff]
        %v3648 = vld [vmem:[%s7 + $0x48] sm:$0xff]
        %v3649 = vld [vmem:[%s7 + $0x50] sm:$0xff]
        %v3650 = vld [vmem:[%s7 + $0x58] sm:$0xff]
        %v3651 = vld [vmem:[%s7 + $0x60] sm:$0xff]
        %v3652 = vld [vmem:[%s7 + $0x68] sm:$0xff]
        %v3653 = vld [vmem:[%s7 + $0x70] sm:$0xff]
        %v3654 = vld [vmem:[%s7 + $0x78] sm:$0xff]
        %v3655 = vld [vmem:[%s8] sm:$0x1]
        %3656 = vmatprep.subr.mxu0 0.0
        %3657 = vmatpush1.msra.mxu0 %v3639
        %3658 = vmatprep.subr.mxu0 0.0
        %3659 = vmatpush1.msra.mxu0 %v3640
        %3660 = vmatprep.subr.mxu0 0.0
        %3661 = vmatpush1.msra.mxu0 %v3641
        %3662 = vmatprep.subr.mxu0 0.0
        %3663 = vmatpush1.msra.mxu0 %v3642
        %3664 = vmatprep.subr.mxu0 0.0
        %3665 = vmatpush1.msra.mxu0 %v3643
        %3666 = vmatprep.subr.mxu0 0.0
        %3667 = vmatpush1.msra.mxu0 %v3644
        %3668 = vmatprep.subr.mxu0 0.0
        %3669 = vmatpush1.msra.mxu0 %v3645
        %3670 = vmatprep.subr.mxu0 0.0
        %3671 = vmatpush1.msra.mxu0 %v3646
        %3672 = vmatprep.subr.mxu0 0.0
        %3673 = vmatpush1.msra.mxu0 %v3647
        %3674 = vmatprep.subr.mxu0 0.0
        %3675 = vmatpush1.msra.mxu0 %v3648
        %3676 = vmatprep.subr.mxu0 0.0
        %3677 = vmatpush1.msra.mxu0 %v3649
        %3678 = vmatprep.subr.mxu0 0.0
        %3679 = vmatpush1.msra.mxu0 %v3650
        %3680 = vmatprep.subr.mxu0 0.0
        %3681 = vmatpush1.msra.mxu0 %v3651
        %3682 = vmatprep.subr.mxu0 0.0
        %3683 = vmatpush1.msra.mxu0 %v3652
        %3684 = vmatprep.subr.mxu0 0.0
        %3685 = vmatpush1.msra.mxu0 %v3653
        %3686 = vmatprep.subr.mxu0 0.0
        %3687 = vmatpush1.msra.mxu0 %v3654
        %3688 = vmatprep.subr.mxu0 0.0
        %3689 = vmatpush1.msra.mxu0 0.0
        %3690 = vmatprep.subr.mxu0 0.0
        %3691 = vmatpush1.msra.mxu0 0.0
        %3692 = vmatprep.subr.mxu0 0.0
        %3693 = vmatpush1.msra.mxu0 0.0
        %3694 = vmatprep.subr.mxu0 0.0
        %3695 = vmatpush1.msra.mxu0 0.0
        %3696 = vmatprep.subr.mxu0 0.0
        %3697 = vmatpush1.msra.mxu0 0.0
        %3698 = vmatprep.subr.mxu0 0.0
        %3699 = vmatpush1.msra.mxu0 0.0
        %3700 = vmatprep.subr.mxu0 0.0
        %3701 = vmatpush1.msra.mxu0 0.0
        %3702 = vmatprep.subr.mxu0 0.0
        %3703 = vmatpush1.msra.mxu0 0.0
        %3704 = vmatprep.subr.mxu0 0.0
        %3705 = vmatpush1.msra.mxu0 0.0
        %3706 = vmatprep.subr.mxu0 0.0
        %3707 = vmatpush1.msra.mxu0 0.0
        %3708 = vmatprep.subr.mxu0 0.0
        %3709 = vmatpush1.msra.mxu0 0.0
        %3710 = vmatprep.subr.mxu0 0.0
        %3711 = vmatpush1.msra.mxu0 0.0
        %3712 = vmatprep.subr.mxu0 0.0
        %3713 = vmatpush1.msra.mxu0 0.0
        %3714 = vmatprep.subr.mxu0 0.0
        %3715 = vmatpush1.msra.mxu0 0.0
        %3716 = vmatprep.subr.mxu0 0.0
        %3717 = vmatpush1.msra.mxu0 0.0
        %3718 = vmatprep.subr.mxu0 0.0
        %3719 = vmatpush1.msra.mxu0 0.0
        %3720 = vmatprep.mubr.f32.mxu0 0.0
        %3721 = vmatmul.mubr.f32.gmra.mrb[0].mxu0 %v3638
        %v3722 = vpop.f32.mrb[0].mxu0
        %v3723 = vadd.f32 %v3655, %v3722
        %v3724 = vpop.f32.mrb[0].mxu0
        %3725 = vdwg.mxu0
        %v3726 = vmax.f32 %v3723, 0.0
        %v3727 = vld [vmem:[%s9] sm:$0xff]
        %v3728 = vld [vmem:[%s9 + $0x8] sm:$0xff]
        %v3729 = vld [vmem:[%s9 + $0x10] sm:$0xff]
        %v3730 = vld [vmem:[%s9 + $0x18] sm:$0xff]
        %v3731 = vld [vmem:[%s9 + $0x20] sm:$0xff]
        %v3732 = vld [vmem:[%s9 + $0x28] sm:$0xff]
        %v3733 = vld [vmem:[%s9 + $0x30] sm:$0xff]
        %v3734 = vld [vmem:[%s9 + $0x38] sm:$0xff]
        %v3735 = vld [vmem:[%s10] sm:$0x1]
        %v3737 = vsel %vm3000, %v3726, 0
        %3739 = vmatprep.subr.mxu0 0.0
        %3740 = vmatpush1.msra.mxu0 %v3727
        %3741 = vmatprep.subr.mxu0 0.0
        %3742 = vmatpush1.msra.mxu0 %v3728
        %3743 = vmatprep.subr.mxu0 0.0
        %3744 = vmatpush1.msra.mxu0 %v3729
        %3745 = vmatprep.subr.mxu0 0.0
        %3746 = vmatpush1.msra.mxu0 %v3730
        %3747 = vmatprep.subr.mxu0 0.0
        %3748 = vmatpush1.msra.mxu0 %v3731
        %3749 = vmatprep.subr.mxu0 0.0
        %3750 = vmatpush1.msra.mxu0 %v3732
        %3751 = vmatprep.subr.mxu0 0.0
        %3752 = vmatpush1.msra.mxu0 %v3733
        %3753 = vmatprep.subr.mxu0 0.0
        %3754 = vmatpush1.msra.mxu0 %v3734
        %3755 = vmatprep.subr.mxu0 0.0
        %3756 = vmatpush1.msra.mxu0 0.0
        %3757 = vmatprep.subr.mxu0 0.0
        %3758 = vmatpush1.msra.mxu0 0.0
        %3759 = vmatprep.subr.mxu0 0.0
        %3760 = vmatpush1.msra.mxu0 0.0
        %3761 = vmatprep.subr.mxu0 0.0
        %3762 = vmatpush1.msra.mxu0 0.0
        %3763 = vmatprep.subr.mxu0 0.0
        %3764 = vmatpush1.msra.mxu0 0.0
        %3765 = vmatprep.subr.mxu0 0.0
        %3766 = vmatpush1.msra.mxu0 0.0
        %3767 = vmatprep.subr.mxu0 0.0
        %3768 = vmatpush1.msra.mxu0 0.0
        %3769 = vmatprep.subr.mxu0 0.0
        %3770 = vmatpush1.msra.mxu0 0.0
        %3771 = vmatprep.subr.mxu0 0.0
        %3772 = vmatpush1.msra.mxu0 0.0
        %3773 = vmatprep.subr.mxu0 0.0
        %3774 = vmatpush1.msra.mxu0 0.0
        %3775 = vmatprep.subr.mxu0 0.0
        %3776 = vmatpush1.msra.mxu0 0.0
        %3777 = vmatprep.subr.mxu0 0.0
        %3778 = vmatpush1.msra.mxu0 0.0
        %3779 = vmatprep.subr.mxu0 0.0
        %3780 = vmatpush1.msra.mxu0 0.0
        %3781 = vmatprep.subr.mxu0 0.0
        %3782 = vmatpush1.msra.mxu0 0.0
        %3783 = vmatprep.subr.mxu0 0.0
        %3784 = vmatpush1.msra.mxu0 0.0
        %3785 = vmatprep.subr.mxu0 0.0
        %3786 = vmatpush1.msra.mxu0 0.0
        %3787 = vmatprep.subr.mxu0 0.0
        %3788 = vmatpush1.msra.mxu0 0.0
        %3789 = vmatprep.subr.mxu0 0.0
        %3790 = vmatpush1.msra.mxu0 0.0
        %3791 = vmatprep.subr.mxu0 0.0
        %3792 = vmatpush1.msra.mxu0 0.0
        %3793 = vmatprep.subr.mxu0 0.0
        %3794 = vmatpush1.msra.mxu0 0.0
        %3795 = vmatprep.subr.mxu0 0.0
        %3796 = vmatpush1.msra.mxu0 0.0
        %3797 = vmatprep.subr.mxu0 0.0
        %3798 = vmatpush1.msra.mxu0 0.0
        %3799 = vmatprep.subr.mxu0 0.0
        %3800 = vmatpush1.msra.mxu0 0.0
        %3801 = vmatprep.subr.mxu0 0.0
        %3802 = vmatpush1.msra.mxu0 0.0
        %3803 = vmatprep.mubr.f32.mxu0 0.0
        %3804 = vmatmul.mubr.f32.gmra.mrb[0].mxu0 %v3737
        %v3805 = vpop.f32.mrb[0].mxu0
        %v3806 = vadd.f32 %v3735, %v3805
        %v3807 = vpop.f32.mrb[0].mxu0
        %3808 = vdwg.mxu0
        %vm3809 = vcmask 73728
        %3810 = vst.msk [vmem:[%s378] sm:$0x1] %vm3809, %v3806
        %s3811 = sand.u32 %s269, 1
        %s3812 = scalar_lea.sflag [#allocation11], %s3811
        %s3813 = sand.u32 %s269, 1
        %s3814 = scalar_lea.vmem [#allocation10], %s3813
        // Predicated region
        $region65: #{test_cnn_forward.1} parent=63 // pred_check
          %p3815 = pneg %p279
        $region66: #{test_cnn_forward.1} parent=63 // pred_check_branch
          %3817 = sbr.rel (%p3815) target = $region68
        $region67: #{test_cnn_forward.1} parent=63 // pred_region
          %s3819 = ssub.s32 16, 16
          %3820 = vsyncadd %s3812, %s3819
          %s3821 = smul.addr %s25, 16
          %s3822 = scalar_lea.hbm %s11, %s3821
          %s3824 = sshll.u32 %s3814, 4
          %s3825 = int_to_ptr.vmem [resolvable:$true] %s3824
          %3827 = dma.vmem_to_hbm [thread:$0]  %s3825, 16, %s3822, %s3812
        $region68: #{test_cnn_forward.1} parent=63 // pred_fallthru
          _
      $region64: #{test_cnn_forward.1} parent=5 // pred_fallthru
        _
      %p3828 = scmp.le.s32.totalorder 2, %s20
      // Predicated region
      $region69: #{test_cnn_forward.1} parent=5 // pred_check
        %p3829 = pneg %p3828
      $region70: #{test_cnn_forward.1} parent=5 // pred_check_branch
        %3831 = sbr.rel (%p3829) target = $region72
      $region71: #{test_cnn_forward.1} parent=5 // pred_region
        %s3832 = ssub.s32 %s20, 2
        // Predicated region
        $region73: #{test_cnn_forward.1} parent=71 // pred_check
          %p3833 = pneg %p285
        $region74: #{test_cnn_forward.1} parent=71 // pred_check_branch
          %3835 = sbr.rel (%p3833) target = $region76
        $region75: #{test_cnn_forward.1} parent=71 // pred_region
          %s3836 = sand.u32 %s270, 1
          %s3837 = scalar_lea.sflag [#allocation11], %s3836
          %s3838 = sand.u32 %s270, 1
          %s3839 = scalar_lea.vmem [#allocation10], %s3838
          %3840 = dma.done %s3837, 16
        $region76: #{test_cnn_forward.1} parent=71 // pred_fallthru
          _
      $region72: #{test_cnn_forward.1} parent=5 // pred_fallthru
        _
    $region6: #{test_cnn_forward.1} parent=1 // loop_footer
      %s24 = sadd.s32 1, %s20
    $region7: #{test_cnn_forward.1} parent=1 // loop_footer_branch
      %19 = sbr.rel target = $region3
    $region8: #{test_cnn_forward.1} parent=1 // loop_exit
      _
    %3841 = vsyncpa [#allocation11], 1
    %s3842 = scalar_lea.sflag [#allocation11], 1
    %3843 = vsyncpa %s3842, 1

</llo_original>
